<compile_context>
chip_gen: v6e
topology: v6e:2x2x1
jax: 0.10.0
libtpu: 0.0.40
codegen_flags: <defaults>
</compile_context>

<pallas_src>
import math

import jax
import jax.numpy as jnp
from jax import lax
from jax.experimental import pallas as pl
from jax.experimental.pallas import tpu as pltpu

# ----------------------------- configuration ------------------------------
INPUT_SIZE = 32          # feature size of the sequence input
HIDDEN_SIZE = 16
NUM_UNITS = 4
K_TOP = 2
N_LAYERS = 2             # unidirectional stack; layer>0 input = hidden*num_units
SEQ_LEN = 6
BATCH = 2

NUM_INPUT_HEADS = 1
INPUT_KEY_SIZE = 16
INPUT_QUERY_SIZE = 16    # must equal INPUT_KEY_SIZE (as in the PyTorch module)
INPUT_VALUE_SIZE = 32
NUM_COMM_HEADS = 2
COMM_KEY_SIZE = 8
COMM_QUERY_SIZE = 8
COMM_VALUE_SIZE = HIDDEN_SIZE   # RIMCell forces comm_value_size == hidden_size


# --------------------------- fused per-layer kernel -------------------------
def _rim_layer_kernel(x_ref, h0_ref, kvw_ref, kvb_ref, wh_ref, x2h_ref,
                      cqkv_ref, cout_ref, out_ref, h_sc):
    U, H = NUM_UNITS, HIDDEN_SIZE
    UH = U * H
    IKS, IVS = INPUT_KEY_SIZE, INPUT_VALUE_SIZE
    CQS, CKS, CVS = COMM_QUERY_SIZE, COMM_KEY_SIZE, COMM_VALUE_SIZE
    NH = NUM_COMM_HEADS

    t = pl.program_id(0)

    @pl.when(t == 0)
    def _():
        h_sc[...] = h0_ref[...]

    h_flat = h_sc[...]                        # (B, UH) unit-major
    x = x_ref[...]                            # (B, D)
    B = x.shape[0]

    # ---------------- input attention ---------------------------------------
    # key/value nn.Linear: real row = x @ W + b ; null row (x = 0) = bias only.
    kvb = kvb_ref[...]                                                     # (1, 48)
    kv = jnp.dot(x, kvw_ref[...], preferred_element_type=jnp.float32) + kvb
    key_real, val_real = kv[:, :IKS], kv[:, IKS:]                          # (B,16),(B,32)
    key_null, val_null = kvb[:, :IKS], kvb[:, IKS:]                        # (1,16),(1,32)

    # one dot from h: [ input-attention query (U*IKS) | h2h gates, gate-major (3*UH) ]
    from_h = jnp.dot(h_flat, wh_ref[...], preferred_element_type=jnp.float32)
    q_in = from_h[:, :U * IKS]                                             # (B, 64)
    gate_h = from_h[:, U * IKS:]                                           # (B, 192)

    inv_sqrt_ik = 1.0 / math.sqrt(INPUT_KEY_SIZE)
    s_real_cols, s_null_cols = [], []
    for u in range(U):
        qu = q_in[:, u * IKS:(u + 1) * IKS]                                # (B, 16)
        s_real_cols.append(jnp.sum(qu * key_real, axis=-1, keepdims=True))
        s_null_cols.append(jnp.sum(qu * key_null, axis=-1, keepdims=True))
    s_real = jnp.concatenate(s_real_cols, axis=-1) * inv_sqrt_ik           # (B, U)
    s_null = jnp.concatenate(s_null_cols, axis=-1) * inv_sqrt_ik           # (B, U)

    # top-k (k=K_TOP) over units on the non-null score; ties -> lower index
    # (matches torch.topk ordering).  rank_u = #{v<u: s_v>=s_u} + #{v>u: s_v>s_u}
    rank_cols = []
    for u in range(U):
        su = s_real[:, u:u + 1]
        r = jnp.zeros_like(su)
        for v in range(U):
            if v == u:
                continue
            sv = s_real[:, v:v + 1]
            if v < u:
                r = r + (sv >= su).astype(jnp.float32)
            else:
                r = r + (sv > su).astype(jnp.float32)
        rank_cols.append(r)
    rank = jnp.concatenate(rank_cols, axis=-1)                             # (B, U)
    mask = (rank < float(K_TOP)).astype(jnp.float32)                       # (B, U)

    # softmax over {real, null}  (2-way softmax == sigmoid of the difference);
    # input dropout is eval-mode identity.
    p_real = jax.nn.sigmoid(s_real - s_null)                               # (B, U)
    p_null = 1.0 - p_real

    # masked attended inputs, unit-major flat (B, U*IVS)
    in_cols = []
    for u in range(U):
        in_cols.append(mask[:, u:u + 1] *
                       (p_real[:, u:u + 1] * val_real +
                        p_null[:, u:u + 1] * val_null))
    inputs_flat = jnp.concatenate(in_cols, axis=-1)                        # (B, 128)

    # ---------------- GroupGRUCell (gate-major 2-D slabs) --------------------
    gate_x = jnp.dot(inputs_flat, x2h_ref[...],
                     preferred_element_type=jnp.float32)                   # (B, 3*UH)
    i_r, i_i, i_n = gate_x[:, :UH], gate_x[:, UH:2 * UH], gate_x[:, 2 * UH:]
    h_r, h_i, h_n = gate_h[:, :UH], gate_h[:, UH:2 * UH], gate_h[:, 2 * UH:]
    resetgate = jax.nn.sigmoid(i_r + h_r)
    inputgate = jax.nn.sigmoid(i_i + h_i)
    newgate = jnp.tanh(i_n + resetgate * h_n)
    h_gru = newgate + inputgate * (h_flat - newgate)                       # (B, UH)

    # ---------------- communication attention (blocked_grad == identity fwd) -
    qkv = jnp.dot(h_gru, cqkv_ref[...], preferred_element_type=jnp.float32)
    QW, KW = NH * U * CQS, NH * U * CKS
    q_all, k_all, v_all = qkv[:, :QW], qkv[:, QW:QW + KW], qkv[:, QW + KW:]
    inv_sqrt_ck = 1.0 / math.sqrt(COMM_KEY_SIZE)

    ctx_cols = []   # head-major: [head0: u0..u3 | head1: u0..u3], each (B, CVS)
    for hh in range(NH):
        q_h = [q_all[:, hh * U * CQS + u * CQS: hh * U * CQS + (u + 1) * CQS]
               for u in range(U)]
        k_h = [k_all[:, hh * U * CKS + u * CKS: hh * U * CKS + (u + 1) * CKS]
               for u in range(U)]
        v_h = [v_all[:, hh * U * CVS + u * CVS: hh * U * CVS + (u + 1) * CVS]
               for u in range(U)]
        for u in range(U):                               # query unit
            sc_u = jnp.concatenate(
                [jnp.sum(q_h[u] * k_h[v], axis=-1, keepdims=True) for v in range(U)],
                axis=-1) * inv_sqrt_ck                                    # (B, U)
            sc_u = sc_u - jnp.max(sc_u, axis=-1, keepdims=True)
            e = jnp.exp(sc_u)
            p_u = e / jnp.sum(e, axis=-1, keepdims=True)                  # (B, U)
            p_u = p_u * mask[:, u:u + 1]     # mask query unit; comm dropout = identity
            ctx_u = p_u[:, 0:1] * v_h[0]
            for v in range(1, U):
                ctx_u = ctx_u + p_u[:, v:v + 1] * v_h[v]                  # (B, CVS)
            ctx_cols.append(ctx_u)
    ctx_flat = jnp.concatenate(ctx_cols, axis=-1)                         # (B, NH*U*CVS)

    comm = jnp.dot(ctx_flat, cout_ref[...], preferred_element_type=jnp.float32)
    h_comm = comm + h_gru                                                 # (B, UH)

    mask_h = jnp.concatenate(
        [jnp.broadcast_to(mask[:, u:u + 1], (B, H)) for u in range(U)], axis=-1)
    h_out = mask_h * h_comm + (1.0 - mask_h) * h_flat                     # (B, UH)

    h_sc[...] = h_out
    out_ref[...] = h_out


def rim_layer(p, x_seq, h0):
    """One RIM layer over the whole sequence in a single pallas_call.

    x_seq: (T, B, D), h0: (B, U*H) -> outputs (T, B, U*H)."""
    T, B, D = x_seq.shape
    UH = NUM_UNITS * HIDDEN_SIZE
    const2 = lambda t: (0, 0)
    return pl.pallas_call(
        _rim_layer_kernel,
        out_shape=jax.ShapeDtypeStruct((T, B, UH), jnp.float32),
        grid=(T,),
        in_specs=[
            pl.BlockSpec((None, B, D), lambda t: (t, 0, 0)),        # x_t
            pl.BlockSpec((B, UH), const2),                           # h0 (read at t==0)
            pl.BlockSpec(p["kv_w"].shape, const2),                   # weights: resident
            pl.BlockSpec(p["kv_b"].shape, const2),
            pl.BlockSpec(p["w_from_h"].shape, const2),
            pl.BlockSpec(p["x2h_bd"].shape, const2),
            pl.BlockSpec(p["comm_qkv_bd"].shape, const2),
            pl.BlockSpec(p["comm_out_bd"].shape, const2),
        ],
        out_specs=pl.BlockSpec((None, B, UH), lambda t: (t, 0, 0)),
        scratch_shapes=[pltpu.VMEM((B, UH), jnp.float32)],           # recurrent hidden
        # the single grid axis is the time recurrence -> must stay "arbitrary"
        compiler_params=pltpu.CompilerParams(dimension_semantics=("arbitrary",)),
    )(x_seq, h0, p["kv_w"], p["kv_b"], p["w_from_h"], p["x2h_bd"],
      p["comm_qkv_bd"], p["comm_out_bd"])


def rim_forward(packed_params, x, h0):
    """x: (T, B, F), h0: (L, B, U*H) -> (outputs (T, B, U*H), hs (L, B, U*H))."""
    hs_final = []
    for n in range(N_LAYERS):
        x = rim_layer(packed_params[n], x, h0[n])   # layer output feeds next layer
        hs_final.append(x[-1])
    return x, jnp.stack(hs_final, axis=0)


# --------------------------- parameter creation ----------------------------
def init_rimcell_params(key, input_size):
    ks = jax.random.split(key, 11)

    def rnd(k, shape, scale):
        return (scale * jax.random.normal(k, shape)).astype(jnp.float32)

    return {
        "key_w": rnd(ks[0], (input_size, NUM_INPUT_HEADS * INPUT_QUERY_SIZE), 0.05),
        "key_b": rnd(ks[1], (1, NUM_INPUT_HEADS * INPUT_QUERY_SIZE), 0.05),
        "value_w": rnd(ks[2], (input_size, NUM_INPUT_HEADS * INPUT_VALUE_SIZE), 0.05),
        "value_b": rnd(ks[3], (1, NUM_INPUT_HEADS * INPUT_VALUE_SIZE), 0.05),
        "query_w": rnd(ks[4], (NUM_UNITS, HIDDEN_SIZE, INPUT_KEY_SIZE * NUM_INPUT_HEADS), 0.1),
        "x2h_w": rnd(ks[5], (NUM_UNITS, INPUT_VALUE_SIZE, 3 * HIDDEN_SIZE), 0.1),
        "h2h_w": rnd(ks[6], (NUM_UNITS, HIDDEN_SIZE, 3 * HIDDEN_SIZE), 0.1),
        "query__w": rnd(ks[7], (NUM_UNITS, HIDDEN_SIZE, COMM_QUERY_SIZE * NUM_COMM_HEADS), 0.1),
        "key__w": rnd(ks[8], (NUM_UNITS, HIDDEN_SIZE, COMM_KEY_SIZE * NUM_COMM_HEADS), 0.1),
        "value__w": rnd(ks[9], (NUM_UNITS, HIDDEN_SIZE, COMM_VALUE_SIZE * NUM_COMM_HEADS), 0.1),
        "comm_out_w": rnd(ks[10], (NUM_UNITS, NUM_COMM_HEADS * COMM_VALUE_SIZE, COMM_VALUE_SIZE), 0.1),
    }


def pack_rimcell_params(raw):
    """Pack the per-module weights into the lane-dense, block-diagonal layouts
    consumed by the fused kernel (done once, outside the jit'd forward)."""
    U, H = NUM_UNITS, HIDDEN_SIZE
    UH = U * H
    IKS, IVS = INPUT_KEY_SIZE, INPUT_VALUE_SIZE
    NH, CQ, CK, CV = NUM_COMM_HEADS, COMM_QUERY_SIZE, COMM_KEY_SIZE, COMM_VALUE_SIZE

    kv_w = jnp.concatenate([raw["key_w"], raw["value_w"]], axis=1)   # (D, 48)
    kv_b = jnp.concatenate([raw["key_b"], raw["value_b"]], axis=1)   # (1, 48)

    qin = jnp.zeros((UH, U * IKS), jnp.float32)          # input-attn query, block-diag
    h2h = jnp.zeros((UH, 3 * UH), jnp.float32)           # gate-major block-diag
    x2h = jnp.zeros((U * IVS, 3 * UH), jnp.float32)      # gate-major block-diag
    qc = jnp.zeros((UH, NH * U * CQ), jnp.float32)       # comm q, head-major block-diag
    kc = jnp.zeros((UH, NH * U * CK), jnp.float32)
    vc = jnp.zeros((UH, NH * U * CV), jnp.float32)
    cout = jnp.zeros((NH * U * CV, UH), jnp.float32)     # comm output, head-major rows

    for u in range(U):
        qin = qin.at[u * H:(u + 1) * H, u * IKS:(u + 1) * IKS].set(raw["query_w"][u])
        for g in range(3):
            h2h = h2h.at[u * H:(u + 1) * H,
                         g * UH + u * H: g * UH + (u + 1) * H].set(
                raw["h2h_w"][u, :, g * H:(g + 1) * H])
            x2h = x2h.at[u * IVS:(u + 1) * IVS,
                         g * UH + u * H: g * UH + (u + 1) * H].set(
                raw["x2h_w"][u, :, g * H:(g + 1) * H])
        for hh in range(NH):
            qc = qc.at[u * H:(u + 1) * H,
                       hh * U * CQ + u * CQ: hh * U * CQ + (u + 1) * CQ].set(
                raw["query__w"][u, :, hh * CQ:(hh + 1) * CQ])
            kc = kc.at[u * H:(u + 1) * H,
                       hh * U * CK + u * CK: hh * U * CK + (u + 1) * CK].set(
                raw["key__w"][u, :, hh * CK:(hh + 1) * CK])
            vc = vc.at[u * H:(u + 1) * H,
                       hh * U * CV + u * CV: hh * U * CV + (u + 1) * CV].set(
                raw["value__w"][u, :, hh * CV:(hh + 1) * CV])
            cout = cout.at[hh * U * CV + u * CV: hh * U * CV + (u + 1) * CV,
                           u * CV:(u + 1) * CV].set(
                raw["comm_out_w"][u, hh * CV:(hh + 1) * CV, :])

    return {
        "kv_w": kv_w, "kv_b": kv_b,
        "w_from_h": jnp.concatenate([qin, h2h], axis=1),       # (UH, U*IKS + 3*UH)
        "x2h_bd": x2h,                                         # (U*IVS, 3*UH)
        "comm_qkv_bd": jnp.concatenate([qc, kc, vc], axis=1),  # (UH, NH*U*(CQ+CK+CV))
        "comm_out_bd": cout,                                   # (NH*U*CV, UH)
    }


# ------------------- pure-JAX reference (for correctness) -------------------
def _ref_rimcell(p, x, hs):
    B, _, D = x.shape
    xx = jnp.concatenate([x, jnp.zeros((B, 1, D), x.dtype)], axis=1)   # (B, 2, D)
    key_layer = xx @ p["key_w"] + p["key_b"]                           # (B, 2, 16)
    value_layer = xx @ p["value_w"] + p["value_b"]                     # (B, 2, 32)
    query_layer = jnp.einsum("buh,uhk->buk", hs, p["query_w"])         # (B, U, 16)
    scores = jnp.einsum("buk,bnk->bun", query_layer, key_layer) / math.sqrt(INPUT_KEY_SIZE)
    not_null = scores[:, :, 0]
    _, top_idx = lax.top_k(not_null, K_TOP)
    mask = jnp.zeros((B, NUM_UNITS), jnp.float32).at[
        jnp.arange(B)[:, None], top_idx].set(1.0)
    probs = jax.nn.softmax(scores, axis=-1)
    inputs = jnp.einsum("bun,bnv->buv", probs, value_layer) * mask[:, :, None]

    h_old = hs
    gate_x = jnp.einsum("buv,uvg->bug", inputs, p["x2h_w"])
    gate_h = jnp.einsum("buh,uhg->bug", hs, p["h2h_w"])
    H = HIDDEN_SIZE
    i_r, i_i, i_n = gate_x[..., :H], gate_x[..., H:2 * H], gate_x[..., 2 * H:]
    h_r, h_i, h_n = gate_h[..., :H], gate_h[..., H:2 * H], gate_h[..., 2 * H:]
    resetgate = jax.nn.sigmoid(i_r + h_r)
    inputgate = jax.nn.sigmoid(i_i + h_i)
    newgate = jnp.tanh(i_n + resetgate * h_n)
    hs_new = newgate + inputgate * (hs - newgate)

    def heads(a, n, s):
        return a.reshape(B, NUM_UNITS, n, s).transpose(0, 2, 1, 3)

    q = heads(jnp.einsum("buh,uhk->buk", hs_new, p["query__w"]), NUM_COMM_HEADS, COMM_QUERY_SIZE)
    k = heads(jnp.einsum("buh,uhk->buk", hs_new, p["key__w"]), NUM_COMM_HEADS, COMM_KEY_SIZE)
    v = heads(jnp.einsum("buh,uhk->buk", hs_new, p["value__w"]), NUM_COMM_HEADS, COMM_VALUE_SIZE)
    sc = jnp.einsum("bhuq,bhvq->bhuv", q, k) / math.sqrt(COMM_KEY_SIZE)
    ap = jax.nn.softmax(sc, axis=-1) * mask[:, None, :, None]
    ctx = jnp.einsum("bhuv,bhvd->bhud", ap, v)
    ctx = ctx.transpose(0, 2, 1, 3).reshape(B, NUM_UNITS, NUM_COMM_HEADS * COMM_VALUE_SIZE)
    ctx = jnp.einsum("buc,uch->buh", ctx, p["comm_out_w"])
    h_new = ctx + hs_new

    m = mask[:, :, None]
    return m * h_new + (1.0 - m) * h_old


def ref_rim_forward(raw_params, x, h0):
    T, B, _ = x.shape
    hs_final = []
    for n in range(N_LAYERS):
        p = raw_params[n]
        hcur = h0[n].reshape(B, NUM_UNITS, HIDDEN_SIZE)
        outs = []
        for t in range(T):
            hcur = _ref_rimcell(p, x[t][:, None, :], hcur)
            outs.append(hcur.reshape(1, B, NUM_UNITS * HIDDEN_SIZE))
        x = jnp.concatenate(outs, axis=0)
        hs_final.append(hcur.reshape(B, NUM_UNITS * HIDDEN_SIZE))
    return x, jnp.stack(hs_final, axis=0)


# ----------------------------------- main ------------------------------------
if __name__ == "__main__":
    root = jax.random.PRNGKey(0)
    k_x, k_h, k_p0, k_p1 = jax.random.split(root, 4)

    x = jax.random.normal(k_x, (SEQ_LEN, BATCH, INPUT_SIZE), jnp.float32)
    h0 = jax.random.normal(k_h, (N_LAYERS, BATCH, HIDDEN_SIZE * NUM_UNITS), jnp.float32)

    raw_params = [
        init_rimcell_params(k_p0, INPUT_SIZE),                # layer 0: raw input
        init_rimcell_params(k_p1, HIDDEN_SIZE * NUM_UNITS),   # layer 1: stacked input
    ]
    packed_params = [pack_rimcell_params(p) for p in raw_params]

    fwd = jax.jit(rim_forward)
    out, hs = fwd(packed_params, x, h0)
    jax.block_until_ready((out, hs))

    assert out.shape == (SEQ_LEN, BATCH, HIDDEN_SIZE * NUM_UNITS)
    assert hs.shape == (N_LAYERS, BATCH, HIDDEN_SIZE * NUM_UNITS)
    assert bool(jnp.all(jnp.isfinite(out))) and bool(jnp.all(jnp.isfinite(hs)))

    # correctness check against a plain-JAX implementation of the same forward
    with jax.default_matmul_precision("highest"):
        ref_out, ref_hs = jax.jit(ref_rim_forward)(raw_params, x, h0)
    jax.block_until_ready((ref_out, ref_hs))
    err = max(float(jnp.max(jnp.abs(out - ref_out))),
              float(jnp.max(jnp.abs(hs - ref_hs))))
    assert err < 2e-2, f"mismatch vs reference: max abs err {err}"

    print("KERNEL_OK")
</pallas_src>

<mosaic_0001>
module attributes {stable_mosaic.version = 11 : i64} {
  func.func @_rim_layer_kernel(%arg0: i32, %arg1: memref<1x2x32xf32, #tpu.memory_space<vmem>>, %arg2: memref<2x64xf32, #tpu.memory_space<vmem>>, %arg3: memref<32x48xf32, #tpu.memory_space<vmem>>, %arg4: memref<1x48xf32, #tpu.memory_space<vmem>>, %arg5: memref<64x256xf32, #tpu.memory_space<vmem>>, %arg6: memref<128x192xf32, #tpu.memory_space<vmem>>, %arg7: memref<64x256xf32, #tpu.memory_space<vmem>>, %arg8: memref<128x64xf32, #tpu.memory_space<vmem>>, %arg9: memref<1x2x64xf32, #tpu.memory_space<vmem>>, %arg10: memref<2x64xf32, #tpu.memory_space<vmem>>) attributes {dimension_semantics = [#tpu.dimension_semantics<arbitrary>], iteration_bounds = array<i64: 6>, scalar_prefetch = 0 : i64, scratch_operands = 1 : i64, tpu.core_type = #tpu.core_type<tc>, window_params = [{transform_indices = @transform_0, window_bounds = array<i64: 1, 2, 32>}, {pipeline_mode = #tpu.pipeline_mode<synchronous>, transform_indices = @transform_1, window_bounds = array<i64: 2, 64>}, {pipeline_mode = #tpu.pipeline_mode<synchronous>, transform_indices = @transform_2, window_bounds = array<i64: 32, 48>}, {pipeline_mode = #tpu.pipeline_mode<synchronous>, transform_indices = @transform_3, window_bounds = array<i64: 1, 48>}, {pipeline_mode = #tpu.pipeline_mode<synchronous>, transform_indices = @transform_4, window_bounds = array<i64: 64, 256>}, {pipeline_mode = #tpu.pipeline_mode<synchronous>, transform_indices = @transform_5, window_bounds = array<i64: 128, 192>}, {pipeline_mode = #tpu.pipeline_mode<synchronous>, transform_indices = @transform_6, window_bounds = array<i64: 64, 256>}, {pipeline_mode = #tpu.pipeline_mode<synchronous>, transform_indices = @transform_7, window_bounds = array<i64: 128, 64>}, {transform_indices = @transform_8, window_bounds = array<i64: 1, 2, 64>}]} {
    %c0_i32 = arith.constant 0 : i32
    %0 = arith.cmpi eq, %arg0, %c0_i32 : i32
    %1 = arith.extui %0 : i1 to i32
    %c0_i32_0 = arith.constant 0 : i32
    %2 = arith.cmpi ne, %1, %c0_i32_0 : i32
    scf.if %2 {
      %c0_102 = arith.constant 0 : index
      %c0_103 = arith.constant 0 : index
      %600 = vector.load %arg2[%c0_102, %c0_103] : memref<2x64xf32, #tpu.memory_space<vmem>>, vector<2x64xf32>
      %c0_104 = arith.constant 0 : index
      %c0_105 = arith.constant 0 : index
      %601 = vector.load %arg10[%c0_104, %c0_105] : memref<2x64xf32, #tpu.memory_space<vmem>>, vector<2x64xf32>
      tpu.vector_store %arg10[%c0_104, %c0_105], %600 {strides = array<i32>} : memref<2x64xf32, #tpu.memory_space<vmem>>, vector<2x64xf32>,
    } else {
    }
    %c0 = arith.constant 0 : index
    %c0_1 = arith.constant 0 : index
    %3 = vector.load %arg10[%c0, %c0_1] : memref<2x64xf32, #tpu.memory_space<vmem>>, vector<2x64xf32>
    %c0_2 = arith.constant 0 : index
    %c0_3 = arith.constant 0 : index
    %c0_4 = arith.constant 0 : index
    %4 = vector.load %arg1[%c0_2, %c0_3, %c0_4] : memref<1x2x32xf32, #tpu.memory_space<vmem>>, vector<1x2x32xf32>
    %5 = vector.shape_cast %4 : vector<1x2x32xf32> to vector<2x32xf32>
    %c0_5 = arith.constant 0 : index
    %c0_6 = arith.constant 0 : index
    %6 = vector.load %arg4[%c0_5, %c0_6] : memref<1x48xf32, #tpu.memory_space<vmem>>, vector<1x48xf32>
    %c0_7 = arith.constant 0 : index
    %c0_8 = arith.constant 0 : index
    %7 = vector.load %arg3[%c0_7, %c0_8] : memref<32x48xf32, #tpu.memory_space<vmem>>, vector<32x48xf32>
    %cst = arith.constant dense<0.000000e+00> : vector<2x48xf32>
    %8 = tpu.matmul %5, %7, %cst {dimension_numbers = #tpu.dot_dimension_numbers<[1], [0], [0], [1], [0, 0, 1, 1], [], []>} : vector<2x32xf32>, vector<32x48xf32>, vector<2x48xf32> -> vector<2x48xf32>
    %9 = vector.broadcast %6 : vector<1x48xf32> to vector<2x48xf32>
    %10 = arith.addf %8, %9 : vector<2x48xf32>
    %11 = vector.extract_strided_slice %10 {offsets = [0, 0], sizes = [2, 16], strides = [1, 1]} : vector<2x48xf32> to vector<2x16xf32>
    %12 = vector.extract_strided_slice %10 {offsets = [0, 16], sizes = [2, 32], strides = [1, 1]} : vector<2x48xf32> to vector<2x32xf32>
    %13 = vector.extract_strided_slice %6 {offsets = [0, 0], sizes = [1, 16], strides = [1, 1]} : vector<1x48xf32> to vector<1x16xf32>
    %14 = vector.extract_strided_slice %6 {offsets = [0, 16], sizes = [1, 32], strides = [1, 1]} : vector<1x48xf32> to vector<1x32xf32>
    %c0_9 = arith.constant 0 : index
    %c0_10 = arith.constant 0 : index
    %15 = vector.load %arg5[%c0_9, %c0_10] : memref<64x256xf32, #tpu.memory_space<vmem>>, vector<64x256xf32>
    %cst_11 = arith.constant dense<0.000000e+00> : vector<2x256xf32>
    %16 = tpu.matmul %3, %15, %cst_11 {dimension_numbers = #tpu.dot_dimension_numbers<[1], [0], [0], [1], [0, 0, 1, 1], [], []>} : vector<2x64xf32>, vector<64x256xf32>, vector<2x256xf32> -> vector<2x256xf32>
    %17 = vector.extract_strided_slice %16 {offsets = [0, 0], sizes = [2, 64], strides = [1, 1]} : vector<2x256xf32> to vector<2x64xf32>
    %18 = vector.extract_strided_slice %16 {offsets = [0, 64], sizes = [2, 192], strides = [1, 1]} : vector<2x256xf32> to vector<2x192xf32>
    %19 = vector.extract_strided_slice %17 {offsets = [0, 0], sizes = [2, 16], strides = [1, 1]} : vector<2x64xf32> to vector<2x16xf32>
    %20 = arith.mulf %19, %11 : vector<2x16xf32>
    %cst_12 = arith.constant dense<0.000000e+00> : vector<2xf32>
    %21 = vector.multi_reduction <add>, %20, %cst_12 [1] : vector<2x16xf32> to vector<2xf32>
    %22 = vector.shape_cast %21 : vector<2xf32> to vector<2x1xf32>
    %23 = vector.broadcast %13 : vector<1x16xf32> to vector<2x16xf32>
    %24 = arith.mulf %19, %23 : vector<2x16xf32>
    %cst_13 = arith.constant dense<0.000000e+00> : vector<2xf32>
    %25 = vector.multi_reduction <add>, %24, %cst_13 [1] : vector<2x16xf32> to vector<2xf32>
    %26 = vector.shape_cast %25 : vector<2xf32> to vector<2x1xf32>
    %27 = vector.extract_strided_slice %17 {offsets = [0, 16], sizes = [2, 16], strides = [1, 1]} : vector<2x64xf32> to vector<2x16xf32>
    %28 = arith.mulf %27, %11 : vector<2x16xf32>
    %cst_14 = arith.constant dense<0.000000e+00> : vector<2xf32>
    %29 = vector.multi_reduction <add>, %28, %cst_14 [1] : vector<2x16xf32> to vector<2xf32>
    %30 = vector.shape_cast %29 : vector<2xf32> to vector<2x1xf32>
    %31 = vector.broadcast %13 : vector<1x16xf32> to vector<2x16xf32>
    %32 = arith.mulf %27, %31 : vector<2x16xf32>
    %cst_15 = arith.constant dense<0.000000e+00> : vector<2xf32>
    %33 = vector.multi_reduction <add>, %32, %cst_15 [1] : vector<2x16xf32> to vector<2xf32>
    %34 = vector.shape_cast %33 : vector<2xf32> to vector<2x1xf32>
    %35 = vector.extract_strided_slice %17 {offsets = [0, 32], sizes = [2, 16], strides = [1, 1]} : vector<2x64xf32> to vector<2x16xf32>
    %36 = arith.mulf %35, %11 : vector<2x16xf32>
    %cst_16 = arith.constant dense<0.000000e+00> : vector<2xf32>
    %37 = vector.multi_reduction <add>, %36, %cst_16 [1] : vector<2x16xf32> to vector<2xf32>
    %38 = vector.shape_cast %37 : vector<2xf32> to vector<2x1xf32>
    %39 = vector.broadcast %13 : vector<1x16xf32> to vector<2x16xf32>
    %40 = arith.mulf %35, %39 : vector<2x16xf32>
    %cst_17 = arith.constant dense<0.000000e+00> : vector<2xf32>
    %41 = vector.multi_reduction <add>, %40, %cst_17 [1] : vector<2x16xf32> to vector<2xf32>
    %42 = vector.shape_cast %41 : vector<2xf32> to vector<2x1xf32>
    %43 = vector.extract_strided_slice %17 {offsets = [0, 48], sizes = [2, 16], strides = [1, 1]} : vector<2x64xf32> to vector<2x16xf32>
    %44 = arith.mulf %43, %11 : vector<2x16xf32>
    %cst_18 = arith.constant dense<0.000000e+00> : vector<2xf32>
    %45 = vector.multi_reduction <add>, %44, %cst_18 [1] : vector<2x16xf32> to vector<2xf32>
    %46 = vector.shape_cast %45 : vector<2xf32> to vector<2x1xf32>
    %47 = vector.broadcast %13 : vector<1x16xf32> to vector<2x16xf32>
    %48 = arith.mulf %43, %47 : vector<2x16xf32>
    %cst_19 = arith.constant dense<0.000000e+00> : vector<2xf32>
    %49 = vector.multi_reduction <add>, %48, %cst_19 [1] : vector<2x16xf32> to vector<2xf32>
    %50 = vector.shape_cast %49 : vector<2xf32> to vector<2x1xf32>
    %51 = tpu.concatenate %22, %30, %38, %46 in 1 : vector<2x1xf32>, vector<2x1xf32>, vector<2x1xf32>, vector<2x1xf32> -> vector<2x4xf32>
    %cst_20 = arith.constant 2.500000e-01 : f32
    %52 = vector.broadcast %cst_20 : f32 to vector<2x4xf32>
    %53 = arith.mulf %51, %52 : vector<2x4xf32>
    %54 = tpu.concatenate %26, %34, %42, %50 in 1 : vector<2x1xf32>, vector<2x1xf32>, vector<2x1xf32>, vector<2x1xf32> -> vector<2x4xf32>
    %cst_21 = arith.constant 2.500000e-01 : f32
    %55 = vector.broadcast %cst_21 : f32 to vector<2x4xf32>
    %56 = arith.mulf %54, %55 : vector<2x4xf32>
    %57 = vector.extract_strided_slice %53 {offsets = [0, 0], sizes = [2, 1], strides = [1, 1]} : vector<2x4xf32> to vector<2x1xf32>
    %cst_22 = arith.constant 0.000000e+00 : f32
    %58 = vector.broadcast %cst_22 : f32 to vector<2x1xf32>
    %59 = vector.extract_strided_slice %53 {offsets = [0, 1], sizes = [2, 1], strides = [1, 1]} : vector<2x4xf32> to vector<2x1xf32>
    %60 = arith.cmpf ogt, %59, %57 : vector<2x1xf32>
    %61 = arith.extui %60 : vector<2x1xi1> to vector<2x1xi32>
    %62 = arith.sitofp %61 : vector<2x1xi32> to vector<2x1xf32>
    %63 = arith.addf %58, %62 : vector<2x1xf32>
    %64 = vector.extract_strided_slice %53 {offsets = [0, 2], sizes = [2, 1], strides = [1, 1]} : vector<2x4xf32> to vector<2x1xf32>
    %65 = arith.cmpf ogt, %64, %57 : vector<2x1xf32>
    %66 = arith.extui %65 : vector<2x1xi1> to vector<2x1xi32>
    %67 = arith.sitofp %66 : vector<2x1xi32> to vector<2x1xf32>
    %68 = arith.addf %63, %67 : vector<2x1xf32>
    %69 = vector.extract_strided_slice %53 {offsets = [0, 3], sizes = [2, 1], strides = [1, 1]} : vector<2x4xf32> to vector<2x1xf32>
    %70 = arith.cmpf ogt, %69, %57 : vector<2x1xf32>
    %71 = arith.extui %70 : vector<2x1xi1> to vector<2x1xi32>
    %72 = arith.sitofp %71 : vector<2x1xi32> to vector<2x1xf32>
    %73 = arith.addf %68, %72 : vector<2x1xf32>
    %74 = vector.extract_strided_slice %53 {offsets = [0, 1], sizes = [2, 1], strides = [1, 1]} : vector<2x4xf32> to vector<2x1xf32>
    %cst_23 = arith.constant 0.000000e+00 : f32
    %75 = vector.broadcast %cst_23 : f32 to vector<2x1xf32>
    %76 = vector.extract_strided_slice %53 {offsets = [0, 0], sizes = [2, 1], strides = [1, 1]} : vector<2x4xf32> to vector<2x1xf32>
    %77 = arith.cmpf oge, %76, %74 : vector<2x1xf32>
    %78 = arith.extui %77 : vector<2x1xi1> to vector<2x1xi32>
    %79 = arith.sitofp %78 : vector<2x1xi32> to vector<2x1xf32>
    %80 = arith.addf %75, %79 : vector<2x1xf32>
    %81 = vector.extract_strided_slice %53 {offsets = [0, 2], sizes = [2, 1], strides = [1, 1]} : vector<2x4xf32> to vector<2x1xf32>
    %82 = arith.cmpf ogt, %81, %74 : vector<2x1xf32>
    %83 = arith.extui %82 : vector<2x1xi1> to vector<2x1xi32>
    %84 = arith.sitofp %83 : vector<2x1xi32> to vector<2x1xf32>
    %85 = arith.addf %80, %84 : vector<2x1xf32>
    %86 = vector.extract_strided_slice %53 {offsets = [0, 3], sizes = [2, 1], strides = [1, 1]} : vector<2x4xf32> to vector<2x1xf32>
    %87 = arith.cmpf ogt, %86, %74 : vector<2x1xf32>
    %88 = arith.extui %87 : vector<2x1xi1> to vector<2x1xi32>
    %89 = arith.sitofp %88 : vector<2x1xi32> to vector<2x1xf32>
    %90 = arith.addf %85, %89 : vector<2x1xf32>
    %91 = vector.extract_strided_slice %53 {offsets = [0, 2], sizes = [2, 1], strides = [1, 1]} : vector<2x4xf32> to vector<2x1xf32>
    %cst_24 = arith.constant 0.000000e+00 : f32
    %92 = vector.broadcast %cst_24 : f32 to vector<2x1xf32>
    %93 = vector.extract_strided_slice %53 {offsets = [0, 0], sizes = [2, 1], strides = [1, 1]} : vector<2x4xf32> to vector<2x1xf32>
    %94 = arith.cmpf oge, %93, %91 : vector<2x1xf32>
    %95 = arith.extui %94 : vector<2x1xi1> to vector<2x1xi32>
    %96 = arith.sitofp %95 : vector<2x1xi32> to vector<2x1xf32>
    %97 = arith.addf %92, %96 : vector<2x1xf32>
    %98 = vector.extract_strided_slice %53 {offsets = [0, 1], sizes = [2, 1], strides = [1, 1]} : vector<2x4xf32> to vector<2x1xf32>
    %99 = arith.cmpf oge, %98, %91 : vector<2x1xf32>
    %100 = arith.extui %99 : vector<2x1xi1> to vector<2x1xi32>
    %101 = arith.sitofp %100 : vector<2x1xi32> to vector<2x1xf32>
    %102 = arith.addf %97, %101 : vector<2x1xf32>
    %103 = vector.extract_strided_slice %53 {offsets = [0, 3], sizes = [2, 1], strides = [1, 1]} : vector<2x4xf32> to vector<2x1xf32>
    %104 = arith.cmpf ogt, %103, %91 : vector<2x1xf32>
    %105 = arith.extui %104 : vector<2x1xi1> to vector<2x1xi32>
    %106 = arith.sitofp %105 : vector<2x1xi32> to vector<2x1xf32>
    %107 = arith.addf %102, %106 : vector<2x1xf32>
    %108 = vector.extract_strided_slice %53 {offsets = [0, 3], sizes = [2, 1], strides = [1, 1]} : vector<2x4xf32> to vector<2x1xf32>
    %cst_25 = arith.constant 0.000000e+00 : f32
    %109 = vector.broadcast %cst_25 : f32 to vector<2x1xf32>
    %110 = vector.extract_strided_slice %53 {offsets = [0, 0], sizes = [2, 1], strides = [1, 1]} : vector<2x4xf32> to vector<2x1xf32>
    %111 = arith.cmpf oge, %110, %108 : vector<2x1xf32>
    %112 = arith.extui %111 : vector<2x1xi1> to vector<2x1xi32>
    %113 = arith.sitofp %112 : vector<2x1xi32> to vector<2x1xf32>
    %114 = arith.addf %109, %113 : vector<2x1xf32>
    %115 = vector.extract_strided_slice %53 {offsets = [0, 1], sizes = [2, 1], strides = [1, 1]} : vector<2x4xf32> to vector<2x1xf32>
    %116 = arith.cmpf oge, %115, %108 : vector<2x1xf32>
    %117 = arith.extui %116 : vector<2x1xi1> to vector<2x1xi32>
    %118 = arith.sitofp %117 : vector<2x1xi32> to vector<2x1xf32>
    %119 = arith.addf %114, %118 : vector<2x1xf32>
    %120 = vector.extract_strided_slice %53 {offsets = [0, 2], sizes = [2, 1], strides = [1, 1]} : vector<2x4xf32> to vector<2x1xf32>
    %121 = arith.cmpf oge, %120, %108 : vector<2x1xf32>
    %122 = arith.extui %121 : vector<2x1xi1> to vector<2x1xi32>
    %123 = arith.sitofp %122 : vector<2x1xi32> to vector<2x1xf32>
    %124 = arith.addf %119, %123 : vector<2x1xf32>
    %125 = tpu.concatenate %73, %90, %107, %124 in 1 : vector<2x1xf32>, vector<2x1xf32>, vector<2x1xf32>, vector<2x1xf32> -> vector<2x4xf32>
    %cst_26 = arith.constant 2.000000e+00 : f32
    %126 = vector.broadcast %cst_26 : f32 to vector<2x4xf32>
    %127 = arith.cmpf olt, %125, %126 : vector<2x4xf32>
    %128 = arith.extui %127 : vector<2x4xi1> to vector<2x4xi32>
    %129 = arith.sitofp %128 : vector<2x4xi32> to vector<2x4xf32>
    %130 = arith.subf %53, %56 : vector<2x4xf32>
    %131 = arith.negf %130 : vector<2x4xf32>
    %132 = math.exp %131 : vector<2x4xf32>
    %cst_27 = arith.constant 1.000000e+00 : f32
    %133 = vector.broadcast %cst_27 : f32 to vector<2x4xf32>
    %134 = arith.addf %133, %132 : vector<2x4xf32>
    %135 = arith.divf %133, %134 : vector<2x4xf32>
    %cst_28 = arith.constant 1.000000e+00 : f32
    %136 = vector.broadcast %cst_28 : f32 to vector<2x4xf32>
    %137 = arith.subf %136, %135 : vector<2x4xf32>
    %138 = vector.extract_strided_slice %129 {offsets = [0, 0], sizes = [2, 1], strides = [1, 1]} : vector<2x4xf32> to vector<2x1xf32>
    %139 = vector.extract_strided_slice %135 {offsets = [0, 0], sizes = [2, 1], strides = [1, 1]} : vector<2x4xf32> to vector<2x1xf32>
    %140 = vector.broadcast %139 : vector<2x1xf32> to vector<2x32xf32>
    %141 = arith.mulf %140, %12 : vector<2x32xf32>
    %142 = vector.extract_strided_slice %137 {offsets = [0, 0], sizes = [2, 1], strides = [1, 1]} : vector<2x4xf32> to vector<2x1xf32>
    %143 = vector.broadcast %142 : vector<2x1xf32> to vector<2x32xf32>
    %144 = vector.broadcast %14 : vector<1x32xf32> to vector<2x32xf32>
    %145 = arith.mulf %143, %144 : vector<2x32xf32>
    %146 = arith.addf %141, %145 : vector<2x32xf32>
    %147 = vector.broadcast %138 : vector<2x1xf32> to vector<2x32xf32>
    %148 = arith.mulf %147, %146 : vector<2x32xf32>
    %149 = vector.extract_strided_slice %129 {offsets = [0, 1], sizes = [2, 1], strides = [1, 1]} : vector<2x4xf32> to vector<2x1xf32>
    %150 = vector.extract_strided_slice %135 {offsets = [0, 1], sizes = [2, 1], strides = [1, 1]} : vector<2x4xf32> to vector<2x1xf32>
    %151 = vector.broadcast %150 : vector<2x1xf32> to vector<2x32xf32>
    %152 = arith.mulf %151, %12 : vector<2x32xf32>
    %153 = vector.extract_strided_slice %137 {offsets = [0, 1], sizes = [2, 1], strides = [1, 1]} : vector<2x4xf32> to vector<2x1xf32>
    %154 = vector.broadcast %153 : vector<2x1xf32> to vector<2x32xf32>
    %155 = vector.broadcast %14 : vector<1x32xf32> to vector<2x32xf32>
    %156 = arith.mulf %154, %155 : vector<2x32xf32>
    %157 = arith.addf %152, %156 : vector<2x32xf32>
    %158 = vector.broadcast %149 : vector<2x1xf32> to vector<2x32xf32>
    %159 = arith.mulf %158, %157 : vector<2x32xf32>
    %160 = vector.extract_strided_slice %129 {offsets = [0, 2], sizes = [2, 1], strides = [1, 1]} : vector<2x4xf32> to vector<2x1xf32>
    %161 = vector.extract_strided_slice %135 {offsets = [0, 2], sizes = [2, 1], strides = [1, 1]} : vector<2x4xf32> to vector<2x1xf32>
    %162 = vector.broadcast %161 : vector<2x1xf32> to vector<2x32xf32>
    %163 = arith.mulf %162, %12 : vector<2x32xf32>
    %164 = vector.extract_strided_slice %137 {offsets = [0, 2], sizes = [2, 1], strides = [1, 1]} : vector<2x4xf32> to vector<2x1xf32>
    %165 = vector.broadcast %164 : vector<2x1xf32> to vector<2x32xf32>
    %166 = vector.broadcast %14 : vector<1x32xf32> to vector<2x32xf32>
    %167 = arith.mulf %165, %166 : vector<2x32xf32>
    %168 = arith.addf %163, %167 : vector<2x32xf32>
    %169 = vector.broadcast %160 : vector<2x1xf32> to vector<2x32xf32>
    %170 = arith.mulf %169, %168 : vector<2x32xf32>
    %171 = vector.extract_strided_slice %129 {offsets = [0, 3], sizes = [2, 1], strides = [1, 1]} : vector<2x4xf32> to vector<2x1xf32>
    %172 = vector.extract_strided_slice %135 {offsets = [0, 3], sizes = [2, 1], strides = [1, 1]} : vector<2x4xf32> to vector<2x1xf32>
    %173 = vector.broadcast %172 : vector<2x1xf32> to vector<2x32xf32>
    %174 = arith.mulf %173, %12 : vector<2x32xf32>
    %175 = vector.extract_strided_slice %137 {offsets = [0, 3], sizes = [2, 1], strides = [1, 1]} : vector<2x4xf32> to vector<2x1xf32>
    %176 = vector.broadcast %175 : vector<2x1xf32> to vector<2x32xf32>
    %177 = vector.broadcast %14 : vector<1x32xf32> to vector<2x32xf32>
    %178 = arith.mulf %176, %177 : vector<2x32xf32>
    %179 = arith.addf %174, %178 : vector<2x32xf32>
    %180 = vector.broadcast %171 : vector<2x1xf32> to vector<2x32xf32>
    %181 = arith.mulf %180, %179 : vector<2x32xf32>
    %182 = tpu.concatenate %148, %159, %170, %181 in 1 : vector<2x32xf32>, vector<2x32xf32>, vector<2x32xf32>, vector<2x32xf32> -> vector<2x128xf32>
    %c0_29 = arith.constant 0 : index
    %c0_30 = arith.constant 0 : index
    %183 = vector.load %arg6[%c0_29, %c0_30] : memref<128x192xf32, #tpu.memory_space<vmem>>, vector<128x192xf32>
    %cst_31 = arith.constant dense<0.000000e+00> : vector<2x192xf32>
    %184 = tpu.matmul %182, %183, %cst_31 {dimension_numbers = #tpu.dot_dimension_numbers<[1], [0], [0], [1], [0, 0, 1, 1], [], []>} : vector<2x128xf32>, vector<128x192xf32>, vector<2x192xf32> -> vector<2x192xf32>
    %185 = vector.extract_strided_slice %184 {offsets = [0, 0], sizes = [2, 64], strides = [1, 1]} : vector<2x192xf32> to vector<2x64xf32>
    %186 = vector.extract_strided_slice %184 {offsets = [0, 64], sizes = [2, 64], strides = [1, 1]} : vector<2x192xf32> to vector<2x64xf32>
    %187 = vector.extract_strided_slice %184 {offsets = [0, 128], sizes = [2, 64], strides = [1, 1]} : vector<2x192xf32> to vector<2x64xf32>
    %188 = vector.extract_strided_slice %18 {offsets = [0, 0], sizes = [2, 64], strides = [1, 1]} : vector<2x192xf32> to vector<2x64xf32>
    %189 = vector.extract_strided_slice %18 {offsets = [0, 64], sizes = [2, 64], strides = [1, 1]} : vector<2x192xf32> to vector<2x64xf32>
    %190 = vector.extract_strided_slice %18 {offsets = [0, 128], sizes = [2, 64], strides = [1, 1]} : vector<2x192xf32> to vector<2x64xf32>
    %191 = arith.addf %185, %188 : vector<2x64xf32>
    %192 = arith.negf %191 : vector<2x64xf32>
    %193 = math.exp %192 : vector<2x64xf32>
    %cst_32 = arith.constant 1.000000e+00 : f32
    %194 = vector.broadcast %cst_32 : f32 to vector<2x64xf32>
    %195 = arith.addf %194, %193 : vector<2x64xf32>
    %196 = arith.divf %194, %195 : vector<2x64xf32>
    %197 = arith.addf %186, %189 : vector<2x64xf32>
    %198 = arith.negf %197 : vector<2x64xf32>
    %199 = math.exp %198 : vector<2x64xf32>
    %cst_33 = arith.constant 1.000000e+00 : f32
    %200 = vector.broadcast %cst_33 : f32 to vector<2x64xf32>
    %201 = arith.addf %200, %199 : vector<2x64xf32>
    %202 = arith.divf %200, %201 : vector<2x64xf32>
    %203 = arith.mulf %196, %190 : vector<2x64xf32>
    %204 = arith.addf %187, %203 : vector<2x64xf32>
    %205 = math.tanh %204 : vector<2x64xf32>
    %206 = arith.subf %3, %205 : vector<2x64xf32>
    %207 = arith.mulf %202, %206 : vector<2x64xf32>
    %208 = arith.addf %205, %207 : vector<2x64xf32>
    %c0_34 = arith.constant 0 : index
    %c0_35 = arith.constant 0 : index
    %209 = vector.load %arg7[%c0_34, %c0_35] : memref<64x256xf32, #tpu.memory_space<vmem>>, vector<64x256xf32>
    %cst_36 = arith.constant dense<0.000000e+00> : vector<2x256xf32>
    %210 = tpu.matmul %208, %209, %cst_36 {dimension_numbers = #tpu.dot_dimension_numbers<[1], [0], [0], [1], [0, 0, 1, 1], [], []>} : vector<2x64xf32>, vector<64x256xf32>, vector<2x256xf32> -> vector<2x256xf32>
    %211 = vector.extract_strided_slice %210 {offsets = [0, 0], sizes = [2, 64], strides = [1, 1]} : vector<2x256xf32> to vector<2x64xf32>
    %212 = vector.extract_strided_slice %210 {offsets = [0, 64], sizes = [2, 64], strides = [1, 1]} : vector<2x256xf32> to vector<2x64xf32>
    %213 = vector.extract_strided_slice %210 {offsets = [0, 128], sizes = [2, 128], strides = [1, 1]} : vector<2x256xf32> to vector<2x128xf32>
    %214 = vector.extract_strided_slice %211 {offsets = [0, 0], sizes = [2, 8], strides = [1, 1]} : vector<2x64xf32> to vector<2x8xf32>
    %215 = vector.extract_strided_slice %211 {offsets = [0, 8], sizes = [2, 8], strides = [1, 1]} : vector<2x64xf32> to vector<2x8xf32>
    %216 = vector.extract_strided_slice %211 {offsets = [0, 16], sizes = [2, 8], strides = [1, 1]} : vector<2x64xf32> to vector<2x8xf32>
    %217 = vector.extract_strided_slice %211 {offsets = [0, 24], sizes = [2, 8], strides = [1, 1]} : vector<2x64xf32> to vector<2x8xf32>
    %218 = vector.extract_strided_slice %212 {offsets = [0, 0], sizes = [2, 8], strides = [1, 1]} : vector<2x64xf32> to vector<2x8xf32>
    %219 = vector.extract_strided_slice %212 {offsets = [0, 8], sizes = [2, 8], strides = [1, 1]} : vector<2x64xf32> to vector<2x8xf32>
    %220 = vector.extract_strided_slice %212 {offsets = [0, 16], sizes = [2, 8], strides = [1, 1]} : vector<2x64xf32> to vector<2x8xf32>
    %221 = vector.extract_strided_slice %212 {offsets = [0, 24], sizes = [2, 8], strides = [1, 1]} : vector<2x64xf32> to vector<2x8xf32>
    %222 = vector.extract_strided_slice %213 {offsets = [0, 0], sizes = [2, 16], strides = [1, 1]} : vector<2x128xf32> to vector<2x16xf32>
    %223 = vector.extract_strided_slice %213 {offsets = [0, 16], sizes = [2, 16], strides = [1, 1]} : vector<2x128xf32> to vector<2x16xf32>
    %224 = vector.extract_strided_slice %213 {offsets = [0, 32], sizes = [2, 16], strides = [1, 1]} : vector<2x128xf32> to vector<2x16xf32>
    %225 = vector.extract_strided_slice %213 {offsets = [0, 48], sizes = [2, 16], strides = [1, 1]} : vector<2x128xf32> to vector<2x16xf32>
    %226 = arith.mulf %214, %218 : vector<2x8xf32>
    %cst_37 = arith.constant dense<0.000000e+00> : vector<2xf32>
    %227 = vector.multi_reduction <add>, %226, %cst_37 [1] : vector<2x8xf32> to vector<2xf32>
    %228 = vector.shape_cast %227 : vector<2xf32> to vector<2x1xf32>
    %229 = arith.mulf %214, %219 : vector<2x8xf32>
    %cst_38 = arith.constant dense<0.000000e+00> : vector<2xf32>
    %230 = vector.multi_reduction <add>, %229, %cst_38 [1] : vector<2x8xf32> to vector<2xf32>
    %231 = vector.shape_cast %230 : vector<2xf32> to vector<2x1xf32>
    %232 = arith.mulf %214, %220 : vector<2x8xf32>
    %cst_39 = arith.constant dense<0.000000e+00> : vector<2xf32>
    %233 = vector.multi_reduction <add>, %232, %cst_39 [1] : vector<2x8xf32> to vector<2xf32>
    %234 = vector.shape_cast %233 : vector<2xf32> to vector<2x1xf32>
    %235 = arith.mulf %214, %221 : vector<2x8xf32>
    %cst_40 = arith.constant dense<0.000000e+00> : vector<2xf32>
    %236 = vector.multi_reduction <add>, %235, %cst_40 [1] : vector<2x8xf32> to vector<2xf32>
    %237 = vector.shape_cast %236 : vector<2xf32> to vector<2x1xf32>
    %238 = tpu.concatenate %228, %231, %234, %237 in 1 : vector<2x1xf32>, vector<2x1xf32>, vector<2x1xf32>, vector<2x1xf32> -> vector<2x4xf32>
    %cst_41 = arith.constant 0.353553385 : f32
    %239 = vector.broadcast %cst_41 : f32 to vector<2x4xf32>
    %240 = arith.mulf %238, %239 : vector<2x4xf32>
    %cst_42 = arith.constant dense<0xFF800000> : vector<2xf32>
    %241 = vector.multi_reduction <maximumf>, %240, %cst_42 [1] : vector<2x4xf32> to vector<2xf32>
    %242 = vector.shape_cast %241 : vector<2xf32> to vector<2x1xf32>
    %243 = vector.broadcast %242 : vector<2x1xf32> to vector<2x4xf32>
    %244 = arith.subf %240, %243 : vector<2x4xf32>
    %245 = math.exp %244 : vector<2x4xf32>
    %cst_43 = arith.constant dense<0.000000e+00> : vector<2xf32>
    %246 = vector.multi_reduction <add>, %245, %cst_43 [1] : vector<2x4xf32> to vector<2xf32>
    %247 = vector.shape_cast %246 : vector<2xf32> to vector<2x1xf32>
    %248 = vector.broadcast %247 : vector<2x1xf32> to vector<2x4xf32>
    %249 = arith.divf %245, %248 : vector<2x4xf32>
    %250 = vector.extract_strided_slice %129 {offsets = [0, 0], sizes = [2, 1], strides = [1, 1]} : vector<2x4xf32> to vector<2x1xf32>
    %251 = vector.broadcast %250 : vector<2x1xf32> to vector<2x4xf32>
    %252 = arith.mulf %249, %251 : vector<2x4xf32>
    %253 = vector.extract_strided_slice %252 {offsets = [0, 0], sizes = [2, 1], strides = [1, 1]} : vector<2x4xf32> to vector<2x1xf32>
    %254 = vector.broadcast %253 : vector<2x1xf32> to vector<2x16xf32>
    %255 = arith.mulf %254, %222 : vector<2x16xf32>
    %256 = vector.extract_strided_slice %252 {offsets = [0, 1], sizes = [2, 1], strides = [1, 1]} : vector<2x4xf32> to vector<2x1xf32>
    %257 = vector.broadcast %256 : vector<2x1xf32> to vector<2x16xf32>
    %258 = arith.mulf %257, %223 : vector<2x16xf32>
    %259 = arith.addf %255, %258 : vector<2x16xf32>
    %260 = vector.extract_strided_slice %252 {offsets = [0, 2], sizes = [2, 1], strides = [1, 1]} : vector<2x4xf32> to vector<2x1xf32>
    %261 = vector.broadcast %260 : vector<2x1xf32> to vector<2x16xf32>
    %262 = arith.mulf %261, %224 : vector<2x16xf32>
    %263 = arith.addf %259, %262 : vector<2x16xf32>
    %264 = vector.extract_strided_slice %252 {offsets = [0, 3], sizes = [2, 1], strides = [1, 1]} : vector<2x4xf32> to vector<2x1xf32>
    %265 = vector.broadcast %264 : vector<2x1xf32> to vector<2x16xf32>
    %266 = arith.mulf %265, %225 : vector<2x16xf32>
    %267 = arith.addf %263, %266 : vector<2x16xf32>
    %268 = arith.mulf %215, %218 : vector<2x8xf32>
    %cst_44 = arith.constant dense<0.000000e+00> : vector<2xf32>
    %269 = vector.multi_reduction <add>, %268, %cst_44 [1] : vector<2x8xf32> to vector<2xf32>
    %270 = vector.shape_cast %269 : vector<2xf32> to vector<2x1xf32>
    %271 = arith.mulf %215, %219 : vector<2x8xf32>
    %cst_45 = arith.constant dense<0.000000e+00> : vector<2xf32>
    %272 = vector.multi_reduction <add>, %271, %cst_45 [1] : vector<2x8xf32> to vector<2xf32>
    %273 = vector.shape_cast %272 : vector<2xf32> to vector<2x1xf32>
    %274 = arith.mulf %215, %220 : vector<2x8xf32>
    %cst_46 = arith.constant dense<0.000000e+00> : vector<2xf32>
    %275 = vector.multi_reduction <add>, %274, %cst_46 [1] : vector<2x8xf32> to vector<2xf32>
    %276 = vector.shape_cast %275 : vector<2xf32> to vector<2x1xf32>
    %277 = arith.mulf %215, %221 : vector<2x8xf32>
    %cst_47 = arith.constant dense<0.000000e+00> : vector<2xf32>
    %278 = vector.multi_reduction <add>, %277, %cst_47 [1] : vector<2x8xf32> to vector<2xf32>
    %279 = vector.shape_cast %278 : vector<2xf32> to vector<2x1xf32>
    %280 = tpu.concatenate %270, %273, %276, %279 in 1 : vector<2x1xf32>, vector<2x1xf32>, vector<2x1xf32>, vector<2x1xf32> -> vector<2x4xf32>
    %cst_48 = arith.constant 0.353553385 : f32
    %281 = vector.broadcast %cst_48 : f32 to vector<2x4xf32>
    %282 = arith.mulf %280, %281 : vector<2x4xf32>
    %cst_49 = arith.constant dense<0xFF800000> : vector<2xf32>
    %283 = vector.multi_reduction <maximumf>, %282, %cst_49 [1] : vector<2x4xf32> to vector<2xf32>
    %284 = vector.shape_cast %283 : vector<2xf32> to vector<2x1xf32>
    %285 = vector.broadcast %284 : vector<2x1xf32> to vector<2x4xf32>
    %286 = arith.subf %282, %285 : vector<2x4xf32>
    %287 = math.exp %286 : vector<2x4xf32>
    %cst_50 = arith.constant dense<0.000000e+00> : vector<2xf32>
    %288 = vector.multi_reduction <add>, %287, %cst_50 [1] : vector<2x4xf32> to vector<2xf32>
    %289 = vector.shape_cast %288 : vector<2xf32> to vector<2x1xf32>
    %290 = vector.broadcast %289 : vector<2x1xf32> to vector<2x4xf32>
    %291 = arith.divf %287, %290 : vector<2x4xf32>
    %292 = vector.extract_strided_slice %129 {offsets = [0, 1], sizes = [2, 1], strides = [1, 1]} : vector<2x4xf32> to vector<2x1xf32>
    %293 = vector.broadcast %292 : vector<2x1xf32> to vector<2x4xf32>
    %294 = arith.mulf %291, %293 : vector<2x4xf32>
    %295 = vector.extract_strided_slice %294 {offsets = [0, 0], sizes = [2, 1], strides = [1, 1]} : vector<2x4xf32> to vector<2x1xf32>
    %296 = vector.broadcast %295 : vector<2x1xf32> to vector<2x16xf32>
    %297 = arith.mulf %296, %222 : vector<2x16xf32>
    %298 = vector.extract_strided_slice %294 {offsets = [0, 1], sizes = [2, 1], strides = [1, 1]} : vector<2x4xf32> to vector<2x1xf32>
    %299 = vector.broadcast %298 : vector<2x1xf32> to vector<2x16xf32>
    %300 = arith.mulf %299, %223 : vector<2x16xf32>
    %301 = arith.addf %297, %300 : vector<2x16xf32>
    %302 = vector.extract_strided_slice %294 {offsets = [0, 2], sizes = [2, 1], strides = [1, 1]} : vector<2x4xf32> to vector<2x1xf32>
    %303 = vector.broadcast %302 : vector<2x1xf32> to vector<2x16xf32>
    %304 = arith.mulf %303, %224 : vector<2x16xf32>
    %305 = arith.addf %301, %304 : vector<2x16xf32>
    %306 = vector.extract_strided_slice %294 {offsets = [0, 3], sizes = [2, 1], strides = [1, 1]} : vector<2x4xf32> to vector<2x1xf32>
    %307 = vector.broadcast %306 : vector<2x1xf32> to vector<2x16xf32>
    %308 = arith.mulf %307, %225 : vector<2x16xf32>
    %309 = arith.addf %305, %308 : vector<2x16xf32>
    %310 = arith.mulf %216, %218 : vector<2x8xf32>
    %cst_51 = arith.constant dense<0.000000e+00> : vector<2xf32>
    %311 = vector.multi_reduction <add>, %310, %cst_51 [1] : vector<2x8xf32> to vector<2xf32>
    %312 = vector.shape_cast %311 : vector<2xf32> to vector<2x1xf32>
    %313 = arith.mulf %216, %219 : vector<2x8xf32>
    %cst_52 = arith.constant dense<0.000000e+00> : vector<2xf32>
    %314 = vector.multi_reduction <add>, %313, %cst_52 [1] : vector<2x8xf32> to vector<2xf32>
    %315 = vector.shape_cast %314 : vector<2xf32> to vector<2x1xf32>
    %316 = arith.mulf %216, %220 : vector<2x8xf32>
    %cst_53 = arith.constant dense<0.000000e+00> : vector<2xf32>
    %317 = vector.multi_reduction <add>, %316, %cst_53 [1] : vector<2x8xf32> to vector<2xf32>
    %318 = vector.shape_cast %317 : vector<2xf32> to vector<2x1xf32>
    %319 = arith.mulf %216, %221 : vector<2x8xf32>
    %cst_54 = arith.constant dense<0.000000e+00> : vector<2xf32>
    %320 = vector.multi_reduction <add>, %319, %cst_54 [1] : vector<2x8xf32> to vector<2xf32>
    %321 = vector.shape_cast %320 : vector<2xf32> to vector<2x1xf32>
    %322 = tpu.concatenate %312, %315, %318, %321 in 1 : vector<2x1xf32>, vector<2x1xf32>, vector<2x1xf32>, vector<2x1xf32> -> vector<2x4xf32>
    %cst_55 = arith.constant 0.353553385 : f32
    %323 = vector.broadcast %cst_55 : f32 to vector<2x4xf32>
    %324 = arith.mulf %322, %323 : vector<2x4xf32>
    %cst_56 = arith.constant dense<0xFF800000> : vector<2xf32>
    %325 = vector.multi_reduction <maximumf>, %324, %cst_56 [1] : vector<2x4xf32> to vector<2xf32>
    %326 = vector.shape_cast %325 : vector<2xf32> to vector<2x1xf32>
    %327 = vector.broadcast %326 : vector<2x1xf32> to vector<2x4xf32>
    %328 = arith.subf %324, %327 : vector<2x4xf32>
    %329 = math.exp %328 : vector<2x4xf32>
    %cst_57 = arith.constant dense<0.000000e+00> : vector<2xf32>
    %330 = vector.multi_reduction <add>, %329, %cst_57 [1] : vector<2x4xf32> to vector<2xf32>
    %331 = vector.shape_cast %330 : vector<2xf32> to vector<2x1xf32>
    %332 = vector.broadcast %331 : vector<2x1xf32> to vector<2x4xf32>
    %333 = arith.divf %329, %332 : vector<2x4xf32>
    %334 = vector.extract_strided_slice %129 {offsets = [0, 2], sizes = [2, 1], strides = [1, 1]} : vector<2x4xf32> to vector<2x1xf32>
    %335 = vector.broadcast %334 : vector<2x1xf32> to vector<2x4xf32>
    %336 = arith.mulf %333, %335 : vector<2x4xf32>
    %337 = vector.extract_strided_slice %336 {offsets = [0, 0], sizes = [2, 1], strides = [1, 1]} : vector<2x4xf32> to vector<2x1xf32>
    %338 = vector.broadcast %337 : vector<2x1xf32> to vector<2x16xf32>
    %339 = arith.mulf %338, %222 : vector<2x16xf32>
    %340 = vector.extract_strided_slice %336 {offsets = [0, 1], sizes = [2, 1], strides = [1, 1]} : vector<2x4xf32> to vector<2x1xf32>
    %341 = vector.broadcast %340 : vector<2x1xf32> to vector<2x16xf32>
    %342 = arith.mulf %341, %223 : vector<2x16xf32>
    %343 = arith.addf %339, %342 : vector<2x16xf32>
    %344 = vector.extract_strided_slice %336 {offsets = [0, 2], sizes = [2, 1], strides = [1, 1]} : vector<2x4xf32> to vector<2x1xf32>
    %345 = vector.broadcast %344 : vector<2x1xf32> to vector<2x16xf32>
    %346 = arith.mulf %345, %224 : vector<2x16xf32>
    %347 = arith.addf %343, %346 : vector<2x16xf32>
    %348 = vector.extract_strided_slice %336 {offsets = [0, 3], sizes = [2, 1], strides = [1, 1]} : vector<2x4xf32> to vector<2x1xf32>
    %349 = vector.broadcast %348 : vector<2x1xf32> to vector<2x16xf32>
    %350 = arith.mulf %349, %225 : vector<2x16xf32>
    %351 = arith.addf %347, %350 : vector<2x16xf32>
    %352 = arith.mulf %217, %218 : vector<2x8xf32>
    %cst_58 = arith.constant dense<0.000000e+00> : vector<2xf32>
    %353 = vector.multi_reduction <add>, %352, %cst_58 [1] : vector<2x8xf32> to vector<2xf32>
    %354 = vector.shape_cast %353 : vector<2xf32> to vector<2x1xf32>
    %355 = arith.mulf %217, %219 : vector<2x8xf32>
    %cst_59 = arith.constant dense<0.000000e+00> : vector<2xf32>
    %356 = vector.multi_reduction <add>, %355, %cst_59 [1] : vector<2x8xf32> to vector<2xf32>
    %357 = vector.shape_cast %356 : vector<2xf32> to vector<2x1xf32>
    %358 = arith.mulf %217, %220 : vector<2x8xf32>
    %cst_60 = arith.constant dense<0.000000e+00> : vector<2xf32>
    %359 = vector.multi_reduction <add>, %358, %cst_60 [1] : vector<2x8xf32> to vector<2xf32>
    %360 = vector.shape_cast %359 : vector<2xf32> to vector<2x1xf32>
    %361 = arith.mulf %217, %221 : vector<2x8xf32>
    %cst_61 = arith.constant dense<0.000000e+00> : vector<2xf32>
    %362 = vector.multi_reduction <add>, %361, %cst_61 [1] : vector<2x8xf32> to vector<2xf32>
    %363 = vector.shape_cast %362 : vector<2xf32> to vector<2x1xf32>
    %364 = tpu.concatenate %354, %357, %360, %363 in 1 : vector<2x1xf32>, vector<2x1xf32>, vector<2x1xf32>, vector<2x1xf32> -> vector<2x4xf32>
    %cst_62 = arith.constant 0.353553385 : f32
    %365 = vector.broadcast %cst_62 : f32 to vector<2x4xf32>
    %366 = arith.mulf %364, %365 : vector<2x4xf32>
    %cst_63 = arith.constant dense<0xFF800000> : vector<2xf32>
    %367 = vector.multi_reduction <maximumf>, %366, %cst_63 [1] : vector<2x4xf32> to vector<2xf32>
    %368 = vector.shape_cast %367 : vector<2xf32> to vector<2x1xf32>
    %369 = vector.broadcast %368 : vector<2x1xf32> to vector<2x4xf32>
    %370 = arith.subf %366, %369 : vector<2x4xf32>
    %371 = math.exp %370 : vector<2x4xf32>
    %cst_64 = arith.constant dense<0.000000e+00> : vector<2xf32>
    %372 = vector.multi_reduction <add>, %371, %cst_64 [1] : vector<2x4xf32> to vector<2xf32>
    %373 = vector.shape_cast %372 : vector<2xf32> to vector<2x1xf32>
    %374 = vector.broadcast %373 : vector<2x1xf32> to vector<2x4xf32>
    %375 = arith.divf %371, %374 : vector<2x4xf32>
    %376 = vector.extract_strided_slice %129 {offsets = [0, 3], sizes = [2, 1], strides = [1, 1]} : vector<2x4xf32> to vector<2x1xf32>
    %377 = vector.broadcast %376 : vector<2x1xf32> to vector<2x4xf32>
    %378 = arith.mulf %375, %377 : vector<2x4xf32>
    %379 = vector.extract_strided_slice %378 {offsets = [0, 0], sizes = [2, 1], strides = [1, 1]} : vector<2x4xf32> to vector<2x1xf32>
    %380 = vector.broadcast %379 : vector<2x1xf32> to vector<2x16xf32>
    %381 = arith.mulf %380, %222 : vector<2x16xf32>
    %382 = vector.extract_strided_slice %378 {offsets = [0, 1], sizes = [2, 1], strides = [1, 1]} : vector<2x4xf32> to vector<2x1xf32>
    %383 = vector.broadcast %382 : vector<2x1xf32> to vector<2x16xf32>
    %384 = arith.mulf %383, %223 : vector<2x16xf32>
    %385 = arith.addf %381, %384 : vector<2x16xf32>
    %386 = vector.extract_strided_slice %378 {offsets = [0, 2], sizes = [2, 1], strides = [1, 1]} : vector<2x4xf32> to vector<2x1xf32>
    %387 = vector.broadcast %386 : vector<2x1xf32> to vector<2x16xf32>
    %388 = arith.mulf %387, %224 : vector<2x16xf32>
    %389 = arith.addf %385, %388 : vector<2x16xf32>
    %390 = vector.extract_strided_slice %378 {offsets = [0, 3], sizes = [2, 1], strides = [1, 1]} : vector<2x4xf32> to vector<2x1xf32>
    %391 = vector.broadcast %390 : vector<2x1xf32> to vector<2x16xf32>
    %392 = arith.mulf %391, %225 : vector<2x16xf32>
    %393 = arith.addf %389, %392 : vector<2x16xf32>
    %394 = vector.extract_strided_slice %211 {offsets = [0, 32], sizes = [2, 8], strides = [1, 1]} : vector<2x64xf32> to vector<2x8xf32>
    %395 = vector.extract_strided_slice %211 {offsets = [0, 40], sizes = [2, 8], strides = [1, 1]} : vector<2x64xf32> to vector<2x8xf32>
    %396 = vector.extract_strided_slice %211 {offsets = [0, 48], sizes = [2, 8], strides = [1, 1]} : vector<2x64xf32> to vector<2x8xf32>
    %397 = vector.extract_strided_slice %211 {offsets = [0, 56], sizes = [2, 8], strides = [1, 1]} : vector<2x64xf32> to vector<2x8xf32>
    %398 = vector.extract_strided_slice %212 {offsets = [0, 32], sizes = [2, 8], strides = [1, 1]} : vector<2x64xf32> to vector<2x8xf32>
    %399 = vector.extract_strided_slice %212 {offsets = [0, 40], sizes = [2, 8], strides = [1, 1]} : vector<2x64xf32> to vector<2x8xf32>
    %400 = vector.extract_strided_slice %212 {offsets = [0, 48], sizes = [2, 8], strides = [1, 1]} : vector<2x64xf32> to vector<2x8xf32>
    %401 = vector.extract_strided_slice %212 {offsets = [0, 56], sizes = [2, 8], strides = [1, 1]} : vector<2x64xf32> to vector<2x8xf32>
    %402 = vector.extract_strided_slice %213 {offsets = [0, 64], sizes = [2, 16], strides = [1, 1]} : vector<2x128xf32> to vector<2x16xf32>
    %403 = vector.extract_strided_slice %213 {offsets = [0, 80], sizes = [2, 16], strides = [1, 1]} : vector<2x128xf32> to vector<2x16xf32>
    %404 = vector.extract_strided_slice %213 {offsets = [0, 96], sizes = [2, 16], strides = [1, 1]} : vector<2x128xf32> to vector<2x16xf32>
    %405 = vector.extract_strided_slice %213 {offsets = [0, 112], sizes = [2, 16], strides = [1, 1]} : vector<2x128xf32> to vector<2x16xf32>
    %406 = arith.mulf %394, %398 : vector<2x8xf32>
    %cst_65 = arith.constant dense<0.000000e+00> : vector<2xf32>
    %407 = vector.multi_reduction <add>, %406, %cst_65 [1] : vector<2x8xf32> to vector<2xf32>
    %408 = vector.shape_cast %407 : vector<2xf32> to vector<2x1xf32>
    %409 = arith.mulf %394, %399 : vector<2x8xf32>
    %cst_66 = arith.constant dense<0.000000e+00> : vector<2xf32>
    %410 = vector.multi_reduction <add>, %409, %cst_66 [1] : vector<2x8xf32> to vector<2xf32>
    %411 = vector.shape_cast %410 : vector<2xf32> to vector<2x1xf32>
    %412 = arith.mulf %394, %400 : vector<2x8xf32>
    %cst_67 = arith.constant dense<0.000000e+00> : vector<2xf32>
    %413 = vector.multi_reduction <add>, %412, %cst_67 [1] : vector<2x8xf32> to vector<2xf32>
    %414 = vector.shape_cast %413 : vector<2xf32> to vector<2x1xf32>
    %415 = arith.mulf %394, %401 : vector<2x8xf32>
    %cst_68 = arith.constant dense<0.000000e+00> : vector<2xf32>
    %416 = vector.multi_reduction <add>, %415, %cst_68 [1] : vector<2x8xf32> to vector<2xf32>
    %417 = vector.shape_cast %416 : vector<2xf32> to vector<2x1xf32>
    %418 = tpu.concatenate %408, %411, %414, %417 in 1 : vector<2x1xf32>, vector<2x1xf32>, vector<2x1xf32>, vector<2x1xf32> -> vector<2x4xf32>
    %cst_69 = arith.constant 0.353553385 : f32
    %419 = vector.broadcast %cst_69 : f32 to vector<2x4xf32>
    %420 = arith.mulf %418, %419 : vector<2x4xf32>
    %cst_70 = arith.constant dense<0xFF800000> : vector<2xf32>
    %421 = vector.multi_reduction <maximumf>, %420, %cst_70 [1] : vector<2x4xf32> to vector<2xf32>
    %422 = vector.shape_cast %421 : vector<2xf32> to vector<2x1xf32>
    %423 = vector.broadcast %422 : vector<2x1xf32> to vector<2x4xf32>
    %424 = arith.subf %420, %423 : vector<2x4xf32>
    %425 = math.exp %424 : vector<2x4xf32>
    %cst_71 = arith.constant dense<0.000000e+00> : vector<2xf32>
    %426 = vector.multi_reduction <add>, %425, %cst_71 [1] : vector<2x4xf32> to vector<2xf32>
    %427 = vector.shape_cast %426 : vector<2xf32> to vector<2x1xf32>
    %428 = vector.broadcast %427 : vector<2x1xf32> to vector<2x4xf32>
    %429 = arith.divf %425, %428 : vector<2x4xf32>
    %430 = vector.extract_strided_slice %129 {offsets = [0, 0], sizes = [2, 1], strides = [1, 1]} : vector<2x4xf32> to vector<2x1xf32>
    %431 = vector.broadcast %430 : vector<2x1xf32> to vector<2x4xf32>
    %432 = arith.mulf %429, %431 : vector<2x4xf32>
    %433 = vector.extract_strided_slice %432 {offsets = [0, 0], sizes = [2, 1], strides = [1, 1]} : vector<2x4xf32> to vector<2x1xf32>
    %434 = vector.broadcast %433 : vector<2x1xf32> to vector<2x16xf32>
    %435 = arith.mulf %434, %402 : vector<2x16xf32>
    %436 = vector.extract_strided_slice %432 {offsets = [0, 1], sizes = [2, 1], strides = [1, 1]} : vector<2x4xf32> to vector<2x1xf32>
    %437 = vector.broadcast %436 : vector<2x1xf32> to vector<2x16xf32>
    %438 = arith.mulf %437, %403 : vector<2x16xf32>
    %439 = arith.addf %435, %438 : vector<2x16xf32>
    %440 = vector.extract_strided_slice %432 {offsets = [0, 2], sizes = [2, 1], strides = [1, 1]} : vector<2x4xf32> to vector<2x1xf32>
    %441 = vector.broadcast %440 : vector<2x1xf32> to vector<2x16xf32>
    %442 = arith.mulf %441, %404 : vector<2x16xf32>
    %443 = arith.addf %439, %442 : vector<2x16xf32>
    %444 = vector.extract_strided_slice %432 {offsets = [0, 3], sizes = [2, 1], strides = [1, 1]} : vector<2x4xf32> to vector<2x1xf32>
    %445 = vector.broadcast %444 : vector<2x1xf32> to vector<2x16xf32>
    %446 = arith.mulf %445, %405 : vector<2x16xf32>
    %447 = arith.addf %443, %446 : vector<2x16xf32>
    %448 = arith.mulf %395, %398 : vector<2x8xf32>
    %cst_72 = arith.constant dense<0.000000e+00> : vector<2xf32>
    %449 = vector.multi_reduction <add>, %448, %cst_72 [1] : vector<2x8xf32> to vector<2xf32>
    %450 = vector.shape_cast %449 : vector<2xf32> to vector<2x1xf32>
    %451 = arith.mulf %395, %399 : vector<2x8xf32>
    %cst_73 = arith.constant dense<0.000000e+00> : vector<2xf32>
    %452 = vector.multi_reduction <add>, %451, %cst_73 [1] : vector<2x8xf32> to vector<2xf32>
    %453 = vector.shape_cast %452 : vector<2xf32> to vector<2x1xf32>
    %454 = arith.mulf %395, %400 : vector<2x8xf32>
    %cst_74 = arith.constant dense<0.000000e+00> : vector<2xf32>
    %455 = vector.multi_reduction <add>, %454, %cst_74 [1] : vector<2x8xf32> to vector<2xf32>
    %456 = vector.shape_cast %455 : vector<2xf32> to vector<2x1xf32>
    %457 = arith.mulf %395, %401 : vector<2x8xf32>
    %cst_75 = arith.constant dense<0.000000e+00> : vector<2xf32>
    %458 = vector.multi_reduction <add>, %457, %cst_75 [1] : vector<2x8xf32> to vector<2xf32>
    %459 = vector.shape_cast %458 : vector<2xf32> to vector<2x1xf32>
    %460 = tpu.concatenate %450, %453, %456, %459 in 1 : vector<2x1xf32>, vector<2x1xf32>, vector<2x1xf32>, vector<2x1xf32> -> vector<2x4xf32>
    %cst_76 = arith.constant 0.353553385 : f32
    %461 = vector.broadcast %cst_76 : f32 to vector<2x4xf32>
    %462 = arith.mulf %460, %461 : vector<2x4xf32>
    %cst_77 = arith.constant dense<0xFF800000> : vector<2xf32>
    %463 = vector.multi_reduction <maximumf>, %462, %cst_77 [1] : vector<2x4xf32> to vector<2xf32>
    %464 = vector.shape_cast %463 : vector<2xf32> to vector<2x1xf32>
    %465 = vector.broadcast %464 : vector<2x1xf32> to vector<2x4xf32>
    %466 = arith.subf %462, %465 : vector<2x4xf32>
    %467 = math.exp %466 : vector<2x4xf32>
    %cst_78 = arith.constant dense<0.000000e+00> : vector<2xf32>
    %468 = vector.multi_reduction <add>, %467, %cst_78 [1] : vector<2x4xf32> to vector<2xf32>
    %469 = vector.shape_cast %468 : vector<2xf32> to vector<2x1xf32>
    %470 = vector.broadcast %469 : vector<2x1xf32> to vector<2x4xf32>
    %471 = arith.divf %467, %470 : vector<2x4xf32>
    %472 = vector.extract_strided_slice %129 {offsets = [0, 1], sizes = [2, 1], strides = [1, 1]} : vector<2x4xf32> to vector<2x1xf32>
    %473 = vector.broadcast %472 : vector<2x1xf32> to vector<2x4xf32>
    %474 = arith.mulf %471, %473 : vector<2x4xf32>
    %475 = vector.extract_strided_slice %474 {offsets = [0, 0], sizes = [2, 1], strides = [1, 1]} : vector<2x4xf32> to vector<2x1xf32>
    %476 = vector.broadcast %475 : vector<2x1xf32> to vector<2x16xf32>
    %477 = arith.mulf %476, %402 : vector<2x16xf32>
    %478 = vector.extract_strided_slice %474 {offsets = [0, 1], sizes = [2, 1], strides = [1, 1]} : vector<2x4xf32> to vector<2x1xf32>
    %479 = vector.broadcast %478 : vector<2x1xf32> to vector<2x16xf32>
    %480 = arith.mulf %479, %403 : vector<2x16xf32>
    %481 = arith.addf %477, %480 : vector<2x16xf32>
    %482 = vector.extract_strided_slice %474 {offsets = [0, 2], sizes = [2, 1], strides = [1, 1]} : vector<2x4xf32> to vector<2x1xf32>
    %483 = vector.broadcast %482 : vector<2x1xf32> to vector<2x16xf32>
    %484 = arith.mulf %483, %404 : vector<2x16xf32>
    %485 = arith.addf %481, %484 : vector<2x16xf32>
    %486 = vector.extract_strided_slice %474 {offsets = [0, 3], sizes = [2, 1], strides = [1, 1]} : vector<2x4xf32> to vector<2x1xf32>
    %487 = vector.broadcast %486 : vector<2x1xf32> to vector<2x16xf32>
    %488 = arith.mulf %487, %405 : vector<2x16xf32>
    %489 = arith.addf %485, %488 : vector<2x16xf32>
    %490 = arith.mulf %396, %398 : vector<2x8xf32>
    %cst_79 = arith.constant dense<0.000000e+00> : vector<2xf32>
    %491 = vector.multi_reduction <add>, %490, %cst_79 [1] : vector<2x8xf32> to vector<2xf32>
    %492 = vector.shape_cast %491 : vector<2xf32> to vector<2x1xf32>
    %493 = arith.mulf %396, %399 : vector<2x8xf32>
    %cst_80 = arith.constant dense<0.000000e+00> : vector<2xf32>
    %494 = vector.multi_reduction <add>, %493, %cst_80 [1] : vector<2x8xf32> to vector<2xf32>
    %495 = vector.shape_cast %494 : vector<2xf32> to vector<2x1xf32>
    %496 = arith.mulf %396, %400 : vector<2x8xf32>
    %cst_81 = arith.constant dense<0.000000e+00> : vector<2xf32>
    %497 = vector.multi_reduction <add>, %496, %cst_81 [1] : vector<2x8xf32> to vector<2xf32>
    %498 = vector.shape_cast %497 : vector<2xf32> to vector<2x1xf32>
    %499 = arith.mulf %396, %401 : vector<2x8xf32>
    %cst_82 = arith.constant dense<0.000000e+00> : vector<2xf32>
    %500 = vector.multi_reduction <add>, %499, %cst_82 [1] : vector<2x8xf32> to vector<2xf32>
    %501 = vector.shape_cast %500 : vector<2xf32> to vector<2x1xf32>
    %502 = tpu.concatenate %492, %495, %498, %501 in 1 : vector<2x1xf32>, vector<2x1xf32>, vector<2x1xf32>, vector<2x1xf32> -> vector<2x4xf32>
    %cst_83 = arith.constant 0.353553385 : f32
    %503 = vector.broadcast %cst_83 : f32 to vector<2x4xf32>
    %504 = arith.mulf %502, %503 : vector<2x4xf32>
    %cst_84 = arith.constant dense<0xFF800000> : vector<2xf32>
    %505 = vector.multi_reduction <maximumf>, %504, %cst_84 [1] : vector<2x4xf32> to vector<2xf32>
    %506 = vector.shape_cast %505 : vector<2xf32> to vector<2x1xf32>
    %507 = vector.broadcast %506 : vector<2x1xf32> to vector<2x4xf32>
    %508 = arith.subf %504, %507 : vector<2x4xf32>
    %509 = math.exp %508 : vector<2x4xf32>
    %cst_85 = arith.constant dense<0.000000e+00> : vector<2xf32>
    %510 = vector.multi_reduction <add>, %509, %cst_85 [1] : vector<2x4xf32> to vector<2xf32>
    %511 = vector.shape_cast %510 : vector<2xf32> to vector<2x1xf32>
    %512 = vector.broadcast %511 : vector<2x1xf32> to vector<2x4xf32>
    %513 = arith.divf %509, %512 : vector<2x4xf32>
    %514 = vector.extract_strided_slice %129 {offsets = [0, 2], sizes = [2, 1], strides = [1, 1]} : vector<2x4xf32> to vector<2x1xf32>
    %515 = vector.broadcast %514 : vector<2x1xf32> to vector<2x4xf32>
    %516 = arith.mulf %513, %515 : vector<2x4xf32>
    %517 = vector.extract_strided_slice %516 {offsets = [0, 0], sizes = [2, 1], strides = [1, 1]} : vector<2x4xf32> to vector<2x1xf32>
    %518 = vector.broadcast %517 : vector<2x1xf32> to vector<2x16xf32>
    %519 = arith.mulf %518, %402 : vector<2x16xf32>
    %520 = vector.extract_strided_slice %516 {offsets = [0, 1], sizes = [2, 1], strides = [1, 1]} : vector<2x4xf32> to vector<2x1xf32>
    %521 = vector.broadcast %520 : vector<2x1xf32> to vector<2x16xf32>
    %522 = arith.mulf %521, %403 : vector<2x16xf32>
    %523 = arith.addf %519, %522 : vector<2x16xf32>
    %524 = vector.extract_strided_slice %516 {offsets = [0, 2], sizes = [2, 1], strides = [1, 1]} : vector<2x4xf32> to vector<2x1xf32>
    %525 = vector.broadcast %524 : vector<2x1xf32> to vector<2x16xf32>
    %526 = arith.mulf %525, %404 : vector<2x16xf32>
    %527 = arith.addf %523, %526 : vector<2x16xf32>
    %528 = vector.extract_strided_slice %516 {offsets = [0, 3], sizes = [2, 1], strides = [1, 1]} : vector<2x4xf32> to vector<2x1xf32>
    %529 = vector.broadcast %528 : vector<2x1xf32> to vector<2x16xf32>
    %530 = arith.mulf %529, %405 : vector<2x16xf32>
    %531 = arith.addf %527, %530 : vector<2x16xf32>
    %532 = arith.mulf %397, %398 : vector<2x8xf32>
    %cst_86 = arith.constant dense<0.000000e+00> : vector<2xf32>
    %533 = vector.multi_reduction <add>, %532, %cst_86 [1] : vector<2x8xf32> to vector<2xf32>
    %534 = vector.shape_cast %533 : vector<2xf32> to vector<2x1xf32>
    %535 = arith.mulf %397, %399 : vector<2x8xf32>
    %cst_87 = arith.constant dense<0.000000e+00> : vector<2xf32>
    %536 = vector.multi_reduction <add>, %535, %cst_87 [1] : vector<2x8xf32> to vector<2xf32>
    %537 = vector.shape_cast %536 : vector<2xf32> to vector<2x1xf32>
    %538 = arith.mulf %397, %400 : vector<2x8xf32>
    %cst_88 = arith.constant dense<0.000000e+00> : vector<2xf32>
    %539 = vector.multi_reduction <add>, %538, %cst_88 [1] : vector<2x8xf32> to vector<2xf32>
    %540 = vector.shape_cast %539 : vector<2xf32> to vector<2x1xf32>
    %541 = arith.mulf %397, %401 : vector<2x8xf32>
    %cst_89 = arith.constant dense<0.000000e+00> : vector<2xf32>
    %542 = vector.multi_reduction <add>, %541, %cst_89 [1] : vector<2x8xf32> to vector<2xf32>
    %543 = vector.shape_cast %542 : vector<2xf32> to vector<2x1xf32>
    %544 = tpu.concatenate %534, %537, %540, %543 in 1 : vector<2x1xf32>, vector<2x1xf32>, vector<2x1xf32>, vector<2x1xf32> -> vector<2x4xf32>
    %cst_90 = arith.constant 0.353553385 : f32
    %545 = vector.broadcast %cst_90 : f32 to vector<2x4xf32>
    %546 = arith.mulf %544, %545 : vector<2x4xf32>
    %cst_91 = arith.constant dense<0xFF800000> : vector<2xf32>
    %547 = vector.multi_reduction <maximumf>, %546, %cst_91 [1] : vector<2x4xf32> to vector<2xf32>
    %548 = vector.shape_cast %547 : vector<2xf32> to vector<2x1xf32>
    %549 = vector.broadcast %548 : vector<2x1xf32> to vector<2x4xf32>
    %550 = arith.subf %546, %549 : vector<2x4xf32>
    %551 = math.exp %550 : vector<2x4xf32>
    %cst_92 = arith.constant dense<0.000000e+00> : vector<2xf32>
    %552 = vector.multi_reduction <add>, %551, %cst_92 [1] : vector<2x4xf32> to vector<2xf32>
    %553 = vector.shape_cast %552 : vector<2xf32> to vector<2x1xf32>
    %554 = vector.broadcast %553 : vector<2x1xf32> to vector<2x4xf32>
    %555 = arith.divf %551, %554 : vector<2x4xf32>
    %556 = vector.extract_strided_slice %129 {offsets = [0, 3], sizes = [2, 1], strides = [1, 1]} : vector<2x4xf32> to vector<2x1xf32>
    %557 = vector.broadcast %556 : vector<2x1xf32> to vector<2x4xf32>
    %558 = arith.mulf %555, %557 : vector<2x4xf32>
    %559 = vector.extract_strided_slice %558 {offsets = [0, 0], sizes = [2, 1], strides = [1, 1]} : vector<2x4xf32> to vector<2x1xf32>
    %560 = vector.broadcast %559 : vector<2x1xf32> to vector<2x16xf32>
    %561 = arith.mulf %560, %402 : vector<2x16xf32>
    %562 = vector.extract_strided_slice %558 {offsets = [0, 1], sizes = [2, 1], strides = [1, 1]} : vector<2x4xf32> to vector<2x1xf32>
    %563 = vector.broadcast %562 : vector<2x1xf32> to vector<2x16xf32>
    %564 = arith.mulf %563, %403 : vector<2x16xf32>
    %565 = arith.addf %561, %564 : vector<2x16xf32>
    %566 = vector.extract_strided_slice %558 {offsets = [0, 2], sizes = [2, 1], strides = [1, 1]} : vector<2x4xf32> to vector<2x1xf32>
    %567 = vector.broadcast %566 : vector<2x1xf32> to vector<2x16xf32>
    %568 = arith.mulf %567, %404 : vector<2x16xf32>
    %569 = arith.addf %565, %568 : vector<2x16xf32>
    %570 = vector.extract_strided_slice %558 {offsets = [0, 3], sizes = [2, 1], strides = [1, 1]} : vector<2x4xf32> to vector<2x1xf32>
    %571 = vector.broadcast %570 : vector<2x1xf32> to vector<2x16xf32>
    %572 = arith.mulf %571, %405 : vector<2x16xf32>
    %573 = arith.addf %569, %572 : vector<2x16xf32>
    %574 = tpu.concatenate %267, %309, %351, %393, %447, %489, %531, %573 in 1 : vector<2x16xf32>, vector<2x16xf32>, vector<2x16xf32>, vector<2x16xf32>, vector<2x16xf32>, vector<2x16xf32>, vector<2x16xf32>, vector<2x16xf32> -> vector<2x128xf32>
    %c0_93 = arith.constant 0 : index
    %c0_94 = arith.constant 0 : index
    %575 = vector.load %arg8[%c0_93, %c0_94] : memref<128x64xf32, #tpu.memory_space<vmem>>, vector<128x64xf32>
    %cst_95 = arith.constant dense<0.000000e+00> : vector<2x64xf32>
    %576 = tpu.matmul %574, %575, %cst_95 {dimension_numbers = #tpu.dot_dimension_numbers<[1], [0], [0], [1], [0, 0, 1, 1], [], []>} : vector<2x128xf32>, vector<128x64xf32>, vector<2x64xf32> -> vector<2x64xf32>
    %577 = arith.addf %576, %208 : vector<2x64xf32>
    %578 = vector.extract_strided_slice %129 {offsets = [0, 0], sizes = [2, 1], strides = [1, 1]} : vector<2x4xf32> to vector<2x1xf32>
    %579 = vector.shape_cast %578 : vector<2x1xf32> to vector<2x1xf32>
    %580 = vector.broadcast %579 : vector<2x1xf32> to vector<2x16xf32>
    %581 = vector.extract_strided_slice %129 {offsets = [0, 1], sizes = [2, 1], strides = [1, 1]} : vector<2x4xf32> to vector<2x1xf32>
    %582 = vector.shape_cast %581 : vector<2x1xf32> to vector<2x1xf32>
    %583 = vector.broadcast %582 : vector<2x1xf32> to vector<2x16xf32>
    %584 = vector.extract_strided_slice %129 {offsets = [0, 2], sizes = [2, 1], strides = [1, 1]} : vector<2x4xf32> to vector<2x1xf32>
    %585 = vector.shape_cast %584 : vector<2x1xf32> to vector<2x1xf32>
    %586 = vector.broadcast %585 : vector<2x1xf32> to vector<2x16xf32>
    %587 = vector.extract_strided_slice %129 {offsets = [0, 3], sizes = [2, 1], strides = [1, 1]} : vector<2x4xf32> to vector<2x1xf32>
    %588 = vector.shape_cast %587 : vector<2x1xf32> to vector<2x1xf32>
    %589 = vector.broadcast %588 : vector<2x1xf32> to vector<2x16xf32>
    %590 = tpu.concatenate %580, %583, %586, %589 in 1 : vector<2x16xf32>, vector<2x16xf32>, vector<2x16xf32>, vector<2x16xf32> -> vector<2x64xf32>
    %591 = arith.mulf %590, %577 : vector<2x64xf32>
    %cst_96 = arith.constant 1.000000e+00 : f32
    %592 = vector.broadcast %cst_96 : f32 to vector<2x64xf32>
    %593 = arith.subf %592, %590 : vector<2x64xf32>
    %594 = arith.mulf %593, %3 : vector<2x64xf32>
    %595 = arith.addf %591, %594 : vector<2x64xf32>
    %c0_97 = arith.constant 0 : index
    %c0_98 = arith.constant 0 : index
    %596 = vector.load %arg10[%c0_97, %c0_98] : memref<2x64xf32, #tpu.memory_space<vmem>>, vector<2x64xf32>
    tpu.vector_store %arg10[%c0_97, %c0_98], %595 {strides = array<i32>} : memref<2x64xf32, #tpu.memory_space<vmem>>, vector<2x64xf32>,
    %c0_99 = arith.constant 0 : index
    %c0_100 = arith.constant 0 : index
    %c0_101 = arith.constant 0 : index
    %597 = vector.load %arg9[%c0_99, %c0_100, %c0_101] : memref<1x2x64xf32, #tpu.memory_space<vmem>>, vector<1x2x64xf32>
    %598 = vector.shape_cast %597 : vector<1x2x64xf32> to vector<2x64xf32>
    %599 = vector.shape_cast %595 : vector<2x64xf32> to vector<1x2x64xf32>
    tpu.vector_store %arg9[%c0_99, %c0_100, %c0_101], %599 {strides = array<i32>} : memref<1x2x64xf32, #tpu.memory_space<vmem>>, vector<1x2x64xf32>,
    return
  }
  func.func @transform_0(%arg0: i32) -> (i32, i32, i32) {
    %c0_i32 = arith.constant 0 : i32
    %c0_i32_0 = arith.constant 0 : i32
    %c0_i32_1 = arith.constant 0 : i32
    return %arg0, %c0_i32, %c0_i32_0 : i32, i32, i32
  }
  func.func @transform_1(%arg0: i32) -> (i32, i32) {
    %c0_i32 = arith.constant 0 : i32
    %c0_i32_0 = arith.constant 0 : i32
    %c0_i32_1 = arith.constant 0 : i32
    return %c0_i32, %c0_i32_0 : i32, i32
  }
  func.func @transform_2(%arg0: i32) -> (i32, i32) {
    %c0_i32 = arith.constant 0 : i32
    %c0_i32_0 = arith.constant 0 : i32
    %c0_i32_1 = arith.constant 0 : i32
    return %c0_i32, %c0_i32_0 : i32, i32
  }
  func.func @transform_3(%arg0: i32) -> (i32, i32) {
    %c0_i32 = arith.constant 0 : i32
    %c0_i32_0 = arith.constant 0 : i32
    %c0_i32_1 = arith.constant 0 : i32
    return %c0_i32, %c0_i32_0 : i32, i32
  }
  func.func @transform_4(%arg0: i32) -> (i32, i32) {
    %c0_i32 = arith.constant 0 : i32
    %c0_i32_0 = arith.constant 0 : i32
    %c0_i32_1 = arith.constant 0 : i32
    return %c0_i32, %c0_i32_0 : i32, i32
  }
  func.func @transform_5(%arg0: i32) -> (i32, i32) {
    %c0_i32 = arith.constant 0 : i32
    %c0_i32_0 = arith.constant 0 : i32
    %c0_i32_1 = arith.constant 0 : i32
    return %c0_i32, %c0_i32_0 : i32, i32
  }
  func.func @transform_6(%arg0: i32) -> (i32, i32) {
    %c0_i32 = arith.constant 0 : i32
    %c0_i32_0 = arith.constant 0 : i32
    %c0_i32_1 = arith.constant 0 : i32
    return %c0_i32, %c0_i32_0 : i32, i32
  }
  func.func @transform_7(%arg0: i32) -> (i32, i32) {
    %c0_i32 = arith.constant 0 : i32
    %c0_i32_0 = arith.constant 0 : i32
    %c0_i32_1 = arith.constant 0 : i32
    return %c0_i32, %c0_i32_0 : i32, i32
  }
  func.func @transform_8(%arg0: i32) -> (i32, i32, i32) {
    %c0_i32 = arith.constant 0 : i32
    %c0_i32_0 = arith.constant 0 : i32
    %c0_i32_1 = arith.constant 0 : i32
    return %arg0, %c0_i32, %c0_i32_0 : i32, i32, i32
  }
}

module attributes {stable_mosaic.version = 11 : i64} {
  func.func @_rim_layer_kernel(%arg0: i32, %arg1: memref<1x2x64xf32, #tpu.memory_space<vmem>>, %arg2: memref<2x64xf32, #tpu.memory_space<vmem>>, %arg3: memref<64x48xf32, #tpu.memory_space<vmem>>, %arg4: memref<1x48xf32, #tpu.memory_space<vmem>>, %arg5: memref<64x256xf32, #tpu.memory_space<vmem>>, %arg6: memref<128x192xf32, #tpu.memory_space<vmem>>, %arg7: memref<64x256xf32, #tpu.memory_space<vmem>>, %arg8: memref<128x64xf32, #tpu.memory_space<vmem>>, %arg9: memref<1x2x64xf32, #tpu.memory_space<vmem>>, %arg10: memref<2x64xf32, #tpu.memory_space<vmem>>) attributes {dimension_semantics = [#tpu.dimension_semantics<arbitrary>], iteration_bounds = array<i64: 6>, scalar_prefetch = 0 : i64, scratch_operands = 1 : i64, tpu.core_type = #tpu.core_type<tc>, window_params = [{transform_indices = @transform_0, window_bounds = array<i64: 1, 2, 64>}, {pipeline_mode = #tpu.pipeline_mode<synchronous>, transform_indices = @transform_1, window_bounds = array<i64: 2, 64>}, {pipeline_mode = #tpu.pipeline_mode<synchronous>, transform_indices = @transform_2, window_bounds = array<i64: 64, 48>}, {pipeline_mode = #tpu.pipeline_mode<synchronous>, transform_indices = @transform_3, window_bounds = array<i64: 1, 48>}, {pipeline_mode = #tpu.pipeline_mode<synchronous>, transform_indices = @transform_4, window_bounds = array<i64: 64, 256>}, {pipeline_mode = #tpu.pipeline_mode<synchronous>, transform_indices = @transform_5, window_bounds = array<i64: 128, 192>}, {pipeline_mode = #tpu.pipeline_mode<synchronous>, transform_indices = @transform_6, window_bounds = array<i64: 64, 256>}, {pipeline_mode = #tpu.pipeline_mode<synchronous>, transform_indices = @transform_7, window_bounds = array<i64: 128, 64>}, {transform_indices = @transform_8, window_bounds = array<i64: 1, 2, 64>}]} {
    %c0_i32 = arith.constant 0 : i32
    %0 = arith.cmpi eq, %arg0, %c0_i32 : i32
    %1 = arith.extui %0 : i1 to i32
    %c0_i32_0 = arith.constant 0 : i32
    %2 = arith.cmpi ne, %1, %c0_i32_0 : i32
    scf.if %2 {
      %c0_102 = arith.constant 0 : index
      %c0_103 = arith.constant 0 : index
      %600 = vector.load %arg2[%c0_102, %c0_103] : memref<2x64xf32, #tpu.memory_space<vmem>>, vector<2x64xf32>
      %c0_104 = arith.constant 0 : index
      %c0_105 = arith.constant 0 : index
      %601 = vector.load %arg10[%c0_104, %c0_105] : memref<2x64xf32, #tpu.memory_space<vmem>>, vector<2x64xf32>
      tpu.vector_store %arg10[%c0_104, %c0_105], %600 {strides = array<i32>} : memref<2x64xf32, #tpu.memory_space<vmem>>, vector<2x64xf32>,
    } else {
    }
    %c0 = arith.constant 0 : index
    %c0_1 = arith.constant 0 : index
    %3 = vector.load %arg10[%c0, %c0_1] : memref<2x64xf32, #tpu.memory_space<vmem>>, vector<2x64xf32>
    %c0_2 = arith.constant 0 : index
    %c0_3 = arith.constant 0 : index
    %c0_4 = arith.constant 0 : index
    %4 = vector.load %arg1[%c0_2, %c0_3, %c0_4] : memref<1x2x64xf32, #tpu.memory_space<vmem>>, vector<1x2x64xf32>
    %5 = vector.shape_cast %4 : vector<1x2x64xf32> to vector<2x64xf32>
    %c0_5 = arith.constant 0 : index
    %c0_6 = arith.constant 0 : index
    %6 = vector.load %arg4[%c0_5, %c0_6] : memref<1x48xf32, #tpu.memory_space<vmem>>, vector<1x48xf32>
    %c0_7 = arith.constant 0 : index
    %c0_8 = arith.constant 0 : index
    %7 = vector.load %arg3[%c0_7, %c0_8] : memref<64x48xf32, #tpu.memory_space<vmem>>, vector<64x48xf32>
    %cst = arith.constant dense<0.000000e+00> : vector<2x48xf32>
    %8 = tpu.matmul %5, %7, %cst {dimension_numbers = #tpu.dot_dimension_numbers<[1], [0], [0], [1], [0, 0, 1, 1], [], []>} : vector<2x64xf32>, vector<64x48xf32>, vector<2x48xf32> -> vector<2x48xf32>
    %9 = vector.broadcast %6 : vector<1x48xf32> to vector<2x48xf32>
    %10 = arith.addf %8, %9 : vector<2x48xf32>
    %11 = vector.extract_strided_slice %10 {offsets = [0, 0], sizes = [2, 16], strides = [1, 1]} : vector<2x48xf32> to vector<2x16xf32>
    %12 = vector.extract_strided_slice %10 {offsets = [0, 16], sizes = [2, 32], strides = [1, 1]} : vector<2x48xf32> to vector<2x32xf32>
    %13 = vector.extract_strided_slice %6 {offsets = [0, 0], sizes = [1, 16], strides = [1, 1]} : vector<1x48xf32> to vector<1x16xf32>
    %14 = vector.extract_strided_slice %6 {offsets = [0, 16], sizes = [1, 32], strides = [1, 1]} : vector<1x48xf32> to vector<1x32xf32>
    %c0_9 = arith.constant 0 : index
    %c0_10 = arith.constant 0 : index
    %15 = vector.load %arg5[%c0_9, %c0_10] : memref<64x256xf32, #tpu.memory_space<vmem>>, vector<64x256xf32>
    %cst_11 = arith.constant dense<0.000000e+00> : vector<2x256xf32>
    %16 = tpu.matmul %3, %15, %cst_11 {dimension_numbers = #tpu.dot_dimension_numbers<[1], [0], [0], [1], [0, 0, 1, 1], [], []>} : vector<2x64xf32>, vector<64x256xf32>, vector<2x256xf32> -> vector<2x256xf32>
    %17 = vector.extract_strided_slice %16 {offsets = [0, 0], sizes = [2, 64], strides = [1, 1]} : vector<2x256xf32> to vector<2x64xf32>
    %18 = vector.extract_strided_slice %16 {offsets = [0, 64], sizes = [2, 192], strides = [1, 1]} : vector<2x256xf32> to vector<2x192xf32>
    %19 = vector.extract_strided_slice %17 {offsets = [0, 0], sizes = [2, 16], strides = [1, 1]} : vector<2x64xf32> to vector<2x16xf32>
    %20 = arith.mulf %19, %11 : vector<2x16xf32>
    %cst_12 = arith.constant dense<0.000000e+00> : vector<2xf32>
    %21 = vector.multi_reduction <add>, %20, %cst_12 [1] : vector<2x16xf32> to vector<2xf32>
    %22 = vector.shape_cast %21 : vector<2xf32> to vector<2x1xf32>
    %23 = vector.broadcast %13 : vector<1x16xf32> to vector<2x16xf32>
    %24 = arith.mulf %19, %23 : vector<2x16xf32>
    %cst_13 = arith.constant dense<0.000000e+00> : vector<2xf32>
    %25 = vector.multi_reduction <add>, %24, %cst_13 [1] : vector<2x16xf32> to vector<2xf32>
    %26 = vector.shape_cast %25 : vector<2xf32> to vector<2x1xf32>
    %27 = vector.extract_strided_slice %17 {offsets = [0, 16], sizes = [2, 16], strides = [1, 1]} : vector<2x64xf32> to vector<2x16xf32>
    %28 = arith.mulf %27, %11 : vector<2x16xf32>
    %cst_14 = arith.constant dense<0.000000e+00> : vector<2xf32>
    %29 = vector.multi_reduction <add>, %28, %cst_14 [1] : vector<2x16xf32> to vector<2xf32>
    %30 = vector.shape_cast %29 : vector<2xf32> to vector<2x1xf32>
    %31 = vector.broadcast %13 : vector<1x16xf32> to vector<2x16xf32>
    %32 = arith.mulf %27, %31 : vector<2x16xf32>
    %cst_15 = arith.constant dense<0.000000e+00> : vector<2xf32>
    %33 = vector.multi_reduction <add>, %32, %cst_15 [1] : vector<2x16xf32> to vector<2xf32>
    %34 = vector.shape_cast %33 : vector<2xf32> to vector<2x1xf32>
    %35 = vector.extract_strided_slice %17 {offsets = [0, 32], sizes = [2, 16], strides = [1, 1]} : vector<2x64xf32> to vector<2x16xf32>
    %36 = arith.mulf %35, %11 : vector<2x16xf32>
    %cst_16 = arith.constant dense<0.000000e+00> : vector<2xf32>
    %37 = vector.multi_reduction <add>, %36, %cst_16 [1] : vector<2x16xf32> to vector<2xf32>
    %38 = vector.shape_cast %37 : vector<2xf32> to vector<2x1xf32>
    %39 = vector.broadcast %13 : vector<1x16xf32> to vector<2x16xf32>
    %40 = arith.mulf %35, %39 : vector<2x16xf32>
    %cst_17 = arith.constant dense<0.000000e+00> : vector<2xf32>
    %41 = vector.multi_reduction <add>, %40, %cst_17 [1] : vector<2x16xf32> to vector<2xf32>
    %42 = vector.shape_cast %41 : vector<2xf32> to vector<2x1xf32>
    %43 = vector.extract_strided_slice %17 {offsets = [0, 48], sizes = [2, 16], strides = [1, 1]} : vector<2x64xf32> to vector<2x16xf32>
    %44 = arith.mulf %43, %11 : vector<2x16xf32>
    %cst_18 = arith.constant dense<0.000000e+00> : vector<2xf32>
    %45 = vector.multi_reduction <add>, %44, %cst_18 [1] : vector<2x16xf32> to vector<2xf32>
    %46 = vector.shape_cast %45 : vector<2xf32> to vector<2x1xf32>
    %47 = vector.broadcast %13 : vector<1x16xf32> to vector<2x16xf32>
    %48 = arith.mulf %43, %47 : vector<2x16xf32>
    %cst_19 = arith.constant dense<0.000000e+00> : vector<2xf32>
    %49 = vector.multi_reduction <add>, %48, %cst_19 [1] : vector<2x16xf32> to vector<2xf32>
    %50 = vector.shape_cast %49 : vector<2xf32> to vector<2x1xf32>
    %51 = tpu.concatenate %22, %30, %38, %46 in 1 : vector<2x1xf32>, vector<2x1xf32>, vector<2x1xf32>, vector<2x1xf32> -> vector<2x4xf32>
    %cst_20 = arith.constant 2.500000e-01 : f32
    %52 = vector.broadcast %cst_20 : f32 to vector<2x4xf32>
    %53 = arith.mulf %51, %52 : vector<2x4xf32>
    %54 = tpu.concatenate %26, %34, %42, %50 in 1 : vector<2x1xf32>, vector<2x1xf32>, vector<2x1xf32>, vector<2x1xf32> -> vector<2x4xf32>
    %cst_21 = arith.constant 2.500000e-01 : f32
    %55 = vector.broadcast %cst_21 : f32 to vector<2x4xf32>
    %56 = arith.mulf %54, %55 : vector<2x4xf32>
    %57 = vector.extract_strided_slice %53 {offsets = [0, 0], sizes = [2, 1], strides = [1, 1]} : vector<2x4xf32> to vector<2x1xf32>
    %cst_22 = arith.constant 0.000000e+00 : f32
    %58 = vector.broadcast %cst_22 : f32 to vector<2x1xf32>
    %59 = vector.extract_strided_slice %53 {offsets = [0, 1], sizes = [2, 1], strides = [1, 1]} : vector<2x4xf32> to vector<2x1xf32>
    %60 = arith.cmpf ogt, %59, %57 : vector<2x1xf32>
    %61 = arith.extui %60 : vector<2x1xi1> to vector<2x1xi32>
    %62 = arith.sitofp %61 : vector<2x1xi32> to vector<2x1xf32>
    %63 = arith.addf %58, %62 : vector<2x1xf32>
    %64 = vector.extract_strided_slice %53 {offsets = [0, 2], sizes = [2, 1], strides = [1, 1]} : vector<2x4xf32> to vector<2x1xf32>
    %65 = arith.cmpf ogt, %64, %57 : vector<2x1xf32>
    %66 = arith.extui %65 : vector<2x1xi1> to vector<2x1xi32>
    %67 = arith.sitofp %66 : vector<2x1xi32> to vector<2x1xf32>
    %68 = arith.addf %63, %67 : vector<2x1xf32>
    %69 = vector.extract_strided_slice %53 {offsets = [0, 3], sizes = [2, 1], strides = [1, 1]} : vector<2x4xf32> to vector<2x1xf32>
    %70 = arith.cmpf ogt, %69, %57 : vector<2x1xf32>
    %71 = arith.extui %70 : vector<2x1xi1> to vector<2x1xi32>
    %72 = arith.sitofp %71 : vector<2x1xi32> to vector<2x1xf32>
    %73 = arith.addf %68, %72 : vector<2x1xf32>
    %74 = vector.extract_strided_slice %53 {offsets = [0, 1], sizes = [2, 1], strides = [1, 1]} : vector<2x4xf32> to vector<2x1xf32>
    %cst_23 = arith.constant 0.000000e+00 : f32
    %75 = vector.broadcast %cst_23 : f32 to vector<2x1xf32>
    %76 = vector.extract_strided_slice %53 {offsets = [0, 0], sizes = [2, 1], strides = [1, 1]} : vector<2x4xf32> to vector<2x1xf32>
    %77 = arith.cmpf oge, %76, %74 : vector<2x1xf32>
    %78 = arith.extui %77 : vector<2x1xi1> to vector<2x1xi32>
    %79 = arith.sitofp %78 : vector<2x1xi32> to vector<2x1xf32>
    %80 = arith.addf %75, %79 : vector<2x1xf32>
    %81 = vector.extract_strided_slice %53 {offsets = [0, 2], sizes = [2, 1], strides = [1, 1]} : vector<2x4xf32> to vector<2x1xf32>
    %82 = arith.cmpf ogt, %81, %74 : vector<2x1xf32>
    %83 = arith.extui %82 : vector<2x1xi1> to vector<2x1xi32>
    %84 = arith.sitofp %83 : vector<2x1xi32> to vector<2x1xf32>
    %85 = arith.addf %80, %84 : vector<2x1xf32>
    %86 = vector.extract_strided_slice %53 {offsets = [0, 3], sizes = [2, 1], strides = [1, 1]} : vector<2x4xf32> to vector<2x1xf32>
    %87 = arith.cmpf ogt, %86, %74 : vector<2x1xf32>
    %88 = arith.extui %87 : vector<2x1xi1> to vector<2x1xi32>
    %89 = arith.sitofp %88 : vector<2x1xi32> to vector<2x1xf32>
    %90 = arith.addf %85, %89 : vector<2x1xf32>
    %91 = vector.extract_strided_slice %53 {offsets = [0, 2], sizes = [2, 1], strides = [1, 1]} : vector<2x4xf32> to vector<2x1xf32>
    %cst_24 = arith.constant 0.000000e+00 : f32
    %92 = vector.broadcast %cst_24 : f32 to vector<2x1xf32>
    %93 = vector.extract_strided_slice %53 {offsets = [0, 0], sizes = [2, 1], strides = [1, 1]} : vector<2x4xf32> to vector<2x1xf32>
    %94 = arith.cmpf oge, %93, %91 : vector<2x1xf32>
    %95 = arith.extui %94 : vector<2x1xi1> to vector<2x1xi32>
    %96 = arith.sitofp %95 : vector<2x1xi32> to vector<2x1xf32>
    %97 = arith.addf %92, %96 : vector<2x1xf32>
    %98 = vector.extract_strided_slice %53 {offsets = [0, 1], sizes = [2, 1], strides = [1, 1]} : vector<2x4xf32> to vector<2x1xf32>
    %99 = arith.cmpf oge, %98, %91 : vector<2x1xf32>
    %100 = arith.extui %99 : vector<2x1xi1> to vector<2x1xi32>
    %101 = arith.sitofp %100 : vector<2x1xi32> to vector<2x1xf32>
    %102 = arith.addf %97, %101 : vector<2x1xf32>
    %103 = vector.extract_strided_slice %53 {offsets = [0, 3], sizes = [2, 1], strides = [1, 1]} : vector<2x4xf32> to vector<2x1xf32>
    %104 = arith.cmpf ogt, %103, %91 : vector<2x1xf32>
    %105 = arith.extui %104 : vector<2x1xi1> to vector<2x1xi32>
    %106 = arith.sitofp %105 : vector<2x1xi32> to vector<2x1xf32>
    %107 = arith.addf %102, %106 : vector<2x1xf32>
    %108 = vector.extract_strided_slice %53 {offsets = [0, 3], sizes = [2, 1], strides = [1, 1]} : vector<2x4xf32> to vector<2x1xf32>
    %cst_25 = arith.constant 0.000000e+00 : f32
    %109 = vector.broadcast %cst_25 : f32 to vector<2x1xf32>
    %110 = vector.extract_strided_slice %53 {offsets = [0, 0], sizes = [2, 1], strides = [1, 1]} : vector<2x4xf32> to vector<2x1xf32>
    %111 = arith.cmpf oge, %110, %108 : vector<2x1xf32>
    %112 = arith.extui %111 : vector<2x1xi1> to vector<2x1xi32>
    %113 = arith.sitofp %112 : vector<2x1xi32> to vector<2x1xf32>
    %114 = arith.addf %109, %113 : vector<2x1xf32>
    %115 = vector.extract_strided_slice %53 {offsets = [0, 1], sizes = [2, 1], strides = [1, 1]} : vector<2x4xf32> to vector<2x1xf32>
    %116 = arith.cmpf oge, %115, %108 : vector<2x1xf32>
    %117 = arith.extui %116 : vector<2x1xi1> to vector<2x1xi32>
    %118 = arith.sitofp %117 : vector<2x1xi32> to vector<2x1xf32>
    %119 = arith.addf %114, %118 : vector<2x1xf32>
    %120 = vector.extract_strided_slice %53 {offsets = [0, 2], sizes = [2, 1], strides = [1, 1]} : vector<2x4xf32> to vector<2x1xf32>
    %121 = arith.cmpf oge, %120, %108 : vector<2x1xf32>
    %122 = arith.extui %121 : vector<2x1xi1> to vector<2x1xi32>
    %123 = arith.sitofp %122 : vector<2x1xi32> to vector<2x1xf32>
    %124 = arith.addf %119, %123 : vector<2x1xf32>
    %125 = tpu.concatenate %73, %90, %107, %124 in 1 : vector<2x1xf32>, vector<2x1xf32>, vector<2x1xf32>, vector<2x1xf32> -> vector<2x4xf32>
    %cst_26 = arith.constant 2.000000e+00 : f32
    %126 = vector.broadcast %cst_26 : f32 to vector<2x4xf32>
    %127 = arith.cmpf olt, %125, %126 : vector<2x4xf32>
    %128 = arith.extui %127 : vector<2x4xi1> to vector<2x4xi32>
    %129 = arith.sitofp %128 : vector<2x4xi32> to vector<2x4xf32>
    %130 = arith.subf %53, %56 : vector<2x4xf32>
    %131 = arith.negf %130 : vector<2x4xf32>
    %132 = math.exp %131 : vector<2x4xf32>
    %cst_27 = arith.constant 1.000000e+00 : f32
    %133 = vector.broadcast %cst_27 : f32 to vector<2x4xf32>
    %134 = arith.addf %133, %132 : vector<2x4xf32>
    %135 = arith.divf %133, %134 : vector<2x4xf32>
    %cst_28 = arith.constant 1.000000e+00 : f32
    %136 = vector.broadcast %cst_28 : f32 to vector<2x4xf32>
    %137 = arith.subf %136, %135 : vector<2x4xf32>
    %138 = vector.extract_strided_slice %129 {offsets = [0, 0], sizes = [2, 1], strides = [1, 1]} : vector<2x4xf32> to vector<2x1xf32>
    %139 = vector.extract_strided_slice %135 {offsets = [0, 0], sizes = [2, 1], strides = [1, 1]} : vector<2x4xf32> to vector<2x1xf32>
    %140 = vector.broadcast %139 : vector<2x1xf32> to vector<2x32xf32>
    %141 = arith.mulf %140, %12 : vector<2x32xf32>
    %142 = vector.extract_strided_slice %137 {offsets = [0, 0], sizes = [2, 1], strides = [1, 1]} : vector<2x4xf32> to vector<2x1xf32>
    %143 = vector.broadcast %142 : vector<2x1xf32> to vector<2x32xf32>
    %144 = vector.broadcast %14 : vector<1x32xf32> to vector<2x32xf32>
    %145 = arith.mulf %143, %144 : vector<2x32xf32>
    %146 = arith.addf %141, %145 : vector<2x32xf32>
    %147 = vector.broadcast %138 : vector<2x1xf32> to vector<2x32xf32>
    %148 = arith.mulf %147, %146 : vector<2x32xf32>
    %149 = vector.extract_strided_slice %129 {offsets = [0, 1], sizes = [2, 1], strides = [1, 1]} : vector<2x4xf32> to vector<2x1xf32>
    %150 = vector.extract_strided_slice %135 {offsets = [0, 1], sizes = [2, 1], strides = [1, 1]} : vector<2x4xf32> to vector<2x1xf32>
    %151 = vector.broadcast %150 : vector<2x1xf32> to vector<2x32xf32>
    %152 = arith.mulf %151, %12 : vector<2x32xf32>
    %153 = vector.extract_strided_slice %137 {offsets = [0, 1], sizes = [2, 1], strides = [1, 1]} : vector<2x4xf32> to vector<2x1xf32>
    %154 = vector.broadcast %153 : vector<2x1xf32> to vector<2x32xf32>
    %155 = vector.broadcast %14 : vector<1x32xf32> to vector<2x32xf32>
    %156 = arith.mulf %154, %155 : vector<2x32xf32>
    %157 = arith.addf %152, %156 : vector<2x32xf32>
    %158 = vector.broadcast %149 : vector<2x1xf32> to vector<2x32xf32>
    %159 = arith.mulf %158, %157 : vector<2x32xf32>
    %160 = vector.extract_strided_slice %129 {offsets = [0, 2], sizes = [2, 1], strides = [1, 1]} : vector<2x4xf32> to vector<2x1xf32>
    %161 = vector.extract_strided_slice %135 {offsets = [0, 2], sizes = [2, 1], strides = [1, 1]} : vector<2x4xf32> to vector<2x1xf32>
    %162 = vector.broadcast %161 : vector<2x1xf32> to vector<2x32xf32>
    %163 = arith.mulf %162, %12 : vector<2x32xf32>
    %164 = vector.extract_strided_slice %137 {offsets = [0, 2], sizes = [2, 1], strides = [1, 1]} : vector<2x4xf32> to vector<2x1xf32>
    %165 = vector.broadcast %164 : vector<2x1xf32> to vector<2x32xf32>
    %166 = vector.broadcast %14 : vector<1x32xf32> to vector<2x32xf32>
    %167 = arith.mulf %165, %166 : vector<2x32xf32>
    %168 = arith.addf %163, %167 : vector<2x32xf32>
    %169 = vector.broadcast %160 : vector<2x1xf32> to vector<2x32xf32>
    %170 = arith.mulf %169, %168 : vector<2x32xf32>
    %171 = vector.extract_strided_slice %129 {offsets = [0, 3], sizes = [2, 1], strides = [1, 1]} : vector<2x4xf32> to vector<2x1xf32>
    %172 = vector.extract_strided_slice %135 {offsets = [0, 3], sizes = [2, 1], strides = [1, 1]} : vector<2x4xf32> to vector<2x1xf32>
    %173 = vector.broadcast %172 : vector<2x1xf32> to vector<2x32xf32>
    %174 = arith.mulf %173, %12 : vector<2x32xf32>
    %175 = vector.extract_strided_slice %137 {offsets = [0, 3], sizes = [2, 1], strides = [1, 1]} : vector<2x4xf32> to vector<2x1xf32>
    %176 = vector.broadcast %175 : vector<2x1xf32> to vector<2x32xf32>
    %177 = vector.broadcast %14 : vector<1x32xf32> to vector<2x32xf32>
    %178 = arith.mulf %176, %177 : vector<2x32xf32>
    %179 = arith.addf %174, %178 : vector<2x32xf32>
    %180 = vector.broadcast %171 : vector<2x1xf32> to vector<2x32xf32>
    %181 = arith.mulf %180, %179 : vector<2x32xf32>
    %182 = tpu.concatenate %148, %159, %170, %181 in 1 : vector<2x32xf32>, vector<2x32xf32>, vector<2x32xf32>, vector<2x32xf32> -> vector<2x128xf32>
    %c0_29 = arith.constant 0 : index
    %c0_30 = arith.constant 0 : index
    %183 = vector.load %arg6[%c0_29, %c0_30] : memref<128x192xf32, #tpu.memory_space<vmem>>, vector<128x192xf32>
    %cst_31 = arith.constant dense<0.000000e+00> : vector<2x192xf32>
    %184 = tpu.matmul %182, %183, %cst_31 {dimension_numbers = #tpu.dot_dimension_numbers<[1], [0], [0], [1], [0, 0, 1, 1], [], []>} : vector<2x128xf32>, vector<128x192xf32>, vector<2x192xf32> -> vector<2x192xf32>
    %185 = vector.extract_strided_slice %184 {offsets = [0, 0], sizes = [2, 64], strides = [1, 1]} : vector<2x192xf32> to vector<2x64xf32>
    %186 = vector.extract_strided_slice %184 {offsets = [0, 64], sizes = [2, 64], strides = [1, 1]} : vector<2x192xf32> to vector<2x64xf32>
    %187 = vector.extract_strided_slice %184 {offsets = [0, 128], sizes = [2, 64], strides = [1, 1]} : vector<2x192xf32> to vector<2x64xf32>
    %188 = vector.extract_strided_slice %18 {offsets = [0, 0], sizes = [2, 64], strides = [1, 1]} : vector<2x192xf32> to vector<2x64xf32>
    %189 = vector.extract_strided_slice %18 {offsets = [0, 64], sizes = [2, 64], strides = [1, 1]} : vector<2x192xf32> to vector<2x64xf32>
    %190 = vector.extract_strided_slice %18 {offsets = [0, 128], sizes = [2, 64], strides = [1, 1]} : vector<2x192xf32> to vector<2x64xf32>
    %191 = arith.addf %185, %188 : vector<2x64xf32>
    %192 = arith.negf %191 : vector<2x64xf32>
    %193 = math.exp %192 : vector<2x64xf32>
    %cst_32 = arith.constant 1.000000e+00 : f32
    %194 = vector.broadcast %cst_32 : f32 to vector<2x64xf32>
    %195 = arith.addf %194, %193 : vector<2x64xf32>
    %196 = arith.divf %194, %195 : vector<2x64xf32>
    %197 = arith.addf %186, %189 : vector<2x64xf32>
    %198 = arith.negf %197 : vector<2x64xf32>
    %199 = math.exp %198 : vector<2x64xf32>
    %cst_33 = arith.constant 1.000000e+00 : f32
    %200 = vector.broadcast %cst_33 : f32 to vector<2x64xf32>
    %201 = arith.addf %200, %199 : vector<2x64xf32>
    %202 = arith.divf %200, %201 : vector<2x64xf32>
    %203 = arith.mulf %196, %190 : vector<2x64xf32>
    %204 = arith.addf %187, %203 : vector<2x64xf32>
    %205 = math.tanh %204 : vector<2x64xf32>
    %206 = arith.subf %3, %205 : vector<2x64xf32>
    %207 = arith.mulf %202, %206 : vector<2x64xf32>
    %208 = arith.addf %205, %207 : vector<2x64xf32>
    %c0_34 = arith.constant 0 : index
    %c0_35 = arith.constant 0 : index
    %209 = vector.load %arg7[%c0_34, %c0_35] : memref<64x256xf32, #tpu.memory_space<vmem>>, vector<64x256xf32>
    %cst_36 = arith.constant dense<0.000000e+00> : vector<2x256xf32>
    %210 = tpu.matmul %208, %209, %cst_36 {dimension_numbers = #tpu.dot_dimension_numbers<[1], [0], [0], [1], [0, 0, 1, 1], [], []>} : vector<2x64xf32>, vector<64x256xf32>, vector<2x256xf32> -> vector<2x256xf32>
    %211 = vector.extract_strided_slice %210 {offsets = [0, 0], sizes = [2, 64], strides = [1, 1]} : vector<2x256xf32> to vector<2x64xf32>
    %212 = vector.extract_strided_slice %210 {offsets = [0, 64], sizes = [2, 64], strides = [1, 1]} : vector<2x256xf32> to vector<2x64xf32>
    %213 = vector.extract_strided_slice %210 {offsets = [0, 128], sizes = [2, 128], strides = [1, 1]} : vector<2x256xf32> to vector<2x128xf32>
    %214 = vector.extract_strided_slice %211 {offsets = [0, 0], sizes = [2, 8], strides = [1, 1]} : vector<2x64xf32> to vector<2x8xf32>
    %215 = vector.extract_strided_slice %211 {offsets = [0, 8], sizes = [2, 8], strides = [1, 1]} : vector<2x64xf32> to vector<2x8xf32>
    %216 = vector.extract_strided_slice %211 {offsets = [0, 16], sizes = [2, 8], strides = [1, 1]} : vector<2x64xf32> to vector<2x8xf32>
    %217 = vector.extract_strided_slice %211 {offsets = [0, 24], sizes = [2, 8], strides = [1, 1]} : vector<2x64xf32> to vector<2x8xf32>
    %218 = vector.extract_strided_slice %212 {offsets = [0, 0], sizes = [2, 8], strides = [1, 1]} : vector<2x64xf32> to vector<2x8xf32>
    %219 = vector.extract_strided_slice %212 {offsets = [0, 8], sizes = [2, 8], strides = [1, 1]} : vector<2x64xf32> to vector<2x8xf32>
    %220 = vector.extract_strided_slice %212 {offsets = [0, 16], sizes = [2, 8], strides = [1, 1]} : vector<2x64xf32> to vector<2x8xf32>
    %221 = vector.extract_strided_slice %212 {offsets = [0, 24], sizes = [2, 8], strides = [1, 1]} : vector<2x64xf32> to vector<2x8xf32>
    %222 = vector.extract_strided_slice %213 {offsets = [0, 0], sizes = [2, 16], strides = [1, 1]} : vector<2x128xf32> to vector<2x16xf32>
    %223 = vector.extract_strided_slice %213 {offsets = [0, 16], sizes = [2, 16], strides = [1, 1]} : vector<2x128xf32> to vector<2x16xf32>
    %224 = vector.extract_strided_slice %213 {offsets = [0, 32], sizes = [2, 16], strides = [1, 1]} : vector<2x128xf32> to vector<2x16xf32>
    %225 = vector.extract_strided_slice %213 {offsets = [0, 48], sizes = [2, 16], strides = [1, 1]} : vector<2x128xf32> to vector<2x16xf32>
    %226 = arith.mulf %214, %218 : vector<2x8xf32>
    %cst_37 = arith.constant dense<0.000000e+00> : vector<2xf32>
    %227 = vector.multi_reduction <add>, %226, %cst_37 [1] : vector<2x8xf32> to vector<2xf32>
    %228 = vector.shape_cast %227 : vector<2xf32> to vector<2x1xf32>
    %229 = arith.mulf %214, %219 : vector<2x8xf32>
    %cst_38 = arith.constant dense<0.000000e+00> : vector<2xf32>
    %230 = vector.multi_reduction <add>, %229, %cst_38 [1] : vector<2x8xf32> to vector<2xf32>
    %231 = vector.shape_cast %230 : vector<2xf32> to vector<2x1xf32>
    %232 = arith.mulf %214, %220 : vector<2x8xf32>
    %cst_39 = arith.constant dense<0.000000e+00> : vector<2xf32>
    %233 = vector.multi_reduction <add>, %232, %cst_39 [1] : vector<2x8xf32> to vector<2xf32>
    %234 = vector.shape_cast %233 : vector<2xf32> to vector<2x1xf32>
    %235 = arith.mulf %214, %221 : vector<2x8xf32>
    %cst_40 = arith.constant dense<0.000000e+00> : vector<2xf32>
    %236 = vector.multi_reduction <add>, %235, %cst_40 [1] : vector<2x8xf32> to vector<2xf32>
    %237 = vector.shape_cast %236 : vector<2xf32> to vector<2x1xf32>
    %238 = tpu.concatenate %228, %231, %234, %237 in 1 : vector<2x1xf32>, vector<2x1xf32>, vector<2x1xf32>, vector<2x1xf32> -> vector<2x4xf32>
    %cst_41 = arith.constant 0.353553385 : f32
    %239 = vector.broadcast %cst_41 : f32 to vector<2x4xf32>
    %240 = arith.mulf %238, %239 : vector<2x4xf32>
    %cst_42 = arith.constant dense<0xFF800000> : vector<2xf32>
    %241 = vector.multi_reduction <maximumf>, %240, %cst_42 [1] : vector<2x4xf32> to vector<2xf32>
    %242 = vector.shape_cast %241 : vector<2xf32> to vector<2x1xf32>
    %243 = vector.broadcast %242 : vector<2x1xf32> to vector<2x4xf32>
    %244 = arith.subf %240, %243 : vector<2x4xf32>
    %245 = math.exp %244 : vector<2x4xf32>
    %cst_43 = arith.constant dense<0.000000e+00> : vector<2xf32>
    %246 = vector.multi_reduction <add>, %245, %cst_43 [1] : vector<2x4xf32> to vector<2xf32>
    %247 = vector.shape_cast %246 : vector<2xf32> to vector<2x1xf32>
    %248 = vector.broadcast %247 : vector<2x1xf32> to vector<2x4xf32>
    %249 = arith.divf %245, %248 : vector<2x4xf32>
    %250 = vector.extract_strided_slice %129 {offsets = [0, 0], sizes = [2, 1], strides = [1, 1]} : vector<2x4xf32> to vector<2x1xf32>
    %251 = vector.broadcast %250 : vector<2x1xf32> to vector<2x4xf32>
    %252 = arith.mulf %249, %251 : vector<2x4xf32>
    %253 = vector.extract_strided_slice %252 {offsets = [0, 0], sizes = [2, 1], strides = [1, 1]} : vector<2x4xf32> to vector<2x1xf32>
    %254 = vector.broadcast %253 : vector<2x1xf32> to vector<2x16xf32>
    %255 = arith.mulf %254, %222 : vector<2x16xf32>
    %256 = vector.extract_strided_slice %252 {offsets = [0, 1], sizes = [2, 1], strides = [1, 1]} : vector<2x4xf32> to vector<2x1xf32>
    %257 = vector.broadcast %256 : vector<2x1xf32> to vector<2x16xf32>
    %258 = arith.mulf %257, %223 : vector<2x16xf32>
    %259 = arith.addf %255, %258 : vector<2x16xf32>
    %260 = vector.extract_strided_slice %252 {offsets = [0, 2], sizes = [2, 1], strides = [1, 1]} : vector<2x4xf32> to vector<2x1xf32>
    %261 = vector.broadcast %260 : vector<2x1xf32> to vector<2x16xf32>
    %262 = arith.mulf %261, %224 : vector<2x16xf32>
    %263 = arith.addf %259, %262 : vector<2x16xf32>
    %264 = vector.extract_strided_slice %252 {offsets = [0, 3], sizes = [2, 1], strides = [1, 1]} : vector<2x4xf32> to vector<2x1xf32>
    %265 = vector.broadcast %264 : vector<2x1xf32> to vector<2x16xf32>
    %266 = arith.mulf %265, %225 : vector<2x16xf32>
    %267 = arith.addf %263, %266 : vector<2x16xf32>
    %268 = arith.mulf %215, %218 : vector<2x8xf32>
    %cst_44 = arith.constant dense<0.000000e+00> : vector<2xf32>
    %269 = vector.multi_reduction <add>, %268, %cst_44 [1] : vector<2x8xf32> to vector<2xf32>
    %270 = vector.shape_cast %269 : vector<2xf32> to vector<2x1xf32>
    %271 = arith.mulf %215, %219 : vector<2x8xf32>
    %cst_45 = arith.constant dense<0.000000e+00> : vector<2xf32>
    %272 = vector.multi_reduction <add>, %271, %cst_45 [1] : vector<2x8xf32> to vector<2xf32>
    %273 = vector.shape_cast %272 : vector<2xf32> to vector<2x1xf32>
    %274 = arith.mulf %215, %220 : vector<2x8xf32>
    %cst_46 = arith.constant dense<0.000000e+00> : vector<2xf32>
    %275 = vector.multi_reduction <add>, %274, %cst_46 [1] : vector<2x8xf32> to vector<2xf32>
    %276 = vector.shape_cast %275 : vector<2xf32> to vector<2x1xf32>
    %277 = arith.mulf %215, %221 : vector<2x8xf32>
    %cst_47 = arith.constant dense<0.000000e+00> : vector<2xf32>
    %278 = vector.multi_reduction <add>, %277, %cst_47 [1] : vector<2x8xf32> to vector<2xf32>
    %279 = vector.shape_cast %278 : vector<2xf32> to vector<2x1xf32>
    %280 = tpu.concatenate %270, %273, %276, %279 in 1 : vector<2x1xf32>, vector<2x1xf32>, vector<2x1xf32>, vector<2x1xf32> -> vector<2x4xf32>
    %cst_48 = arith.constant 0.353553385 : f32
    %281 = vector.broadcast %cst_48 : f32 to vector<2x4xf32>
    %282 = arith.mulf %280, %281 : vector<2x4xf32>
    %cst_49 = arith.constant dense<0xFF800000> : vector<2xf32>
    %283 = vector.multi_reduction <maximumf>, %282, %cst_49 [1] : vector<2x4xf32> to vector<2xf32>
    %284 = vector.shape_cast %283 : vector<2xf32> to vector<2x1xf32>
    %285 = vector.broadcast %284 : vector<2x1xf32> to vector<2x4xf32>
    %286 = arith.subf %282, %285 : vector<2x4xf32>
    %287 = math.exp %286 : vector<2x4xf32>
    %cst_50 = arith.constant dense<0.000000e+00> : vector<2xf32>
    %288 = vector.multi_reduction <add>, %287, %cst_50 [1] : vector<2x4xf32> to vector<2xf32>
    %289 = vector.shape_cast %288 : vector<2xf32> to vector<2x1xf32>
    %290 = vector.broadcast %289 : vector<2x1xf32> to vector<2x4xf32>
    %291 = arith.divf %287, %290 : vector<2x4xf32>
    %292 = vector.extract_strided_slice %129 {offsets = [0, 1], sizes = [2, 1], strides = [1, 1]} : vector<2x4xf32> to vector<2x1xf32>
    %293 = vector.broadcast %292 : vector<2x1xf32> to vector<2x4xf32>
    %294 = arith.mulf %291, %293 : vector<2x4xf32>
    %295 = vector.extract_strided_slice %294 {offsets = [0, 0], sizes = [2, 1], strides = [1, 1]} : vector<2x4xf32> to vector<2x1xf32>
    %296 = vector.broadcast %295 : vector<2x1xf32> to vector<2x16xf32>
    %297 = arith.mulf %296, %222 : vector<2x16xf32>
    %298 = vector.extract_strided_slice %294 {offsets = [0, 1], sizes = [2, 1], strides = [1, 1]} : vector<2x4xf32> to vector<2x1xf32>
    %299 = vector.broadcast %298 : vector<2x1xf32> to vector<2x16xf32>
    %300 = arith.mulf %299, %223 : vector<2x16xf32>
    %301 = arith.addf %297, %300 : vector<2x16xf32>
    %302 = vector.extract_strided_slice %294 {offsets = [0, 2], sizes = [2, 1], strides = [1, 1]} : vector<2x4xf32> to vector<2x1xf32>
    %303 = vector.broadcast %302 : vector<2x1xf32> to vector<2x16xf32>
    %304 = arith.mulf %303, %224 : vector<2x16xf32>
    %305 = arith.addf %301, %304 : vector<2x16xf32>
    %306 = vector.extract_strided_slice %294 {offsets = [0, 3], sizes = [2, 1], strides = [1, 1]} : vector<2x4xf32> to vector<2x1xf32>
    %307 = vector.broadcast %306 : vector<2x1xf32> to vector<2x16xf32>
    %308 = arith.mulf %307, %225 : vector<2x16xf32>
    %309 = arith.addf %305, %308 : vector<2x16xf32>
    %310 = arith.mulf %216, %218 : vector<2x8xf32>
    %cst_51 = arith.constant dense<0.000000e+00> : vector<2xf32>
    %311 = vector.multi_reduction <add>, %310, %cst_51 [1] : vector<2x8xf32> to vector<2xf32>
    %312 = vector.shape_cast %311 : vector<2xf32> to vector<2x1xf32>
    %313 = arith.mulf %216, %219 : vector<2x8xf32>
    %cst_52 = arith.constant dense<0.000000e+00> : vector<2xf32>
    %314 = vector.multi_reduction <add>, %313, %cst_52 [1] : vector<2x8xf32> to vector<2xf32>
    %315 = vector.shape_cast %314 : vector<2xf32> to vector<2x1xf32>
    %316 = arith.mulf %216, %220 : vector<2x8xf32>
    %cst_53 = arith.constant dense<0.000000e+00> : vector<2xf32>
    %317 = vector.multi_reduction <add>, %316, %cst_53 [1] : vector<2x8xf32> to vector<2xf32>
    %318 = vector.shape_cast %317 : vector<2xf32> to vector<2x1xf32>
    %319 = arith.mulf %216, %221 : vector<2x8xf32>
    %cst_54 = arith.constant dense<0.000000e+00> : vector<2xf32>
    %320 = vector.multi_reduction <add>, %319, %cst_54 [1] : vector<2x8xf32> to vector<2xf32>
    %321 = vector.shape_cast %320 : vector<2xf32> to vector<2x1xf32>
    %322 = tpu.concatenate %312, %315, %318, %321 in 1 : vector<2x1xf32>, vector<2x1xf32>, vector<2x1xf32>, vector<2x1xf32> -> vector<2x4xf32>
    %cst_55 = arith.constant 0.353553385 : f32
    %323 = vector.broadcast %cst_55 : f32 to vector<2x4xf32>
    %324 = arith.mulf %322, %323 : vector<2x4xf32>
    %cst_56 = arith.constant dense<0xFF800000> : vector<2xf32>
    %325 = vector.multi_reduction <maximumf>, %324, %cst_56 [1] : vector<2x4xf32> to vector<2xf32>
    %326 = vector.shape_cast %325 : vector<2xf32> to vector<2x1xf32>
    %327 = vector.broadcast %326 : vector<2x1xf32> to vector<2x4xf32>
    %328 = arith.subf %324, %327 : vector<2x4xf32>
    %329 = math.exp %328 : vector<2x4xf32>
    %cst_57 = arith.constant dense<0.000000e+00> : vector<2xf32>
    %330 = vector.multi_reduction <add>, %329, %cst_57 [1] : vector<2x4xf32> to vector<2xf32>
    %331 = vector.shape_cast %330 : vector<2xf32> to vector<2x1xf32>
    %332 = vector.broadcast %331 : vector<2x1xf32> to vector<2x4xf32>
    %333 = arith.divf %329, %332 : vector<2x4xf32>
    %334 = vector.extract_strided_slice %129 {offsets = [0, 2], sizes = [2, 1], strides = [1, 1]} : vector<2x4xf32> to vector<2x1xf32>
    %335 = vector.broadcast %334 : vector<2x1xf32> to vector<2x4xf32>
    %336 = arith.mulf %333, %335 : vector<2x4xf32>
    %337 = vector.extract_strided_slice %336 {offsets = [0, 0], sizes = [2, 1], strides = [1, 1]} : vector<2x4xf32> to vector<2x1xf32>
    %338 = vector.broadcast %337 : vector<2x1xf32> to vector<2x16xf32>
    %339 = arith.mulf %338, %222 : vector<2x16xf32>
    %340 = vector.extract_strided_slice %336 {offsets = [0, 1], sizes = [2, 1], strides = [1, 1]} : vector<2x4xf32> to vector<2x1xf32>
    %341 = vector.broadcast %340 : vector<2x1xf32> to vector<2x16xf32>
    %342 = arith.mulf %341, %223 : vector<2x16xf32>
    %343 = arith.addf %339, %342 : vector<2x16xf32>
    %344 = vector.extract_strided_slice %336 {offsets = [0, 2], sizes = [2, 1], strides = [1, 1]} : vector<2x4xf32> to vector<2x1xf32>
    %345 = vector.broadcast %344 : vector<2x1xf32> to vector<2x16xf32>
    %346 = arith.mulf %345, %224 : vector<2x16xf32>
    %347 = arith.addf %343, %346 : vector<2x16xf32>
    %348 = vector.extract_strided_slice %336 {offsets = [0, 3], sizes = [2, 1], strides = [1, 1]} : vector<2x4xf32> to vector<2x1xf32>
    %349 = vector.broadcast %348 : vector<2x1xf32> to vector<2x16xf32>
    %350 = arith.mulf %349, %225 : vector<2x16xf32>
    %351 = arith.addf %347, %350 : vector<2x16xf32>
    %352 = arith.mulf %217, %218 : vector<2x8xf32>
    %cst_58 = arith.constant dense<0.000000e+00> : vector<2xf32>
    %353 = vector.multi_reduction <add>, %352, %cst_58 [1] : vector<2x8xf32> to vector<2xf32>
    %354 = vector.shape_cast %353 : vector<2xf32> to vector<2x1xf32>
    %355 = arith.mulf %217, %219 : vector<2x8xf32>
    %cst_59 = arith.constant dense<0.000000e+00> : vector<2xf32>
    %356 = vector.multi_reduction <add>, %355, %cst_59 [1] : vector<2x8xf32> to vector<2xf32>
    %357 = vector.shape_cast %356 : vector<2xf32> to vector<2x1xf32>
    %358 = arith.mulf %217, %220 : vector<2x8xf32>
    %cst_60 = arith.constant dense<0.000000e+00> : vector<2xf32>
    %359 = vector.multi_reduction <add>, %358, %cst_60 [1] : vector<2x8xf32> to vector<2xf32>
    %360 = vector.shape_cast %359 : vector<2xf32> to vector<2x1xf32>
    %361 = arith.mulf %217, %221 : vector<2x8xf32>
    %cst_61 = arith.constant dense<0.000000e+00> : vector<2xf32>
    %362 = vector.multi_reduction <add>, %361, %cst_61 [1] : vector<2x8xf32> to vector<2xf32>
    %363 = vector.shape_cast %362 : vector<2xf32> to vector<2x1xf32>
    %364 = tpu.concatenate %354, %357, %360, %363 in 1 : vector<2x1xf32>, vector<2x1xf32>, vector<2x1xf32>, vector<2x1xf32> -> vector<2x4xf32>
    %cst_62 = arith.constant 0.353553385 : f32
    %365 = vector.broadcast %cst_62 : f32 to vector<2x4xf32>
    %366 = arith.mulf %364, %365 : vector<2x4xf32>
    %cst_63 = arith.constant dense<0xFF800000> : vector<2xf32>
    %367 = vector.multi_reduction <maximumf>, %366, %cst_63 [1] : vector<2x4xf32> to vector<2xf32>
    %368 = vector.shape_cast %367 : vector<2xf32> to vector<2x1xf32>
    %369 = vector.broadcast %368 : vector<2x1xf32> to vector<2x4xf32>
    %370 = arith.subf %366, %369 : vector<2x4xf32>
    %371 = math.exp %370 : vector<2x4xf32>
    %cst_64 = arith.constant dense<0.000000e+00> : vector<2xf32>
    %372 = vector.multi_reduction <add>, %371, %cst_64 [1] : vector<2x4xf32> to vector<2xf32>
    %373 = vector.shape_cast %372 : vector<2xf32> to vector<2x1xf32>
    %374 = vector.broadcast %373 : vector<2x1xf32> to vector<2x4xf32>
    %375 = arith.divf %371, %374 : vector<2x4xf32>
    %376 = vector.extract_strided_slice %129 {offsets = [0, 3], sizes = [2, 1], strides = [1, 1]} : vector<2x4xf32> to vector<2x1xf32>
    %377 = vector.broadcast %376 : vector<2x1xf32> to vector<2x4xf32>
    %378 = arith.mulf %375, %377 : vector<2x4xf32>
    %379 = vector.extract_strided_slice %378 {offsets = [0, 0], sizes = [2, 1], strides = [1, 1]} : vector<2x4xf32> to vector<2x1xf32>
    %380 = vector.broadcast %379 : vector<2x1xf32> to vector<2x16xf32>
    %381 = arith.mulf %380, %222 : vector<2x16xf32>
    %382 = vector.extract_strided_slice %378 {offsets = [0, 1], sizes = [2, 1], strides = [1, 1]} : vector<2x4xf32> to vector<2x1xf32>
    %383 = vector.broadcast %382 : vector<2x1xf32> to vector<2x16xf32>
    %384 = arith.mulf %383, %223 : vector<2x16xf32>
    %385 = arith.addf %381, %384 : vector<2x16xf32>
    %386 = vector.extract_strided_slice %378 {offsets = [0, 2], sizes = [2, 1], strides = [1, 1]} : vector<2x4xf32> to vector<2x1xf32>
    %387 = vector.broadcast %386 : vector<2x1xf32> to vector<2x16xf32>
    %388 = arith.mulf %387, %224 : vector<2x16xf32>
    %389 = arith.addf %385, %388 : vector<2x16xf32>
    %390 = vector.extract_strided_slice %378 {offsets = [0, 3], sizes = [2, 1], strides = [1, 1]} : vector<2x4xf32> to vector<2x1xf32>
    %391 = vector.broadcast %390 : vector<2x1xf32> to vector<2x16xf32>
    %392 = arith.mulf %391, %225 : vector<2x16xf32>
    %393 = arith.addf %389, %392 : vector<2x16xf32>
    %394 = vector.extract_strided_slice %211 {offsets = [0, 32], sizes = [2, 8], strides = [1, 1]} : vector<2x64xf32> to vector<2x8xf32>
    %395 = vector.extract_strided_slice %211 {offsets = [0, 40], sizes = [2, 8], strides = [1, 1]} : vector<2x64xf32> to vector<2x8xf32>
    %396 = vector.extract_strided_slice %211 {offsets = [0, 48], sizes = [2, 8], strides = [1, 1]} : vector<2x64xf32> to vector<2x8xf32>
    %397 = vector.extract_strided_slice %211 {offsets = [0, 56], sizes = [2, 8], strides = [1, 1]} : vector<2x64xf32> to vector<2x8xf32>
    %398 = vector.extract_strided_slice %212 {offsets = [0, 32], sizes = [2, 8], strides = [1, 1]} : vector<2x64xf32> to vector<2x8xf32>
    %399 = vector.extract_strided_slice %212 {offsets = [0, 40], sizes = [2, 8], strides = [1, 1]} : vector<2x64xf32> to vector<2x8xf32>
    %400 = vector.extract_strided_slice %212 {offsets = [0, 48], sizes = [2, 8], strides = [1, 1]} : vector<2x64xf32> to vector<2x8xf32>
    %401 = vector.extract_strided_slice %212 {offsets = [0, 56], sizes = [2, 8], strides = [1, 1]} : vector<2x64xf32> to vector<2x8xf32>
    %402 = vector.extract_strided_slice %213 {offsets = [0, 64], sizes = [2, 16], strides = [1, 1]} : vector<2x128xf32> to vector<2x16xf32>
    %403 = vector.extract_strided_slice %213 {offsets = [0, 80], sizes = [2, 16], strides = [1, 1]} : vector<2x128xf32> to vector<2x16xf32>
    %404 = vector.extract_strided_slice %213 {offsets = [0, 96], sizes = [2, 16], strides = [1, 1]} : vector<2x128xf32> to vector<2x16xf32>
    %405 = vector.extract_strided_slice %213 {offsets = [0, 112], sizes = [2, 16], strides = [1, 1]} : vector<2x128xf32> to vector<2x16xf32>
    %406 = arith.mulf %394, %398 : vector<2x8xf32>
    %cst_65 = arith.constant dense<0.000000e+00> : vector<2xf32>
    %407 = vector.multi_reduction <add>, %406, %cst_65 [1] : vector<2x8xf32> to vector<2xf32>
    %408 = vector.shape_cast %407 : vector<2xf32> to vector<2x1xf32>
    %409 = arith.mulf %394, %399 : vector<2x8xf32>
    %cst_66 = arith.constant dense<0.000000e+00> : vector<2xf32>
    %410 = vector.multi_reduction <add>, %409, %cst_66 [1] : vector<2x8xf32> to vector<2xf32>
    %411 = vector.shape_cast %410 : vector<2xf32> to vector<2x1xf32>
    %412 = arith.mulf %394, %400 : vector<2x8xf32>
    %cst_67 = arith.constant dense<0.000000e+00> : vector<2xf32>
    %413 = vector.multi_reduction <add>, %412, %cst_67 [1] : vector<2x8xf32> to vector<2xf32>
    %414 = vector.shape_cast %413 : vector<2xf32> to vector<2x1xf32>
    %415 = arith.mulf %394, %401 : vector<2x8xf32>
    %cst_68 = arith.constant dense<0.000000e+00> : vector<2xf32>
    %416 = vector.multi_reduction <add>, %415, %cst_68 [1] : vector<2x8xf32> to vector<2xf32>
    %417 = vector.shape_cast %416 : vector<2xf32> to vector<2x1xf32>
    %418 = tpu.concatenate %408, %411, %414, %417 in 1 : vector<2x1xf32>, vector<2x1xf32>, vector<2x1xf32>, vector<2x1xf32> -> vector<2x4xf32>
    %cst_69 = arith.constant 0.353553385 : f32
    %419 = vector.broadcast %cst_69 : f32 to vector<2x4xf32>
    %420 = arith.mulf %418, %419 : vector<2x4xf32>
    %cst_70 = arith.constant dense<0xFF800000> : vector<2xf32>
    %421 = vector.multi_reduction <maximumf>, %420, %cst_70 [1] : vector<2x4xf32> to vector<2xf32>
    %422 = vector.shape_cast %421 : vector<2xf32> to vector<2x1xf32>
    %423 = vector.broadcast %422 : vector<2x1xf32> to vector<2x4xf32>
    %424 = arith.subf %420, %423 : vector<2x4xf32>
    %425 = math.exp %424 : vector<2x4xf32>
    %cst_71 = arith.constant dense<0.000000e+00> : vector<2xf32>
    %426 = vector.multi_reduction <add>, %425, %cst_71 [1] : vector<2x4xf32> to vector<2xf32>
    %427 = vector.shape_cast %426 : vector<2xf32> to vector<2x1xf32>
    %428 = vector.broadcast %427 : vector<2x1xf32> to vector<2x4xf32>
    %429 = arith.divf %425, %428 : vector<2x4xf32>
    %430 = vector.extract_strided_slice %129 {offsets = [0, 0], sizes = [2, 1], strides = [1, 1]} : vector<2x4xf32> to vector<2x1xf32>
    %431 = vector.broadcast %430 : vector<2x1xf32> to vector<2x4xf32>
    %432 = arith.mulf %429, %431 : vector<2x4xf32>
    %433 = vector.extract_strided_slice %432 {offsets = [0, 0], sizes = [2, 1], strides = [1, 1]} : vector<2x4xf32> to vector<2x1xf32>
    %434 = vector.broadcast %433 : vector<2x1xf32> to vector<2x16xf32>
    %435 = arith.mulf %434, %402 : vector<2x16xf32>
    %436 = vector.extract_strided_slice %432 {offsets = [0, 1], sizes = [2, 1], strides = [1, 1]} : vector<2x4xf32> to vector<2x1xf32>
    %437 = vector.broadcast %436 : vector<2x1xf32> to vector<2x16xf32>
    %438 = arith.mulf %437, %403 : vector<2x16xf32>
    %439 = arith.addf %435, %438 : vector<2x16xf32>
    %440 = vector.extract_strided_slice %432 {offsets = [0, 2], sizes = [2, 1], strides = [1, 1]} : vector<2x4xf32> to vector<2x1xf32>
    %441 = vector.broadcast %440 : vector<2x1xf32> to vector<2x16xf32>
    %442 = arith.mulf %441, %404 : vector<2x16xf32>
    %443 = arith.addf %439, %442 : vector<2x16xf32>
    %444 = vector.extract_strided_slice %432 {offsets = [0, 3], sizes = [2, 1], strides = [1, 1]} : vector<2x4xf32> to vector<2x1xf32>
    %445 = vector.broadcast %444 : vector<2x1xf32> to vector<2x16xf32>
    %446 = arith.mulf %445, %405 : vector<2x16xf32>
    %447 = arith.addf %443, %446 : vector<2x16xf32>
    %448 = arith.mulf %395, %398 : vector<2x8xf32>
    %cst_72 = arith.constant dense<0.000000e+00> : vector<2xf32>
    %449 = vector.multi_reduction <add>, %448, %cst_72 [1] : vector<2x8xf32> to vector<2xf32>
    %450 = vector.shape_cast %449 : vector<2xf32> to vector<2x1xf32>
    %451 = arith.mulf %395, %399 : vector<2x8xf32>
    %cst_73 = arith.constant dense<0.000000e+00> : vector<2xf32>
    %452 = vector.multi_reduction <add>, %451, %cst_73 [1] : vector<2x8xf32> to vector<2xf32>
    %453 = vector.shape_cast %452 : vector<2xf32> to vector<2x1xf32>
    %454 = arith.mulf %395, %400 : vector<2x8xf32>
    %cst_74 = arith.constant dense<0.000000e+00> : vector<2xf32>
    %455 = vector.multi_reduction <add>, %454, %cst_74 [1] : vector<2x8xf32> to vector<2xf32>
    %456 = vector.shape_cast %455 : vector<2xf32> to vector<2x1xf32>
    %457 = arith.mulf %395, %401 : vector<2x8xf32>
    %cst_75 = arith.constant dense<0.000000e+00> : vector<2xf32>
    %458 = vector.multi_reduction <add>, %457, %cst_75 [1] : vector<2x8xf32> to vector<2xf32>
    %459 = vector.shape_cast %458 : vector<2xf32> to vector<2x1xf32>
    %460 = tpu.concatenate %450, %453, %456, %459 in 1 : vector<2x1xf32>, vector<2x1xf32>, vector<2x1xf32>, vector<2x1xf32> -> vector<2x4xf32>
    %cst_76 = arith.constant 0.353553385 : f32
    %461 = vector.broadcast %cst_76 : f32 to vector<2x4xf32>
    %462 = arith.mulf %460, %461 : vector<2x4xf32>
    %cst_77 = arith.constant dense<0xFF800000> : vector<2xf32>
    %463 = vector.multi_reduction <maximumf>, %462, %cst_77 [1] : vector<2x4xf32> to vector<2xf32>
    %464 = vector.shape_cast %463 : vector<2xf32> to vector<2x1xf32>
    %465 = vector.broadcast %464 : vector<2x1xf32> to vector<2x4xf32>
    %466 = arith.subf %462, %465 : vector<2x4xf32>
    %467 = math.exp %466 : vector<2x4xf32>
    %cst_78 = arith.constant dense<0.000000e+00> : vector<2xf32>
    %468 = vector.multi_reduction <add>, %467, %cst_78 [1] : vector<2x4xf32> to vector<2xf32>
    %469 = vector.shape_cast %468 : vector<2xf32> to vector<2x1xf32>
    %470 = vector.broadcast %469 : vector<2x1xf32> to vector<2x4xf32>
    %471 = arith.divf %467, %470 : vector<2x4xf32>
    %472 = vector.extract_strided_slice %129 {offsets = [0, 1], sizes = [2, 1], strides = [1, 1]} : vector<2x4xf32> to vector<2x1xf32>
    %473 = vector.broadcast %472 : vector<2x1xf32> to vector<2x4xf32>
    %474 = arith.mulf %471, %473 : vector<2x4xf32>
    %475 = vector.extract_strided_slice %474 {offsets = [0, 0], sizes = [2, 1], strides = [1, 1]} : vector<2x4xf32> to vector<2x1xf32>
    %476 = vector.broadcast %475 : vector<2x1xf32> to vector<2x16xf32>
    %477 = arith.mulf %476, %402 : vector<2x16xf32>
    %478 = vector.extract_strided_slice %474 {offsets = [0, 1], sizes = [2, 1], strides = [1, 1]} : vector<2x4xf32> to vector<2x1xf32>
    %479 = vector.broadcast %478 : vector<2x1xf32> to vector<2x16xf32>
    %480 = arith.mulf %479, %403 : vector<2x16xf32>
    %481 = arith.addf %477, %480 : vector<2x16xf32>
    %482 = vector.extract_strided_slice %474 {offsets = [0, 2], sizes = [2, 1], strides = [1, 1]} : vector<2x4xf32> to vector<2x1xf32>
    %483 = vector.broadcast %482 : vector<2x1xf32> to vector<2x16xf32>
    %484 = arith.mulf %483, %404 : vector<2x16xf32>
    %485 = arith.addf %481, %484 : vector<2x16xf32>
    %486 = vector.extract_strided_slice %474 {offsets = [0, 3], sizes = [2, 1], strides = [1, 1]} : vector<2x4xf32> to vector<2x1xf32>
    %487 = vector.broadcast %486 : vector<2x1xf32> to vector<2x16xf32>
    %488 = arith.mulf %487, %405 : vector<2x16xf32>
    %489 = arith.addf %485, %488 : vector<2x16xf32>
    %490 = arith.mulf %396, %398 : vector<2x8xf32>
    %cst_79 = arith.constant dense<0.000000e+00> : vector<2xf32>
    %491 = vector.multi_reduction <add>, %490, %cst_79 [1] : vector<2x8xf32> to vector<2xf32>
    %492 = vector.shape_cast %491 : vector<2xf32> to vector<2x1xf32>
    %493 = arith.mulf %396, %399 : vector<2x8xf32>
    %cst_80 = arith.constant dense<0.000000e+00> : vector<2xf32>
    %494 = vector.multi_reduction <add>, %493, %cst_80 [1] : vector<2x8xf32> to vector<2xf32>
    %495 = vector.shape_cast %494 : vector<2xf32> to vector<2x1xf32>
    %496 = arith.mulf %396, %400 : vector<2x8xf32>
    %cst_81 = arith.constant dense<0.000000e+00> : vector<2xf32>
    %497 = vector.multi_reduction <add>, %496, %cst_81 [1] : vector<2x8xf32> to vector<2xf32>
    %498 = vector.shape_cast %497 : vector<2xf32> to vector<2x1xf32>
    %499 = arith.mulf %396, %401 : vector<2x8xf32>
    %cst_82 = arith.constant dense<0.000000e+00> : vector<2xf32>
    %500 = vector.multi_reduction <add>, %499, %cst_82 [1] : vector<2x8xf32> to vector<2xf32>
    %501 = vector.shape_cast %500 : vector<2xf32> to vector<2x1xf32>
    %502 = tpu.concatenate %492, %495, %498, %501 in 1 : vector<2x1xf32>, vector<2x1xf32>, vector<2x1xf32>, vector<2x1xf32> -> vector<2x4xf32>
    %cst_83 = arith.constant 0.353553385 : f32
    %503 = vector.broadcast %cst_83 : f32 to vector<2x4xf32>
    %504 = arith.mulf %502, %503 : vector<2x4xf32>
    %cst_84 = arith.constant dense<0xFF800000> : vector<2xf32>
    %505 = vector.multi_reduction <maximumf>, %504, %cst_84 [1] : vector<2x4xf32> to vector<2xf32>
    %506 = vector.shape_cast %505 : vector<2xf32> to vector<2x1xf32>
    %507 = vector.broadcast %506 : vector<2x1xf32> to vector<2x4xf32>
    %508 = arith.subf %504, %507 : vector<2x4xf32>
    %509 = math.exp %508 : vector<2x4xf32>
    %cst_85 = arith.constant dense<0.000000e+00> : vector<2xf32>
    %510 = vector.multi_reduction <add>, %509, %cst_85 [1] : vector<2x4xf32> to vector<2xf32>
    %511 = vector.shape_cast %510 : vector<2xf32> to vector<2x1xf32>
    %512 = vector.broadcast %511 : vector<2x1xf32> to vector<2x4xf32>
    %513 = arith.divf %509, %512 : vector<2x4xf32>
    %514 = vector.extract_strided_slice %129 {offsets = [0, 2], sizes = [2, 1], strides = [1, 1]} : vector<2x4xf32> to vector<2x1xf32>
    %515 = vector.broadcast %514 : vector<2x1xf32> to vector<2x4xf32>
    %516 = arith.mulf %513, %515 : vector<2x4xf32>
    %517 = vector.extract_strided_slice %516 {offsets = [0, 0], sizes = [2, 1], strides = [1, 1]} : vector<2x4xf32> to vector<2x1xf32>
    %518 = vector.broadcast %517 : vector<2x1xf32> to vector<2x16xf32>
    %519 = arith.mulf %518, %402 : vector<2x16xf32>
    %520 = vector.extract_strided_slice %516 {offsets = [0, 1], sizes = [2, 1], strides = [1, 1]} : vector<2x4xf32> to vector<2x1xf32>
    %521 = vector.broadcast %520 : vector<2x1xf32> to vector<2x16xf32>
    %522 = arith.mulf %521, %403 : vector<2x16xf32>
    %523 = arith.addf %519, %522 : vector<2x16xf32>
    %524 = vector.extract_strided_slice %516 {offsets = [0, 2], sizes = [2, 1], strides = [1, 1]} : vector<2x4xf32> to vector<2x1xf32>
    %525 = vector.broadcast %524 : vector<2x1xf32> to vector<2x16xf32>
    %526 = arith.mulf %525, %404 : vector<2x16xf32>
    %527 = arith.addf %523, %526 : vector<2x16xf32>
    %528 = vector.extract_strided_slice %516 {offsets = [0, 3], sizes = [2, 1], strides = [1, 1]} : vector<2x4xf32> to vector<2x1xf32>
    %529 = vector.broadcast %528 : vector<2x1xf32> to vector<2x16xf32>
    %530 = arith.mulf %529, %405 : vector<2x16xf32>
    %531 = arith.addf %527, %530 : vector<2x16xf32>
    %532 = arith.mulf %397, %398 : vector<2x8xf32>
    %cst_86 = arith.constant dense<0.000000e+00> : vector<2xf32>
    %533 = vector.multi_reduction <add>, %532, %cst_86 [1] : vector<2x8xf32> to vector<2xf32>
    %534 = vector.shape_cast %533 : vector<2xf32> to vector<2x1xf32>
    %535 = arith.mulf %397, %399 : vector<2x8xf32>
    %cst_87 = arith.constant dense<0.000000e+00> : vector<2xf32>
    %536 = vector.multi_reduction <add>, %535, %cst_87 [1] : vector<2x8xf32> to vector<2xf32>
    %537 = vector.shape_cast %536 : vector<2xf32> to vector<2x1xf32>
    %538 = arith.mulf %397, %400 : vector<2x8xf32>
    %cst_88 = arith.constant dense<0.000000e+00> : vector<2xf32>
    %539 = vector.multi_reduction <add>, %538, %cst_88 [1] : vector<2x8xf32> to vector<2xf32>
    %540 = vector.shape_cast %539 : vector<2xf32> to vector<2x1xf32>
    %541 = arith.mulf %397, %401 : vector<2x8xf32>
    %cst_89 = arith.constant dense<0.000000e+00> : vector<2xf32>
    %542 = vector.multi_reduction <add>, %541, %cst_89 [1] : vector<2x8xf32> to vector<2xf32>
    %543 = vector.shape_cast %542 : vector<2xf32> to vector<2x1xf32>
    %544 = tpu.concatenate %534, %537, %540, %543 in 1 : vector<2x1xf32>, vector<2x1xf32>, vector<2x1xf32>, vector<2x1xf32> -> vector<2x4xf32>
    %cst_90 = arith.constant 0.353553385 : f32
    %545 = vector.broadcast %cst_90 : f32 to vector<2x4xf32>
    %546 = arith.mulf %544, %545 : vector<2x4xf32>
    %cst_91 = arith.constant dense<0xFF800000> : vector<2xf32>
    %547 = vector.multi_reduction <maximumf>, %546, %cst_91 [1] : vector<2x4xf32> to vector<2xf32>
    %548 = vector.shape_cast %547 : vector<2xf32> to vector<2x1xf32>
    %549 = vector.broadcast %548 : vector<2x1xf32> to vector<2x4xf32>
    %550 = arith.subf %546, %549 : vector<2x4xf32>
    %551 = math.exp %550 : vector<2x4xf32>
    %cst_92 = arith.constant dense<0.000000e+00> : vector<2xf32>
    %552 = vector.multi_reduction <add>, %551, %cst_92 [1] : vector<2x4xf32> to vector<2xf32>
    %553 = vector.shape_cast %552 : vector<2xf32> to vector<2x1xf32>
    %554 = vector.broadcast %553 : vector<2x1xf32> to vector<2x4xf32>
    %555 = arith.divf %551, %554 : vector<2x4xf32>
    %556 = vector.extract_strided_slice %129 {offsets = [0, 3], sizes = [2, 1], strides = [1, 1]} : vector<2x4xf32> to vector<2x1xf32>
    %557 = vector.broadcast %556 : vector<2x1xf32> to vector<2x4xf32>
    %558 = arith.mulf %555, %557 : vector<2x4xf32>
    %559 = vector.extract_strided_slice %558 {offsets = [0, 0], sizes = [2, 1], strides = [1, 1]} : vector<2x4xf32> to vector<2x1xf32>
    %560 = vector.broadcast %559 : vector<2x1xf32> to vector<2x16xf32>
    %561 = arith.mulf %560, %402 : vector<2x16xf32>
    %562 = vector.extract_strided_slice %558 {offsets = [0, 1], sizes = [2, 1], strides = [1, 1]} : vector<2x4xf32> to vector<2x1xf32>
    %563 = vector.broadcast %562 : vector<2x1xf32> to vector<2x16xf32>
    %564 = arith.mulf %563, %403 : vector<2x16xf32>
    %565 = arith.addf %561, %564 : vector<2x16xf32>
    %566 = vector.extract_strided_slice %558 {offsets = [0, 2], sizes = [2, 1], strides = [1, 1]} : vector<2x4xf32> to vector<2x1xf32>
    %567 = vector.broadcast %566 : vector<2x1xf32> to vector<2x16xf32>
    %568 = arith.mulf %567, %404 : vector<2x16xf32>
    %569 = arith.addf %565, %568 : vector<2x16xf32>
    %570 = vector.extract_strided_slice %558 {offsets = [0, 3], sizes = [2, 1], strides = [1, 1]} : vector<2x4xf32> to vector<2x1xf32>
    %571 = vector.broadcast %570 : vector<2x1xf32> to vector<2x16xf32>
    %572 = arith.mulf %571, %405 : vector<2x16xf32>
    %573 = arith.addf %569, %572 : vector<2x16xf32>
    %574 = tpu.concatenate %267, %309, %351, %393, %447, %489, %531, %573 in 1 : vector<2x16xf32>, vector<2x16xf32>, vector<2x16xf32>, vector<2x16xf32>, vector<2x16xf32>, vector<2x16xf32>, vector<2x16xf32>, vector<2x16xf32> -> vector<2x128xf32>
    %c0_93 = arith.constant 0 : index
    %c0_94 = arith.constant 0 : index
    %575 = vector.load %arg8[%c0_93, %c0_94] : memref<128x64xf32, #tpu.memory_space<vmem>>, vector<128x64xf32>
    %cst_95 = arith.constant dense<0.000000e+00> : vector<2x64xf32>
    %576 = tpu.matmul %574, %575, %cst_95 {dimension_numbers = #tpu.dot_dimension_numbers<[1], [0], [0], [1], [0, 0, 1, 1], [], []>} : vector<2x128xf32>, vector<128x64xf32>, vector<2x64xf32> -> vector<2x64xf32>
    %577 = arith.addf %576, %208 : vector<2x64xf32>
    %578 = vector.extract_strided_slice %129 {offsets = [0, 0], sizes = [2, 1], strides = [1, 1]} : vector<2x4xf32> to vector<2x1xf32>
    %579 = vector.shape_cast %578 : vector<2x1xf32> to vector<2x1xf32>
    %580 = vector.broadcast %579 : vector<2x1xf32> to vector<2x16xf32>
    %581 = vector.extract_strided_slice %129 {offsets = [0, 1], sizes = [2, 1], strides = [1, 1]} : vector<2x4xf32> to vector<2x1xf32>
    %582 = vector.shape_cast %581 : vector<2x1xf32> to vector<2x1xf32>
    %583 = vector.broadcast %582 : vector<2x1xf32> to vector<2x16xf32>
    %584 = vector.extract_strided_slice %129 {offsets = [0, 2], sizes = [2, 1], strides = [1, 1]} : vector<2x4xf32> to vector<2x1xf32>
    %585 = vector.shape_cast %584 : vector<2x1xf32> to vector<2x1xf32>
    %586 = vector.broadcast %585 : vector<2x1xf32> to vector<2x16xf32>
    %587 = vector.extract_strided_slice %129 {offsets = [0, 3], sizes = [2, 1], strides = [1, 1]} : vector<2x4xf32> to vector<2x1xf32>
    %588 = vector.shape_cast %587 : vector<2x1xf32> to vector<2x1xf32>
    %589 = vector.broadcast %588 : vector<2x1xf32> to vector<2x16xf32>
    %590 = tpu.concatenate %580, %583, %586, %589 in 1 : vector<2x16xf32>, vector<2x16xf32>, vector<2x16xf32>, vector<2x16xf32> -> vector<2x64xf32>
    %591 = arith.mulf %590, %577 : vector<2x64xf32>
    %cst_96 = arith.constant 1.000000e+00 : f32
    %592 = vector.broadcast %cst_96 : f32 to vector<2x64xf32>
    %593 = arith.subf %592, %590 : vector<2x64xf32>
    %594 = arith.mulf %593, %3 : vector<2x64xf32>
    %595 = arith.addf %591, %594 : vector<2x64xf32>
    %c0_97 = arith.constant 0 : index
    %c0_98 = arith.constant 0 : index
    %596 = vector.load %arg10[%c0_97, %c0_98] : memref<2x64xf32, #tpu.memory_space<vmem>>, vector<2x64xf32>
    tpu.vector_store %arg10[%c0_97, %c0_98], %595 {strides = array<i32>} : memref<2x64xf32, #tpu.memory_space<vmem>>, vector<2x64xf32>,
    %c0_99 = arith.constant 0 : index
    %c0_100 = arith.constant 0 : index
    %c0_101 = arith.constant 0 : index
    %597 = vector.load %arg9[%c0_99, %c0_100, %c0_101] : memref<1x2x64xf32, #tpu.memory_space<vmem>>, vector<1x2x64xf32>
    %598 = vector.shape_cast %597 : vector<1x2x64xf32> to vector<2x64xf32>
    %599 = vector.shape_cast %595 : vector<2x64xf32> to vector<1x2x64xf32>
    tpu.vector_store %arg9[%c0_99, %c0_100, %c0_101], %599 {strides = array<i32>} : memref<1x2x64xf32, #tpu.memory_space<vmem>>, vector<1x2x64xf32>,
    return
  }
  func.func @transform_0(%arg0: i32) -> (i32, i32, i32) {
    %c0_i32 = arith.constant 0 : i32
    %c0_i32_0 = arith.constant 0 : i32
    %c0_i32_1 = arith.constant 0 : i32
    return %arg0, %c0_i32, %c0_i32_0 : i32, i32, i32
  }
  func.func @transform_1(%arg0: i32) -> (i32, i32) {
    %c0_i32 = arith.constant 0 : i32
    %c0_i32_0 = arith.constant 0 : i32
    %c0_i32_1 = arith.constant 0 : i32
    return %c0_i32, %c0_i32_0 : i32, i32
  }
  func.func @transform_2(%arg0: i32) -> (i32, i32) {
    %c0_i32 = arith.constant 0 : i32
    %c0_i32_0 = arith.constant 0 : i32
    %c0_i32_1 = arith.constant 0 : i32
    return %c0_i32, %c0_i32_0 : i32, i32
  }
  func.func @transform_3(%arg0: i32) -> (i32, i32) {
    %c0_i32 = arith.constant 0 : i32
    %c0_i32_0 = arith.constant 0 : i32
    %c0_i32_1 = arith.constant 0 : i32
    return %c0_i32, %c0_i32_0 : i32, i32
  }
  func.func @transform_4(%arg0: i32) -> (i32, i32) {
    %c0_i32 = arith.constant 0 : i32
    %c0_i32_0 = arith.constant 0 : i32
    %c0_i32_1 = arith.constant 0 : i32
    return %c0_i32, %c0_i32_0 : i32, i32
  }
  func.func @transform_5(%arg0: i32) -> (i32, i32) {
    %c0_i32 = arith.constant 0 : i32
    %c0_i32_0 = arith.constant 0 : i32
    %c0_i32_1 = arith.constant 0 : i32
    return %c0_i32, %c0_i32_0 : i32, i32
  }
  func.func @transform_6(%arg0: i32) -> (i32, i32) {
    %c0_i32 = arith.constant 0 : i32
    %c0_i32_0 = arith.constant 0 : i32
    %c0_i32_1 = arith.constant 0 : i32
    return %c0_i32, %c0_i32_0 : i32, i32
  }
  func.func @transform_7(%arg0: i32) -> (i32, i32) {
    %c0_i32 = arith.constant 0 : i32
    %c0_i32_0 = arith.constant 0 : i32
    %c0_i32_1 = arith.constant 0 : i32
    return %c0_i32, %c0_i32_0 : i32, i32
  }
  func.func @transform_8(%arg0: i32) -> (i32, i32, i32) {
    %c0_i32 = arith.constant 0 : i32
    %c0_i32_0 = arith.constant 0 : i32
    %c0_i32_1 = arith.constant 0 : i32
    return %arg0, %c0_i32, %c0_i32_0 : i32, i32, i32
  }
}

</mosaic_0001>

<llo_original>
// kernel: rim_forward.2
$region0: #{rim_forward.2}
  #allocation0 [shape = 'u32[]', space=smem, size = 0x4, offset = 0x4, fixed_abs, tag = 'smem constant byte address 0x4 - core index']
  #allocation1 [shape = 'u32[144,128]{1,0:T(1,128)}', space=vmem, size = 0x12000, scoped, tag = 'internal scratch']
  #allocation2 [shape = 'f32[2,64]{1,0:T(2,128)}', space=vmem, size = 0x400, scoped, tag = 'scratch operand']
  %s0 = inlined_call_operand.vmem [shape: f32[6,2,32], index: 0, kind: input, shape index: {}]
  %s1 = inlined_call_operand.vmem [shape: f32[2,64], index: 1, kind: input, shape index: {}]
  %s2 = inlined_call_operand.vmem [shape: f32[32,48], index: 2, kind: input, shape index: {}]
  %s3 = inlined_call_operand.vmem [shape: f32[1,48], index: 3, kind: input, shape index: {}]
  %s4 = inlined_call_operand.vmem [shape: f32[64,256], index: 4, kind: input, shape index: {}]
  %s5 = inlined_call_operand.vmem [shape: f32[128,192], index: 5, kind: input, shape index: {}]
  %s6 = inlined_call_operand.vmem [shape: f32[64,256], index: 6, kind: input, shape index: {}]
  %s7 = inlined_call_operand.vmem [shape: f32[128,64], index: 7, kind: input, shape index: {}]
  %s8 = inlined_call_operand.vmem [shape: f32[6,2,64], index: 8, kind: output, shape index: {}]
  %s9 = sld [smem:[#allocation0]]
  $region69: #{rim_forward.2} parent=0
    _
  %s11 = ssub.s32 1, %s9
  %s12 = scalar_select 0, %s11, %s9
  loop: start=0, step=1, limit=8
  $region2: #{rim_forward.2} parent=0 // loop_pre_header
    _
  $region3: #{rim_forward.2} parent=0 // loop_header
    %s14 = sphi 0, %s18
    %p15 = scmp.ge.s32.totalorder %s14, 8
    %s24 = sphi 0, %s26
    %s27 = sphi 0, %s24
    %s28 = sphi 0, %s27
    %s44 = sphi 0, %s28
    %s48 = sphi 0, %s48
    %s50 = sphi 0, %s48
    %s51 = sphi 0, %s50
    %s65 = sphi 0, %s51
    %s69 = sphi 0, %s69
    %s71 = sphi 0, %s69
    %s72 = sphi 0, %s71
    %s86 = sphi 0, %s72
    %s90 = sphi 0, %s90
    %s92 = sphi 0, %s90
    %s93 = sphi 0, %s92
    %s107 = sphi 0, %s93
    %s111 = sphi 0, %s111
    %s113 = sphi 0, %s111
    %s114 = sphi 0, %s113
    %s128 = sphi 0, %s114
    %s132 = sphi 0, %s132
    %s134 = sphi 0, %s132
    %s135 = sphi 0, %s134
    %s149 = sphi 0, %s135
    %s153 = sphi 0, %s153
    %s155 = sphi 0, %s153
    %s156 = sphi 0, %s155
    %s170 = sphi 0, %s156
    %s174 = sphi 0, %s174
    %s176 = sphi 0, %s174
    %s177 = sphi 0, %s176
    %s191 = sphi 0, %s177
    %s197 = sphi 0, %s199
    %s200 = sphi 0, %s197
    %s201 = sphi 0, %s200
    %s217 = sphi 0, %s201
  $region4: #{rim_forward.2} parent=0 // loop_header_branch
    %17 = sbr.rel (%p15) target = $region8
  $region5: #{rim_forward.2} parent=0 // loop_body
    %s19 = ssub.s32 %s14, 1
    %s20 = ssub.s32 %s14, 2
    %s21 = sadd.s32 %s14, 1
    %s22 = ssub.s32 %s14, %s21
    %p23 = scmp.eq.s32.totalorder %s22, 0
    %s25 = sadd.s32 %s24, 1
    %s26 = scalar_select %p23, %s24, %s25
    %p29 = pneg %p23
    %p30 = scmp.eq.s32.totalorder %s14, 5
    %p31 = por %p29, %p30
    %p32 = scmp.ne.s32.totalorder %s24, %s27
    %p33 = scmp.eq.s32.totalorder %s14, 0
    %p34 = por %p32, %p33
    %p35 = scmp.ne.s32.totalorder %s24, %s27
    %p36 = scmp.eq.s32.totalorder %s19, 5
    %p37 = por %p35, %p36
    %p38 = scmp.ne.s32.totalorder %s27, %s28
    %p39 = scmp.eq.s32.totalorder %s19, 0
    %p40 = por %p38, %p39
    %p41 = scmp.ne.s32.totalorder %s27, %s28
    %p42 = scmp.eq.s32.totalorder %s20, 5
    %p43 = por %p41, %p42
    %p45 = scmp.ne.s32.totalorder %s28, %s44
    %p46 = scmp.eq.s32.totalorder %s20, 0
    %p47 = por %p45, %p46
    %s49 = sadd.s32 %s48, 1
    %p52 = scmp.eq.s32.totalorder %s14, 5
    %p53 = scmp.ne.s32.totalorder %s48, %s50
    %p54 = scmp.eq.s32.totalorder %s14, 0
    %p55 = por %p53, %p54
    %p56 = scmp.ne.s32.totalorder %s48, %s50
    %p57 = scmp.eq.s32.totalorder %s19, 5
    %p58 = por %p56, %p57
    %p59 = scmp.ne.s32.totalorder %s50, %s51
    %p60 = scmp.eq.s32.totalorder %s19, 0
    %p61 = por %p59, %p60
    %p62 = scmp.ne.s32.totalorder %s50, %s51
    %p63 = scmp.eq.s32.totalorder %s20, 5
    %p64 = por %p62, %p63
    %p66 = scmp.ne.s32.totalorder %s51, %s65
    %p67 = scmp.eq.s32.totalorder %s20, 0
    %p68 = por %p66, %p67
    %s70 = sadd.s32 %s69, 1
    %p73 = scmp.eq.s32.totalorder %s14, 5
    %p74 = scmp.ne.s32.totalorder %s69, %s71
    %p75 = scmp.eq.s32.totalorder %s14, 0
    %p76 = por %p74, %p75
    %p77 = scmp.ne.s32.totalorder %s69, %s71
    %p78 = scmp.eq.s32.totalorder %s19, 5
    %p79 = por %p77, %p78
    %p80 = scmp.ne.s32.totalorder %s71, %s72
    %p81 = scmp.eq.s32.totalorder %s19, 0
    %p82 = por %p80, %p81
    %p83 = scmp.ne.s32.totalorder %s71, %s72
    %p84 = scmp.eq.s32.totalorder %s20, 5
    %p85 = por %p83, %p84
    %p87 = scmp.ne.s32.totalorder %s72, %s86
    %p88 = scmp.eq.s32.totalorder %s20, 0
    %p89 = por %p87, %p88
    %s91 = sadd.s32 %s90, 1
    %p94 = scmp.eq.s32.totalorder %s14, 5
    %p95 = scmp.ne.s32.totalorder %s90, %s92
    %p96 = scmp.eq.s32.totalorder %s14, 0
    %p97 = por %p95, %p96
    %p98 = scmp.ne.s32.totalorder %s90, %s92
    %p99 = scmp.eq.s32.totalorder %s19, 5
    %p100 = por %p98, %p99
    %p101 = scmp.ne.s32.totalorder %s92, %s93
    %p102 = scmp.eq.s32.totalorder %s19, 0
    %p103 = por %p101, %p102
    %p104 = scmp.ne.s32.totalorder %s92, %s93
    %p105 = scmp.eq.s32.totalorder %s20, 5
    %p106 = por %p104, %p105
    %p108 = scmp.ne.s32.totalorder %s93, %s107
    %p109 = scmp.eq.s32.totalorder %s20, 0
    %p110 = por %p108, %p109
    %s112 = sadd.s32 %s111, 1
    %p115 = scmp.eq.s32.totalorder %s14, 5
    %p116 = scmp.ne.s32.totalorder %s111, %s113
    %p117 = scmp.eq.s32.totalorder %s14, 0
    %p118 = por %p116, %p117
    %p119 = scmp.ne.s32.totalorder %s111, %s113
    %p120 = scmp.eq.s32.totalorder %s19, 5
    %p121 = por %p119, %p120
    %p122 = scmp.ne.s32.totalorder %s113, %s114
    %p123 = scmp.eq.s32.totalorder %s19, 0
    %p124 = por %p122, %p123
    %p125 = scmp.ne.s32.totalorder %s113, %s114
    %p126 = scmp.eq.s32.totalorder %s20, 5
    %p127 = por %p125, %p126
    %p129 = scmp.ne.s32.totalorder %s114, %s128
    %p130 = scmp.eq.s32.totalorder %s20, 0
    %p131 = por %p129, %p130
    %s133 = sadd.s32 %s132, 1
    %p136 = scmp.eq.s32.totalorder %s14, 5
    %p137 = scmp.ne.s32.totalorder %s132, %s134
    %p138 = scmp.eq.s32.totalorder %s14, 0
    %p139 = por %p137, %p138
    %p140 = scmp.ne.s32.totalorder %s132, %s134
    %p141 = scmp.eq.s32.totalorder %s19, 5
    %p142 = por %p140, %p141
    %p143 = scmp.ne.s32.totalorder %s134, %s135
    %p144 = scmp.eq.s32.totalorder %s19, 0
    %p145 = por %p143, %p144
    %p146 = scmp.ne.s32.totalorder %s134, %s135
    %p147 = scmp.eq.s32.totalorder %s20, 5
    %p148 = por %p146, %p147
    %p150 = scmp.ne.s32.totalorder %s135, %s149
    %p151 = scmp.eq.s32.totalorder %s20, 0
    %p152 = por %p150, %p151
    %s154 = sadd.s32 %s153, 1
    %p157 = scmp.eq.s32.totalorder %s14, 5
    %p158 = scmp.ne.s32.totalorder %s153, %s155
    %p159 = scmp.eq.s32.totalorder %s14, 0
    %p160 = por %p158, %p159
    %p161 = scmp.ne.s32.totalorder %s153, %s155
    %p162 = scmp.eq.s32.totalorder %s19, 5
    %p163 = por %p161, %p162
    %p164 = scmp.ne.s32.totalorder %s155, %s156
    %p165 = scmp.eq.s32.totalorder %s19, 0
    %p166 = por %p164, %p165
    %p167 = scmp.ne.s32.totalorder %s155, %s156
    %p168 = scmp.eq.s32.totalorder %s20, 5
    %p169 = por %p167, %p168
    %p171 = scmp.ne.s32.totalorder %s156, %s170
    %p172 = scmp.eq.s32.totalorder %s20, 0
    %p173 = por %p171, %p172
    %s175 = sadd.s32 %s174, 1
    %p178 = scmp.eq.s32.totalorder %s14, 5
    %p179 = scmp.ne.s32.totalorder %s174, %s176
    %p180 = scmp.eq.s32.totalorder %s14, 0
    %p181 = por %p179, %p180
    %p182 = scmp.ne.s32.totalorder %s174, %s176
    %p183 = scmp.eq.s32.totalorder %s19, 5
    %p184 = por %p182, %p183
    %p185 = scmp.ne.s32.totalorder %s176, %s177
    %p186 = scmp.eq.s32.totalorder %s19, 0
    %p187 = por %p185, %p186
    %p188 = scmp.ne.s32.totalorder %s176, %s177
    %p189 = scmp.eq.s32.totalorder %s20, 5
    %p190 = por %p188, %p189
    %p192 = scmp.ne.s32.totalorder %s177, %s191
    %p193 = scmp.eq.s32.totalorder %s20, 0
    %p194 = por %p192, %p193
    %s195 = ssub.s32 %s14, %s21
    %p196 = scmp.eq.s32.totalorder %s195, 0
    %s198 = sadd.s32 %s197, 1
    %s199 = scalar_select %p196, %s197, %s198
    %p202 = pneg %p196
    %p203 = scmp.eq.s32.totalorder %s14, 5
    %p204 = por %p202, %p203
    %p205 = scmp.ne.s32.totalorder %s197, %s200
    %p206 = scmp.eq.s32.totalorder %s14, 0
    %p207 = por %p205, %p206
    %p208 = scmp.ne.s32.totalorder %s197, %s200
    %p209 = scmp.eq.s32.totalorder %s19, 5
    %p210 = por %p208, %p209
    %p211 = scmp.ne.s32.totalorder %s200, %s201
    %p212 = scmp.eq.s32.totalorder %s19, 0
    %p213 = por %p211, %p212
    %p214 = scmp.ne.s32.totalorder %s200, %s201
    %p215 = scmp.eq.s32.totalorder %s20, 5
    %p216 = por %p214, %p215
    %p218 = scmp.ne.s32.totalorder %s201, %s217
    %p219 = scmp.eq.s32.totalorder %s20, 0
    %p220 = por %p218, %p219
    %p221 = scmp.le.s32.totalorder 1, %s14
    %p222 = scmp.lt.s32.totalorder %s14, 7
    %p223 = pnand %p221, %p222
    %p224 = pneg %p223
    // Predicated region
    $region9: #{rim_forward.2} parent=5 // pred_check
      _
    $region10: #{rim_forward.2} parent=5 // pred_check_branch
      %226 = sbr.rel (%p223) target = $region12
    $region11: #{rim_forward.2} parent=5 // pred_region
      %s227 = ssub.s32 %s14, 1
      // Predicated region
      $region13: #{rim_forward.2} parent=11 // pred_check
        %p228 = pneg %p61
      $region14: #{rim_forward.2} parent=11 // pred_check_branch
        %230 = sbr.rel (%p228) target = $region16
      $region15: #{rim_forward.2} parent=11 // pred_region
        _
      $region16: #{rim_forward.2} parent=11 // pred_fallthru
        _
      // Predicated region
      $region17: #{rim_forward.2} parent=11 // pred_check
        %p231 = pneg %p82
      $region18: #{rim_forward.2} parent=11 // pred_check_branch
        %233 = sbr.rel (%p231) target = $region20
      $region19: #{rim_forward.2} parent=11 // pred_region
        _
      $region20: #{rim_forward.2} parent=11 // pred_fallthru
        _
      // Predicated region
      $region21: #{rim_forward.2} parent=11 // pred_check
        %p234 = pneg %p103
      $region22: #{rim_forward.2} parent=11 // pred_check_branch
        %236 = sbr.rel (%p234) target = $region24
      $region23: #{rim_forward.2} parent=11 // pred_region
        _
      $region24: #{rim_forward.2} parent=11 // pred_fallthru
        _
      // Predicated region
      $region25: #{rim_forward.2} parent=11 // pred_check
        %p237 = pneg %p124
      $region26: #{rim_forward.2} parent=11 // pred_check_branch
        %239 = sbr.rel (%p237) target = $region28
      $region27: #{rim_forward.2} parent=11 // pred_region
        _
      $region28: #{rim_forward.2} parent=11 // pred_fallthru
        _
      // Predicated region
      $region29: #{rim_forward.2} parent=11 // pred_check
        %p240 = pneg %p145
      $region30: #{rim_forward.2} parent=11 // pred_check_branch
        %242 = sbr.rel (%p240) target = $region32
      $region31: #{rim_forward.2} parent=11 // pred_region
        _
      $region32: #{rim_forward.2} parent=11 // pred_fallthru
        _
      // Predicated region
      $region33: #{rim_forward.2} parent=11 // pred_check
        %p243 = pneg %p166
      $region34: #{rim_forward.2} parent=11 // pred_check_branch
        %245 = sbr.rel (%p243) target = $region36
      $region35: #{rim_forward.2} parent=11 // pred_region
        _
      $region36: #{rim_forward.2} parent=11 // pred_fallthru
        _
      // Predicated region
      $region37: #{rim_forward.2} parent=11 // pred_check
        %p246 = pneg %p187
      $region38: #{rim_forward.2} parent=11 // pred_check_branch
        %248 = sbr.rel (%p246) target = $region40
      $region39: #{rim_forward.2} parent=11 // pred_region
        _
      $region40: #{rim_forward.2} parent=11 // pred_fallthru
        _
    $region12: #{rim_forward.2} parent=5 // pred_fallthru
      _
    %p249 = scmp.lt.s32.totalorder %s14, 6
    // Predicated region
    $region41: #{rim_forward.2} parent=5 // pred_check
      %p250 = pneg %p249
    $region42: #{rim_forward.2} parent=5 // pred_check_branch
      %252 = sbr.rel (%p250) target = $region44
    $region43: #{rim_forward.2} parent=5 // pred_region
      // Predicated region
      $region45: #{rim_forward.2} parent=43 // pred_check
        %p253 = pneg %p34
      $region46: #{rim_forward.2} parent=43 // pred_check_branch
        %255 = sbr.rel (%p253) target = $region48
      $region47: #{rim_forward.2} parent=43 // pred_region
        %p256 = scmp.lt.s32.totalorder %s14, 5
        %s257 = scalar_select %p256, %s14, 5
        %s258 = smul.addr %s257, 2
        %s259 = scalar_lea.vmem %s0, %s258
      $region48: #{rim_forward.2} parent=43 // pred_fallthru
        _
    $region44: #{rim_forward.2} parent=5 // pred_fallthru
      _
    %p260 = scmp.le.s32.totalorder 1, %s14
    %p261 = scmp.lt.s32.totalorder %s14, 7
    %p262 = pnand %p260, %p261
    %p263 = pneg %p262
    // Predicated region
    $region49: #{rim_forward.2} parent=5 // pred_check
      _
    $region50: #{rim_forward.2} parent=5 // pred_check_branch
      %265 = sbr.rel (%p262) target = $region52
    $region51: #{rim_forward.2} parent=5 // pred_region
      %s266 = ssub.s32 %s14, 1
      %p267 = scmp.lt.s32.totalorder %s19, 5
      %s268 = scalar_select %p267, %s19, 5
      %s269 = smul.addr %s268, 2
      %s270 = scalar_lea.vmem %s0, %s269
      %p271 = pneg %p40
      %p272 = pneg %p37
      %p273 = pneg %p61
      %p274 = pneg %p58
      %p275 = pneg %p82
      %p276 = pneg %p79
      %p277 = pneg %p103
      %p278 = pneg %p100
      %p279 = pneg %p124
      %p280 = pneg %p121
      %p281 = pneg %p145
      %p282 = pneg %p142
      %p283 = pneg %p166
      %p284 = pneg %p163
      %p285 = pneg %p187
      %p286 = pneg %p184
      %p287 = pneg %p213
      %p288 = pneg %p210
      %p289 = scmp.lt.s32.totalorder %s19, 5
      %s290 = scalar_select %p289, %s19, 5
      %s291 = smul.addr %s290, 2
      %s292 = scalar_lea.vmem %s8, %s291
      %p293 = scmp.lt.s32.totalorder %s19, 5
      %s294 = scalar_select %p293, %s19, 5
      %s295 = smul.addr %s294, 2
      %s296 = scalar_lea.vmem %s0, %s295
      %p297 = scmp.lt.s32.totalorder %s19, 5
      %s298 = scalar_select %p297, %s19, 5
      %s299 = smul.addr %s298, 2
      %s300 = scalar_lea.vmem %s8, %s299
      %p301 = scmp.eq.s32.totalorder %s19, 0
      // Predicated region
      $region53: #{rim_forward.2} parent=51 // pred_check
        %p302 = pneg %p301
      $region54: #{rim_forward.2} parent=51 // pred_check_branch
        %304 = sbr.rel (%p302) target = $region56
      $region55: #{rim_forward.2} parent=51 // pred_region
        %v305 = vld [vmem:[%s1] sm:$0x3]
        %vm306 = vcmask 517120
        %307 = vst.msk [vmem:[#allocation2] sm:$0x3] %vm306, %v305
      $region56: #{rim_forward.2} parent=51 // pred_fallthru
        _
      %v308 = vld [vmem:[#allocation2] sm:$0x3]
      %v309 = vld [vmem:[%s296] sm:$0x3]
      %v310 = vld [vmem:[%s3] sm:$0x1]
      %v311 = vld [vmem:[%s2] sm:$0xff]
      %v312 = vld [vmem:[%s2 + $0x8] sm:$0xff]
      %v313 = vld [vmem:[%s2 + $0x10] sm:$0xff]
      %v314 = vld [vmem:[%s2 + $0x18] sm:$0xff]
      %v316 = vlaneseq
      %v317 = vshrl.u32 %v316, 7
      %v318 = vsub.s32 0, %v317
      %v319 = vrot.slane %v310, %v318
      %vm321 = vcmask 261120
      %v323 = vsel %vm321, %v309, 0
      %325 = vmatprep.subr.mxu0 0.0
      %326 = vmatpush1.msra.mxu0 0.0
      %327 = vmatprep.subr.mxu0 0.0
      %328 = vmatpush1.msra.mxu0 0.0
      %329 = vmatprep.subr.mxu0 0.0
      %330 = vmatpush1.msra.mxu0 0.0
      %331 = vmatprep.subr.mxu0 0.0
      %332 = vmatpush1.msra.mxu0 0.0
      %333 = vmatprep.subr.mxu0 0.0
      %334 = vmatpush1.msra.mxu0 0.0
      %335 = vmatprep.subr.mxu0 0.0
      %336 = vmatpush1.msra.mxu0 0.0
      %337 = vmatprep.subr.mxu0 0.0
      %338 = vmatpush1.msra.mxu0 0.0
      %339 = vmatprep.subr.mxu0 0.0
      %340 = vmatpush1.msra.mxu0 0.0
      %341 = vmatprep.subr.mxu0 0.0
      %342 = vmatpush1.msra.mxu0 0.0
      %343 = vmatprep.subr.mxu0 0.0
      %344 = vmatpush1.msra.mxu0 0.0
      %345 = vmatprep.subr.mxu0 0.0
      %346 = vmatpush1.msra.mxu0 0.0
      %347 = vmatprep.subr.mxu0 0.0
      %348 = vmatpush1.msra.mxu0 0.0
      %349 = vmatprep.subr.mxu0 0.0
      %350 = vmatpush1.msra.mxu0 %v314
      %351 = vmatprep.subr.mxu0 0.0
      %352 = vmatpush1.msra.mxu0 %v313
      %353 = vmatprep.subr.mxu0 0.0
      %354 = vmatpush1.msra.mxu0 %v312
      %355 = vmatprep.subr.mxu0 0.0
      %356 = vmatpush1.msra.mxu0 %v311
      %357 = vmatprep.subr.mxu0 0.0
      %358 = vmatpush2.msra.mxu0 0.0
      %359 = vmatprep.subr.mxu0 0.0
      %360 = vmatpush2.msra.mxu0 0.0
      %361 = vmatprep.subr.mxu0 0.0
      %362 = vmatpush2.msra.mxu0 0.0
      %363 = vmatprep.subr.mxu0 0.0
      %364 = vmatpush2.msra.mxu0 0.0
      %365 = vmatprep.subr.mxu0 0.0
      %366 = vmatpush2.msra.mxu0 0.0
      %367 = vmatprep.subr.mxu0 0.0
      %368 = vmatpush2.msra.mxu0 0.0
      %369 = vmatprep.subr.mxu0 0.0
      %370 = vmatpush2.msra.mxu0 0.0
      %371 = vmatprep.subr.mxu0 0.0
      %372 = vmatpush2.msra.mxu0 0.0
      %373 = vmatprep.subr.mxu0 0.0
      %374 = vmatpush2.msra.mxu0 0.0
      %375 = vmatprep.subr.mxu0 0.0
      %376 = vmatpush2.msra.mxu0 0.0
      %377 = vmatprep.subr.mxu0 0.0
      %378 = vmatpush2.msra.mxu0 0.0
      %379 = vmatprep.subr.mxu0 0.0
      %380 = vmatpush2.msra.mxu0 0.0
      %381 = vmatprep.subr.mxu0 0.0
      %382 = vmatpush2.msra.mxu0 0.0
      %383 = vmatprep.subr.mxu0 0.0
      %384 = vmatpush2.msra.mxu0 0.0
      %385 = vmatprep.subr.mxu0 0.0
      %386 = vmatpush2.msra.mxu0 0.0
      %387 = vmatprep.subr.mxu0 0.0
      %388 = vmatpush2.msra.mxu0 0.0
      %389 = vmatprep.mubr.f32.mxu0 0.0
      %390 = vmatmul.mubr.f32.gmra.mxu0 %v323
      %v391 = vpop.f32.mrf.mxu0
      %v392 = vadd.f32 %v319, %v391
      %v393 = vpop.f32.mrf.mxu0
      %394 = vdwg.mxu0
      %v395 = vld [vmem:[%s4] sm:$0xff]
      %v396 = vld [vmem:[%s4 + $0x8] sm:$0xff]
      %v397 = vld [vmem:[%s4 + $0x10] sm:$0xff]
      %v398 = vld [vmem:[%s4 + $0x18] sm:$0xff]
      %v399 = vld [vmem:[%s4 + $0x20] sm:$0xff]
      %v400 = vld [vmem:[%s4 + $0x28] sm:$0xff]
      %v401 = vld [vmem:[%s4 + $0x30] sm:$0xff]
      %v402 = vld [vmem:[%s4 + $0x38] sm:$0xff]
      %v403 = vld [vmem:[%s4 + $0x40] sm:$0xff]
      %v404 = vld [vmem:[%s4 + $0x48] sm:$0xff]
      %v405 = vld [vmem:[%s4 + $0x50] sm:$0xff]
      %v406 = vld [vmem:[%s4 + $0x58] sm:$0xff]
      %v407 = vld [vmem:[%s4 + $0x60] sm:$0xff]
      %v408 = vld [vmem:[%s4 + $0x68] sm:$0xff]
      %v409 = vld [vmem:[%s4 + $0x70] sm:$0xff]
      %v410 = vld [vmem:[%s4 + $0x78] sm:$0xff]
      %vm411 = vcmask 523264
      %v413 = vsel %vm411, %v308, 0
      %415 = vmatprep.subr.mxu0 0.0
      %416 = vmatpush1.msra.mxu0 0.0
      %417 = vmatprep.subr.mxu0 0.0
      %418 = vmatpush1.msra.mxu0 0.0
      %419 = vmatprep.subr.mxu0 0.0
      %420 = vmatpush1.msra.mxu0 0.0
      %421 = vmatprep.subr.mxu0 0.0
      %422 = vmatpush1.msra.mxu0 0.0
      %423 = vmatprep.subr.mxu0 0.0
      %424 = vmatpush1.msra.mxu0 0.0
      %425 = vmatprep.subr.mxu0 0.0
      %426 = vmatpush1.msra.mxu0 0.0
      %427 = vmatprep.subr.mxu0 0.0
      %428 = vmatpush1.msra.mxu0 0.0
      %429 = vmatprep.subr.mxu0 0.0
      %430 = vmatpush1.msra.mxu0 0.0
      %431 = vmatprep.subr.mxu0 %v410
      %432 = vmatpush1.msra.mxu0 %v409
      %433 = vmatprep.subr.mxu0 %v408
      %434 = vmatpush1.msra.mxu0 %v407
      %435 = vmatprep.subr.mxu0 %v406
      %436 = vmatpush1.msra.mxu0 %v405
      %437 = vmatprep.subr.mxu0 %v404
      %438 = vmatpush1.msra.mxu0 %v403
      %439 = vmatprep.subr.mxu0 %v402
      %440 = vmatpush1.msra.mxu0 %v401
      %441 = vmatprep.subr.mxu0 %v400
      %442 = vmatpush1.msra.mxu0 %v399
      %443 = vmatprep.subr.mxu0 %v398
      %444 = vmatpush1.msra.mxu0 %v397
      %445 = vmatprep.subr.mxu0 %v396
      %446 = vmatpush1.msra.mxu0 %v395
      %447 = vmatprep.subr.mxu0 0.0
      %448 = vmatpush2.msra.mxu0 0.0
      %449 = vmatprep.subr.mxu0 0.0
      %450 = vmatpush2.msra.mxu0 0.0
      %451 = vmatprep.subr.mxu0 0.0
      %452 = vmatpush2.msra.mxu0 0.0
      %453 = vmatprep.subr.mxu0 0.0
      %454 = vmatpush2.msra.mxu0 0.0
      %455 = vmatprep.subr.mxu0 0.0
      %456 = vmatpush2.msra.mxu0 0.0
      %457 = vmatprep.subr.mxu0 0.0
      %458 = vmatpush2.msra.mxu0 0.0
      %459 = vmatprep.subr.mxu0 0.0
      %460 = vmatpush2.msra.mxu0 0.0
      %461 = vmatprep.subr.mxu0 0.0
      %462 = vmatpush2.msra.mxu0 0.0
      %463 = vmatprep.subr.mxu0 0.0
      %464 = vmatpush2.msra.mxu0 0.0
      %465 = vmatprep.subr.mxu0 0.0
      %466 = vmatpush2.msra.mxu0 0.0
      %467 = vmatprep.subr.mxu0 0.0
      %468 = vmatpush2.msra.mxu0 0.0
      %469 = vmatprep.subr.mxu0 0.0
      %470 = vmatpush2.msra.mxu0 0.0
      %471 = vmatprep.subr.mxu0 0.0
      %472 = vmatpush2.msra.mxu0 0.0
      %473 = vmatprep.subr.mxu0 0.0
      %474 = vmatpush2.msra.mxu0 0.0
      %475 = vmatprep.subr.mxu0 0.0
      %476 = vmatpush2.msra.mxu0 0.0
      %477 = vmatprep.subr.mxu0 0.0
      %478 = vmatpush2.msra.mxu0 0.0
      %479 = vmatprep.mubr.f32.mxu0 0.0
      %480 = vmatmul.mubr.f32.gmra.mxu0 %v413
      %v481 = vpop.f32.mrf.mxu0
      %v482 = vadd.f32 0.0, %v481
      %v483 = vpop.f32.mrf.mxu0
      %v484 = vadd.f32 0.0, %v483
      %485 = vdwg.mxu0
      %v486 = vmul.f32 %v482, %v392
      %vm487 = vcmask 123904
      %v488 = vsel %vm487, %v486, 0.0
      %489 = vadd.xlane.f32.xlu0 %v488
      %v490 = vpop.xlane.xlu0 %489
      %v491 = vmul.f32 %v482, %v319
      %v492 = vsel %vm487, %v491, 0.0
      %493 = vadd.xlane.f32.xlu0 %v492
      %v494 = vpop.xlane.xlu0 %493
      %496 = vrot.lane.b32.xlu0 %v392, 16
      %v497 = vpop.permute.xlu0 %496
      %v499 = vmul.f32 %v482, %v497
      %501 = vrot.lane.b32.xlu0 %v499, 112
      %v502 = vpop.permute.xlu0 %501
      %v504 = vsel %vm487, %v502, 0.0
      %505 = vadd.xlane.f32.xlu0 %v504
      %v506 = vpop.xlane.xlu0 %505
      %507 = vrot.lane.b32.xlu0 %v319, 16
      %v508 = vpop.permute.xlu0 %507
      %v510 = vmul.f32 %v482, %v508
      %512 = vrot.lane.b32.xlu0 %v510, 112
      %v513 = vpop.permute.xlu0 %512
      %v515 = vsel %vm487, %v513, 0.0
      %516 = vadd.xlane.f32.xlu0 %v515
      %v517 = vpop.xlane.xlu0 %516
      %518 = vrot.lane.b32.xlu0 %v392, 32
      %v519 = vpop.permute.xlu0 %518
      %v521 = vmul.f32 %v482, %v519
      %523 = vrot.lane.b32.xlu0 %v521, 96
      %v524 = vpop.permute.xlu0 %523
      %v526 = vsel %vm487, %v524, 0.0
      %527 = vadd.xlane.f32.xlu0 %v526
      %v528 = vpop.xlane.xlu0 %527
      %529 = vrot.lane.b32.xlu0 %v319, 32
      %v530 = vpop.permute.xlu0 %529
      %v532 = vmul.f32 %v482, %v530
      %534 = vrot.lane.b32.xlu0 %v532, 96
      %v535 = vpop.permute.xlu0 %534
      %v537 = vsel %vm487, %v535, 0.0
      %538 = vadd.xlane.f32.xlu0 %v537
      %v539 = vpop.xlane.xlu0 %538
      %540 = vrot.lane.b32.xlu0 %v392, 48
      %v541 = vpop.permute.xlu0 %540
      %v543 = vmul.f32 %v482, %v541
      %545 = vrot.lane.b32.xlu0 %v543, 80
      %v546 = vpop.permute.xlu0 %545
      %v548 = vsel %vm487, %v546, 0.0
      %549 = vadd.xlane.f32.xlu0 %v548
      %v550 = vpop.xlane.xlu0 %549
      %551 = vrot.lane.b32.xlu0 %v319, 48
      %v552 = vpop.permute.xlu0 %551
      %v554 = vmul.f32 %v482, %v552
      %556 = vrot.lane.b32.xlu0 %v554, 80
      %v557 = vpop.permute.xlu0 %556
      %v559 = vsel %vm487, %v557, 0.0
      %560 = vadd.xlane.f32.xlu0 %v559
      %v561 = vpop.xlane.xlu0 %560
      %vm562 = vcmask 7168
      %v563 = vsel %vm562, %v490, %v506
      %vm564 = vcmask 15360
      %v565 = vsel %vm564, %v563, %v528
      %vm566 = vcmask 23552
      %v567 = vsel %vm566, %v565, %v550
      %v568 = vmul.f32 %v567, 0.25
      %v569 = vsel %vm562, %v494, %v517
      %v570 = vsel %vm564, %v569, %v539
      %v571 = vsel %vm566, %v570, %v561
      %v572 = vmul.f32 %v571, 0.25
      %574 = vrot.lane.b32.xlu0 %v568, 1
      %v575 = vpop.permute.xlu0 %574
      %vm577 = vcmp.gt.f32.partialorder %v568, %v575
      %v578 = vsel %vm577, 1, 0
      %v579 = vcvt.s32.f32 %v578
      %v580 = vadd.f32 %v579, 0.0
      %581 = vrot.lane.b32.xlu0 %v568, 2
      %v582 = vpop.permute.xlu0 %581
      %vm584 = vcmp.gt.f32.partialorder %v568, %v582
      %v585 = vsel %vm584, 1, 0
      %v586 = vcvt.s32.f32 %v585
      %588 = vrot.lane.b32.xlu0 %v586, 127
      %v589 = vpop.permute.xlu0 %588
      %v591 = vadd.f32 %v580, %v589
      %592 = vrot.lane.b32.xlu0 %v568, 3
      %v593 = vpop.permute.xlu0 %592
      %vm595 = vcmp.gt.f32.partialorder %v568, %v593
      %v596 = vsel %vm595, 1, 0
      %v597 = vcvt.s32.f32 %v596
      %599 = vrot.lane.b32.xlu0 %v597, 126
      %v600 = vpop.permute.xlu0 %599
      %v602 = vadd.f32 %v591, %v600
      %603 = vrot.lane.b32.xlu0 %v568, 127
      %v604 = vpop.permute.xlu0 %603
      %vm606 = vcmp.ge.f32.partialorder %v568, %v604
      %v607 = vsel %vm606, 1, 0
      %v608 = vcvt.s32.f32 %v607
      %v609 = vadd.f32 %v608, 0.0
      %611 = vrot.lane.b32.xlu0 %v579, 126
      %v612 = vpop.permute.xlu0 %611
      %v614 = vadd.f32 %v609, %v612
      %615 = vrot.lane.b32.xlu0 %v586, 125
      %v616 = vpop.permute.xlu0 %615
      %v618 = vadd.f32 %v614, %v616
      %619 = vrot.lane.b32.xlu0 %v568, 126
      %v620 = vpop.permute.xlu0 %619
      %vm622 = vcmp.ge.f32.partialorder %v568, %v620
      %v623 = vsel %vm622, 1, 0
      %v624 = vcvt.s32.f32 %v623
      %v625 = vadd.f32 %v624, 0.0
      %627 = vrot.lane.b32.xlu0 %v608, 127
      %v628 = vpop.permute.xlu0 %627
      %v630 = vadd.f32 %v625, %v628
      %631 = vrot.lane.b32.xlu0 %v579, 125
      %v632 = vpop.permute.xlu0 %631
      %v634 = vadd.f32 %v630, %v632
      %635 = vrot.lane.b32.xlu0 %v568, 125
      %v636 = vpop.permute.xlu0 %635
      %vm638 = vcmp.ge.f32.partialorder %v568, %v636
      %v639 = vsel %vm638, 1, 0
      %v640 = vcvt.s32.f32 %v639
      %v641 = vadd.f32 %v640, 0.0
      %643 = vrot.lane.b32.xlu0 %v624, 127
      %v644 = vpop.permute.xlu0 %643
      %v646 = vadd.f32 %v641, %v644
      %647 = vrot.lane.b32.xlu0 %v608, 126
      %v648 = vpop.permute.xlu0 %647
      %v650 = vadd.f32 %v646, %v648
      %652 = vrot.lane.b32.xlu0 %v602, 127
      %v653 = vpop.permute.xlu0 %652
      %656 = vrot.lane.b32.xlu0 %v618, 1
      %v657 = vpop.permute.xlu0 %656
      %660 = vrot.lane.b32.xlu0 %v634, 2
      %v661 = vpop.permute.xlu0 %660
      %664 = vrot.lane.b32.xlu0 %v650, 3
      %v665 = vpop.permute.xlu0 %664
      %v667 = vsel %vm562, %v653, %v657
      %v668 = vsel %vm564, %v667, %v661
      %v669 = vsel %vm566, %v668, %v665
      %vm670 = vcmp.lt.f32.partialorder %v669, 2.0
      %v671 = vsel %vm670, 1, 0
      %v672 = vcvt.s32.f32 %v671
      %v673 = vsub.f32 %v568, %v572
      %v674 = vxor.u32 %v673, 2147483648
      %v675 = vmul.f32 %v674, 1.442695
      %v676 = vpow.pop %v675
      %v677 = vadd.f32 %v676, 1.0
      %v678 = vrcp.pop %v677
      %v679 = vmul.f32 1.0, %v678
      %v680 = vsub.f32 1.0, %v679
      %682 = vset.pattern.permute.xlu0 0
      %683 = vperm.xlu0 %682, %v679
      %v684 = vpop.permute.xlu0 %683
      %v686 = vmul.f32 %v684, %v392
      %688 = vset.pattern.permute.xlu0 0
      %689 = vperm.xlu0 %688, %v680
      %v690 = vpop.permute.xlu0 %689
      %v692 = vmul.f32 %v690, %v319
      %v693 = vadd.f32 %v686, %v692
      %695 = vset.pattern.permute.xlu0 0
      %696 = vperm.xlu0 %695, %v672
      %v697 = vpop.permute.xlu0 %696
      %v699 = vmul.f32 %v697, %v693
      %700 = vset.pattern.permute.xlu0 1
      %701 = vperm.xlu0 %700, %v679
      %v702 = vpop.permute.xlu0 %701
      %v704 = vmul.f32 %v702, %v392
      %705 = vset.pattern.permute.xlu0 1
      %706 = vperm.xlu0 %705, %v680
      %v707 = vpop.permute.xlu0 %706
      %v709 = vmul.f32 %v707, %v319
      %v710 = vadd.f32 %v704, %v709
      %711 = vset.pattern.permute.xlu0 1
      %712 = vperm.xlu0 %711, %v672
      %v713 = vpop.permute.xlu0 %712
      %v715 = vmul.f32 %v713, %v710
      %716 = vset.pattern.permute.xlu0 2
      %717 = vperm.xlu0 %716, %v679
      %v718 = vpop.permute.xlu0 %717
      %v720 = vmul.f32 %v718, %v392
      %721 = vset.pattern.permute.xlu0 2
      %722 = vperm.xlu0 %721, %v680
      %v723 = vpop.permute.xlu0 %722
      %v725 = vmul.f32 %v723, %v319
      %v726 = vadd.f32 %v720, %v725
      %727 = vset.pattern.permute.xlu0 2
      %728 = vperm.xlu0 %727, %v672
      %v729 = vpop.permute.xlu0 %728
      %v731 = vmul.f32 %v729, %v726
      %732 = vset.pattern.permute.xlu0 3
      %733 = vperm.xlu0 %732, %v679
      %v734 = vpop.permute.xlu0 %733
      %v736 = vmul.f32 %v734, %v392
      %737 = vset.pattern.permute.xlu0 3
      %738 = vperm.xlu0 %737, %v680
      %v739 = vpop.permute.xlu0 %738
      %v741 = vmul.f32 %v739, %v319
      %v742 = vadd.f32 %v736, %v741
      %743 = vset.pattern.permute.xlu0 3
      %744 = vperm.xlu0 %743, %v672
      %v745 = vpop.permute.xlu0 %744
      %v747 = vmul.f32 %v745, %v742
      %749 = vrot.lane.b32.xlu0 %v699, 112
      %v750 = vpop.permute.xlu0 %749
      %753 = vrot.lane.b32.xlu0 %v715, 16
      %v754 = vpop.permute.xlu0 %753
      %757 = vrot.lane.b32.xlu0 %v731, 48
      %v758 = vpop.permute.xlu0 %757
      %761 = vrot.lane.b32.xlu0 %v747, 80
      %v762 = vpop.permute.xlu0 %761
      %v764 = vsel %vm321, %v750, %v754
      %v765 = vsel %vm411, %v764, %v758
      %vm766 = vcmask 785408
      %v767 = vsel %vm766, %v765, %v762
      %v768 = vld [vmem:[%s5] sm:$0xff]
      %v769 = vld [vmem:[%s5 + $0x8] sm:$0xff]
      %v770 = vld [vmem:[%s5 + $0x10] sm:$0xff]
      %v771 = vld [vmem:[%s5 + $0x18] sm:$0xff]
      %v772 = vld [vmem:[%s5 + $0x20] sm:$0xff]
      %v773 = vld [vmem:[%s5 + $0x28] sm:$0xff]
      %v774 = vld [vmem:[%s5 + $0x30] sm:$0xff]
      %v775 = vld [vmem:[%s5 + $0x38] sm:$0xff]
      %v776 = vld [vmem:[%s5 + $0x40] sm:$0xff]
      %v777 = vld [vmem:[%s5 + $0x48] sm:$0xff]
      %v778 = vld [vmem:[%s5 + $0x50] sm:$0xff]
      %v779 = vld [vmem:[%s5 + $0x58] sm:$0xff]
      %v780 = vld [vmem:[%s5 + $0x60] sm:$0xff]
      %v781 = vld [vmem:[%s5 + $0x68] sm:$0xff]
      %v782 = vld [vmem:[%s5 + $0x70] sm:$0xff]
      %v783 = vld [vmem:[%s5 + $0x78] sm:$0xff]
      %v784 = vld [vmem:[%s5 + $0x80] sm:$0xff]
      %v785 = vld [vmem:[%s5 + $0x88] sm:$0xff]
      %v786 = vld [vmem:[%s5 + $0x90] sm:$0xff]
      %v787 = vld [vmem:[%s5 + $0x98] sm:$0xff]
      %v788 = vld [vmem:[%s5 + $0xa0] sm:$0xff]
      %v789 = vld [vmem:[%s5 + $0xa8] sm:$0xff]
      %v790 = vld [vmem:[%s5 + $0xb0] sm:$0xff]
      %v791 = vld [vmem:[%s5 + $0xb8] sm:$0xff]
      %v792 = vld [vmem:[%s5 + $0xc0] sm:$0xff]
      %v793 = vld [vmem:[%s5 + $0xc8] sm:$0xff]
      %v794 = vld [vmem:[%s5 + $0xd0] sm:$0xff]
      %v795 = vld [vmem:[%s5 + $0xd8] sm:$0xff]
      %v796 = vld [vmem:[%s5 + $0xe0] sm:$0xff]
      %v797 = vld [vmem:[%s5 + $0xe8] sm:$0xff]
      %v798 = vld [vmem:[%s5 + $0xf0] sm:$0xff]
      %v799 = vld [vmem:[%s5 + $0xf8] sm:$0xff]
      %800 = vmatprep.subr.mxu0 %v799
      %801 = vmatpush1.msra.mxu0 %v798
      %802 = vmatprep.subr.mxu0 %v797
      %803 = vmatpush1.msra.mxu0 %v796
      %804 = vmatprep.subr.mxu0 %v795
      %805 = vmatpush1.msra.mxu0 %v794
      %806 = vmatprep.subr.mxu0 %v793
      %807 = vmatpush1.msra.mxu0 %v792
      %808 = vmatprep.subr.mxu0 %v791
      %809 = vmatpush1.msra.mxu0 %v790
      %810 = vmatprep.subr.mxu0 %v789
      %811 = vmatpush1.msra.mxu0 %v788
      %812 = vmatprep.subr.mxu0 %v787
      %813 = vmatpush1.msra.mxu0 %v786
      %814 = vmatprep.subr.mxu0 %v785
      %815 = vmatpush1.msra.mxu0 %v784
      %816 = vmatprep.subr.mxu0 %v783
      %817 = vmatpush1.msra.mxu0 %v782
      %818 = vmatprep.subr.mxu0 %v781
      %819 = vmatpush1.msra.mxu0 %v780
      %820 = vmatprep.subr.mxu0 %v779
      %821 = vmatpush1.msra.mxu0 %v778
      %822 = vmatprep.subr.mxu0 %v777
      %823 = vmatpush1.msra.mxu0 %v776
      %824 = vmatprep.subr.mxu0 %v775
      %825 = vmatpush1.msra.mxu0 %v774
      %826 = vmatprep.subr.mxu0 %v773
      %827 = vmatpush1.msra.mxu0 %v772
      %828 = vmatprep.subr.mxu0 %v771
      %829 = vmatpush1.msra.mxu0 %v770
      %830 = vmatprep.subr.mxu0 %v769
      %831 = vmatpush1.msra.mxu0 %v768
      %832 = vmatprep.subr.mxu0 0.0
      %833 = vmatpush2.msra.mxu0 0.0
      %834 = vmatprep.subr.mxu0 0.0
      %835 = vmatpush2.msra.mxu0 0.0
      %836 = vmatprep.subr.mxu0 0.0
      %837 = vmatpush2.msra.mxu0 0.0
      %838 = vmatprep.subr.mxu0 0.0
      %839 = vmatpush2.msra.mxu0 0.0
      %840 = vmatprep.subr.mxu0 0.0
      %841 = vmatpush2.msra.mxu0 0.0
      %842 = vmatprep.subr.mxu0 0.0
      %843 = vmatpush2.msra.mxu0 0.0
      %844 = vmatprep.subr.mxu0 0.0
      %845 = vmatpush2.msra.mxu0 0.0
      %846 = vmatprep.subr.mxu0 0.0
      %847 = vmatpush2.msra.mxu0 0.0
      %848 = vmatprep.subr.mxu0 0.0
      %849 = vmatpush2.msra.mxu0 0.0
      %850 = vmatprep.subr.mxu0 0.0
      %851 = vmatpush2.msra.mxu0 0.0
      %852 = vmatprep.subr.mxu0 0.0
      %853 = vmatpush2.msra.mxu0 0.0
      %854 = vmatprep.subr.mxu0 0.0
      %855 = vmatpush2.msra.mxu0 0.0
      %856 = vmatprep.subr.mxu0 0.0
      %857 = vmatpush2.msra.mxu0 0.0
      %858 = vmatprep.subr.mxu0 0.0
      %859 = vmatpush2.msra.mxu0 0.0
      %860 = vmatprep.subr.mxu0 0.0
      %861 = vmatpush2.msra.mxu0 0.0
      %862 = vmatprep.subr.mxu0 0.0
      %863 = vmatpush2.msra.mxu0 0.0
      %864 = vmatprep.mubr.f32.mxu0 0.0
      %865 = vmatmul.mubr.f32.gmra.mxu0 %v767
      %v866 = vpop.f32.mrf.mxu0
      %v867 = vadd.f32 0.0, %v866
      %v868 = vpop.f32.mrf.mxu0
      %v869 = vadd.f32 0.0, %v868
      %870 = vdwg.mxu0
      %872 = vrot.lane.b32.xlu0 %v482, 64
      %v873 = vpop.permute.xlu0 %872
      %v875 = vadd.f32 %v867, %v873
      %v876 = vxor.u32 %v875, 2147483648
      %v877 = vmul.f32 %v876, 1.442695
      %v878 = vpow.pop %v877
      %v879 = vadd.f32 %v878, 1.0
      %v880 = vrcp.pop %v879
      %v881 = vmul.f32 1.0, %v880
      %883 = vrot.lane.b32.xlu0 %v484, 64
      %v884 = vpop.permute.xlu0 %883
      %v886 = vadd.f32 %v867, %v884
      %v887 = vxor.u32 %v886, 2147483648
      %v888 = vmul.f32 %v887, 1.442695
      %v889 = vpow.pop %v888
      %v890 = vadd.f32 %v889, 1.0
      %v891 = vrcp.pop %v890
      %v892 = vmul.f32 1.0, %v891
      %v893 = vmul.f32 %v881, %v884
      %v894 = vadd.f32 %v869, %v893
      %v895 = vtanh.pop %v894
      %v896 = vsub.f32 %v308, %v895
      %898 = vrot.lane.b32.xlu0 %v896, 64
      %v899 = vpop.permute.xlu0 %898
      %v901 = vmul.f32 %v892, %v899
      %903 = vrot.lane.b32.xlu0 %v901, 64
      %v904 = vpop.permute.xlu0 %903
      %v906 = vadd.f32 %v895, %v904
      %v907 = vld [vmem:[%s6] sm:$0xff]
      %v908 = vld [vmem:[%s6 + $0x8] sm:$0xff]
      %v909 = vld [vmem:[%s6 + $0x10] sm:$0xff]
      %v910 = vld [vmem:[%s6 + $0x18] sm:$0xff]
      %v911 = vld [vmem:[%s6 + $0x20] sm:$0xff]
      %v912 = vld [vmem:[%s6 + $0x28] sm:$0xff]
      %v913 = vld [vmem:[%s6 + $0x30] sm:$0xff]
      %v914 = vld [vmem:[%s6 + $0x38] sm:$0xff]
      %v915 = vld [vmem:[%s6 + $0x40] sm:$0xff]
      %v916 = vld [vmem:[%s6 + $0x48] sm:$0xff]
      %v917 = vld [vmem:[%s6 + $0x50] sm:$0xff]
      %v918 = vld [vmem:[%s6 + $0x58] sm:$0xff]
      %v919 = vld [vmem:[%s6 + $0x60] sm:$0xff]
      %v920 = vld [vmem:[%s6 + $0x68] sm:$0xff]
      %v921 = vld [vmem:[%s6 + $0x70] sm:$0xff]
      %v922 = vld [vmem:[%s6 + $0x78] sm:$0xff]
      %v924 = vsel %vm411, %v906, 0
      %926 = vmatprep.subr.mxu0 0.0
      %927 = vmatpush1.msra.mxu0 0.0
      %928 = vmatprep.subr.mxu0 0.0
      %929 = vmatpush1.msra.mxu0 0.0
      %930 = vmatprep.subr.mxu0 0.0
      %931 = vmatpush1.msra.mxu0 0.0
      %932 = vmatprep.subr.mxu0 0.0
      %933 = vmatpush1.msra.mxu0 0.0
      %934 = vmatprep.subr.mxu0 0.0
      %935 = vmatpush1.msra.mxu0 0.0
      %936 = vmatprep.subr.mxu0 0.0
      %937 = vmatpush1.msra.mxu0 0.0
      %938 = vmatprep.subr.mxu0 0.0
      %939 = vmatpush1.msra.mxu0 0.0
      %940 = vmatprep.subr.mxu0 0.0
      %941 = vmatpush1.msra.mxu0 0.0
      %942 = vmatprep.subr.mxu0 %v922
      %943 = vmatpush1.msra.mxu0 %v921
      %944 = vmatprep.subr.mxu0 %v920
      %945 = vmatpush1.msra.mxu0 %v919
      %946 = vmatprep.subr.mxu0 %v918
      %947 = vmatpush1.msra.mxu0 %v917
      %948 = vmatprep.subr.mxu0 %v916
      %949 = vmatpush1.msra.mxu0 %v915
      %950 = vmatprep.subr.mxu0 %v914
      %951 = vmatpush1.msra.mxu0 %v913
      %952 = vmatprep.subr.mxu0 %v912
      %953 = vmatpush1.msra.mxu0 %v911
      %954 = vmatprep.subr.mxu0 %v910
      %955 = vmatpush1.msra.mxu0 %v909
      %956 = vmatprep.subr.mxu0 %v908
      %957 = vmatpush1.msra.mxu0 %v907
      %958 = vmatprep.subr.mxu0 0.0
      %959 = vmatpush2.msra.mxu0 0.0
      %960 = vmatprep.subr.mxu0 0.0
      %961 = vmatpush2.msra.mxu0 0.0
      %962 = vmatprep.subr.mxu0 0.0
      %963 = vmatpush2.msra.mxu0 0.0
      %964 = vmatprep.subr.mxu0 0.0
      %965 = vmatpush2.msra.mxu0 0.0
      %966 = vmatprep.subr.mxu0 0.0
      %967 = vmatpush2.msra.mxu0 0.0
      %968 = vmatprep.subr.mxu0 0.0
      %969 = vmatpush2.msra.mxu0 0.0
      %970 = vmatprep.subr.mxu0 0.0
      %971 = vmatpush2.msra.mxu0 0.0
      %972 = vmatprep.subr.mxu0 0.0
      %973 = vmatpush2.msra.mxu0 0.0
      %974 = vmatprep.subr.mxu0 0.0
      %975 = vmatpush2.msra.mxu0 0.0
      %976 = vmatprep.subr.mxu0 0.0
      %977 = vmatpush2.msra.mxu0 0.0
      %978 = vmatprep.subr.mxu0 0.0
      %979 = vmatpush2.msra.mxu0 0.0
      %980 = vmatprep.subr.mxu0 0.0
      %981 = vmatpush2.msra.mxu0 0.0
      %982 = vmatprep.subr.mxu0 0.0
      %983 = vmatpush2.msra.mxu0 0.0
      %984 = vmatprep.subr.mxu0 0.0
      %985 = vmatpush2.msra.mxu0 0.0
      %986 = vmatprep.subr.mxu0 0.0
      %987 = vmatpush2.msra.mxu0 0.0
      %988 = vmatprep.subr.mxu0 0.0
      %989 = vmatpush2.msra.mxu0 0.0
      %990 = vmatprep.mubr.f32.mxu0 0.0
      %991 = vmatmul.mubr.f32.gmra.mxu0 %v924
      %v992 = vpop.f32.mrf.mxu0
      %v993 = vadd.f32 0.0, %v992
      %v994 = vpop.f32.mrf.mxu0
      %v995 = vadd.f32 0.0, %v994
      %996 = vdwg.mxu0
      %998 = vrot.lane.b32.xlu0 %v993, 64
      %v999 = vpop.permute.xlu0 %998
      %v1001 = vmul.f32 %v993, %v999
      %vm1002 = vcmask 58368
      %v1003 = vsel %vm1002, %v1001, 0.0
      %1004 = vadd.xlane.f32.xlu0 %v1003
      %v1005 = vpop.xlane.xlu0 %1004
      %1006 = vrot.lane.b32.xlu0 %v993, 56
      %v1007 = vpop.permute.xlu0 %1006
      %v1009 = vmul.f32 %v993, %v1007
      %v1010 = vsel %vm1002, %v1009, 0.0
      %1011 = vadd.xlane.f32.xlu0 %v1010
      %v1012 = vpop.xlane.xlu0 %1011
      %1013 = vrot.lane.b32.xlu0 %v993, 48
      %v1014 = vpop.permute.xlu0 %1013
      %v1016 = vmul.f32 %v993, %v1014
      %v1017 = vsel %vm1002, %v1016, 0.0
      %1018 = vadd.xlane.f32.xlu0 %v1017
      %v1019 = vpop.xlane.xlu0 %1018
      %1020 = vrot.lane.b32.xlu0 %v993, 40
      %v1021 = vpop.permute.xlu0 %1020
      %v1023 = vmul.f32 %v993, %v1021
      %v1024 = vsel %vm1002, %v1023, 0.0
      %1025 = vadd.xlane.f32.xlu0 %v1024
      %v1026 = vpop.xlane.xlu0 %1025
      %v1027 = vsel %vm562, %v1005, %v1012
      %v1028 = vsel %vm564, %v1027, %v1019
      %v1029 = vsel %vm566, %v1028, %v1026
      %v1030 = vmul.f32 %v1029, 0.35355338
      %vm1031 = vcmask 25600
      %v1032 = vsel %vm1031, %v1030, -inf
      %1033 = vmax.xlane.f32.xlu0 %v1032
      %v1034 = vpop.xlane.xlu0 %1033
      %v1035 = vsub.f32 %v1030, %v1034
      %v1036 = vmul.f32 %v1035, 1.442695
      %v1037 = vpow.pop %v1036
      %v1038 = vsel %vm1031, %v1037, 0.0
      %1039 = vadd.xlane.f32.xlu0 %v1038
      %v1040 = vpop.xlane.xlu0 %1039
      %v1041 = vrcp.pop %v1040
      %v1042 = vmul.f32 %v1037, %v1041
      %v1043 = vmul.f32 %v1042, %v697
      %1045 = vset.pattern.permute.xlu0 0
      %1046 = vperm.xlu0 %1045, %v1043
      %v1047 = vpop.permute.xlu0 %1046
      %v1049 = vmul.f32 %v1047, %v995
      %1050 = vset.pattern.permute.xlu0 1
      %1051 = vperm.xlu0 %1050, %v1043
      %v1052 = vpop.permute.xlu0 %1051
      %v1054 = vmul.f32 %v1052, %v995
      %1056 = vrot.lane.b32.xlu0 %v1054, 112
      %v1057 = vpop.permute.xlu0 %1056
      %v1059 = vadd.f32 %v1049, %v1057
      %1060 = vset.pattern.permute.xlu0 2
      %1061 = vperm.xlu0 %1060, %v1043
      %v1062 = vpop.permute.xlu0 %1061
      %v1064 = vmul.f32 %v1062, %v995
      %1066 = vrot.lane.b32.xlu0 %v1064, 96
      %v1067 = vpop.permute.xlu0 %1066
      %v1069 = vadd.f32 %v1059, %v1067
      %1070 = vset.pattern.permute.xlu0 3
      %1071 = vperm.xlu0 %1070, %v1043
      %v1072 = vpop.permute.xlu0 %1071
      %v1074 = vmul.f32 %v1072, %v995
      %1076 = vrot.lane.b32.xlu0 %v1074, 80
      %v1077 = vpop.permute.xlu0 %1076
      %v1079 = vadd.f32 %v1069, %v1077
      %1080 = vrot.lane.b32.xlu0 %v993, 72
      %v1081 = vpop.permute.xlu0 %1080
      %v1083 = vmul.f32 %v993, %v1081
      %1085 = vrot.lane.b32.xlu0 %v1083, 120
      %v1086 = vpop.permute.xlu0 %1085
      %v1088 = vsel %vm1002, %v1086, 0.0
      %1089 = vadd.xlane.f32.xlu0 %v1088
      %v1090 = vpop.xlane.xlu0 %1089
      %1092 = vrot.lane.b32.xlu0 %v1001, 120
      %v1093 = vpop.permute.xlu0 %1092
      %v1095 = vsel %vm1002, %v1093, 0.0
      %1096 = vadd.xlane.f32.xlu0 %v1095
      %v1097 = vpop.xlane.xlu0 %1096
      %1099 = vrot.lane.b32.xlu0 %v1009, 120
      %v1100 = vpop.permute.xlu0 %1099
      %v1102 = vsel %vm1002, %v1100, 0.0
      %1103 = vadd.xlane.f32.xlu0 %v1102
      %v1104 = vpop.xlane.xlu0 %1103
      %1106 = vrot.lane.b32.xlu0 %v1016, 120
      %v1107 = vpop.permute.xlu0 %1106
      %v1109 = vsel %vm1002, %v1107, 0.0
      %1110 = vadd.xlane.f32.xlu0 %v1109
      %v1111 = vpop.xlane.xlu0 %1110
      %v1112 = vsel %vm562, %v1090, %v1097
      %v1113 = vsel %vm564, %v1112, %v1104
      %v1114 = vsel %vm566, %v1113, %v1111
      %v1115 = vmul.f32 %v1114, 0.35355338
      %v1116 = vsel %vm1031, %v1115, -inf
      %1117 = vmax.xlane.f32.xlu0 %v1116
      %v1118 = vpop.xlane.xlu0 %1117
      %v1119 = vsub.f32 %v1115, %v1118
      %v1120 = vmul.f32 %v1119, 1.442695
      %v1121 = vpow.pop %v1120
      %v1122 = vsel %vm1031, %v1121, 0.0
      %1123 = vadd.xlane.f32.xlu0 %v1122
      %v1124 = vpop.xlane.xlu0 %1123
      %v1125 = vrcp.pop %v1124
      %v1126 = vmul.f32 %v1121, %v1125
      %v1127 = vmul.f32 %v1126, %v713
      %1129 = vset.pattern.permute.xlu0 0
      %1130 = vperm.xlu0 %1129, %v1127
      %v1131 = vpop.permute.xlu0 %1130
      %v1133 = vmul.f32 %v1131, %v995
      %1134 = vset.pattern.permute.xlu0 1
      %1135 = vperm.xlu0 %1134, %v1127
      %v1136 = vpop.permute.xlu0 %1135
      %v1138 = vmul.f32 %v1136, %v995
      %1140 = vrot.lane.b32.xlu0 %v1138, 112
      %v1141 = vpop.permute.xlu0 %1140
      %v1143 = vadd.f32 %v1133, %v1141
      %1144 = vset.pattern.permute.xlu0 2
      %1145 = vperm.xlu0 %1144, %v1127
      %v1146 = vpop.permute.xlu0 %1145
      %v1148 = vmul.f32 %v1146, %v995
      %1150 = vrot.lane.b32.xlu0 %v1148, 96
      %v1151 = vpop.permute.xlu0 %1150
      %v1153 = vadd.f32 %v1143, %v1151
      %1154 = vset.pattern.permute.xlu0 3
      %1155 = vperm.xlu0 %1154, %v1127
      %v1156 = vpop.permute.xlu0 %1155
      %v1158 = vmul.f32 %v1156, %v995
      %1160 = vrot.lane.b32.xlu0 %v1158, 80
      %v1161 = vpop.permute.xlu0 %1160
      %v1163 = vadd.f32 %v1153, %v1161
      %1164 = vrot.lane.b32.xlu0 %v993, 80
      %v1165 = vpop.permute.xlu0 %1164
      %v1167 = vmul.f32 %v993, %v1165
      %1169 = vrot.lane.b32.xlu0 %v1167, 112
      %v1170 = vpop.permute.xlu0 %1169
      %v1172 = vsel %vm1002, %v1170, 0.0
      %1173 = vadd.xlane.f32.xlu0 %v1172
      %v1174 = vpop.xlane.xlu0 %1173
      %1175 = vrot.lane.b32.xlu0 %v1083, 112
      %v1176 = vpop.permute.xlu0 %1175
      %v1178 = vsel %vm1002, %v1176, 0.0
      %1179 = vadd.xlane.f32.xlu0 %v1178
      %v1180 = vpop.xlane.xlu0 %1179
      %1181 = vrot.lane.b32.xlu0 %v1001, 112
      %v1182 = vpop.permute.xlu0 %1181
      %v1184 = vsel %vm1002, %v1182, 0.0
      %1185 = vadd.xlane.f32.xlu0 %v1184
      %v1186 = vpop.xlane.xlu0 %1185
      %1187 = vrot.lane.b32.xlu0 %v1009, 112
      %v1188 = vpop.permute.xlu0 %1187
      %v1190 = vsel %vm1002, %v1188, 0.0
      %1191 = vadd.xlane.f32.xlu0 %v1190
      %v1192 = vpop.xlane.xlu0 %1191
      %v1193 = vsel %vm562, %v1174, %v1180
      %v1194 = vsel %vm564, %v1193, %v1186
      %v1195 = vsel %vm566, %v1194, %v1192
      %v1196 = vmul.f32 %v1195, 0.35355338
      %v1197 = vsel %vm1031, %v1196, -inf
      %1198 = vmax.xlane.f32.xlu0 %v1197
      %v1199 = vpop.xlane.xlu0 %1198
      %v1200 = vsub.f32 %v1196, %v1199
      %v1201 = vmul.f32 %v1200, 1.442695
      %v1202 = vpow.pop %v1201
      %v1203 = vsel %vm1031, %v1202, 0.0
      %1204 = vadd.xlane.f32.xlu0 %v1203
      %v1205 = vpop.xlane.xlu0 %1204
      %v1206 = vrcp.pop %v1205
      %v1207 = vmul.f32 %v1202, %v1206
      %v1208 = vmul.f32 %v1207, %v729
      %1210 = vset.pattern.permute.xlu0 0
      %1211 = vperm.xlu0 %1210, %v1208
      %v1212 = vpop.permute.xlu0 %1211
      %v1214 = vmul.f32 %v1212, %v995
      %1215 = vset.pattern.permute.xlu0 1
      %1216 = vperm.xlu0 %1215, %v1208
      %v1217 = vpop.permute.xlu0 %1216
      %v1219 = vmul.f32 %v1217, %v995
      %1221 = vrot.lane.b32.xlu0 %v1219, 112
      %v1222 = vpop.permute.xlu0 %1221
      %v1224 = vadd.f32 %v1214, %v1222
      %1225 = vset.pattern.permute.xlu0 2
      %1226 = vperm.xlu0 %1225, %v1208
      %v1227 = vpop.permute.xlu0 %1226
      %v1229 = vmul.f32 %v1227, %v995
      %1231 = vrot.lane.b32.xlu0 %v1229, 96
      %v1232 = vpop.permute.xlu0 %1231
      %v1234 = vadd.f32 %v1224, %v1232
      %1235 = vset.pattern.permute.xlu0 3
      %1236 = vperm.xlu0 %1235, %v1208
      %v1237 = vpop.permute.xlu0 %1236
      %v1239 = vmul.f32 %v1237, %v995
      %1241 = vrot.lane.b32.xlu0 %v1239, 80
      %v1242 = vpop.permute.xlu0 %1241
      %v1244 = vadd.f32 %v1234, %v1242
      %1245 = vrot.lane.b32.xlu0 %v993, 88
      %v1246 = vpop.permute.xlu0 %1245
      %v1248 = vmul.f32 %v993, %v1246
      %1250 = vrot.lane.b32.xlu0 %v1248, 104
      %v1251 = vpop.permute.xlu0 %1250
      %v1253 = vsel %vm1002, %v1251, 0.0
      %1254 = vadd.xlane.f32.xlu0 %v1253
      %v1255 = vpop.xlane.xlu0 %1254
      %1256 = vrot.lane.b32.xlu0 %v1167, 104
      %v1257 = vpop.permute.xlu0 %1256
      %v1259 = vsel %vm1002, %v1257, 0.0
      %1260 = vadd.xlane.f32.xlu0 %v1259
      %v1261 = vpop.xlane.xlu0 %1260
      %1262 = vrot.lane.b32.xlu0 %v1083, 104
      %v1263 = vpop.permute.xlu0 %1262
      %v1265 = vsel %vm1002, %v1263, 0.0
      %1266 = vadd.xlane.f32.xlu0 %v1265
      %v1267 = vpop.xlane.xlu0 %1266
      %1268 = vrot.lane.b32.xlu0 %v1001, 104
      %v1269 = vpop.permute.xlu0 %1268
      %v1271 = vsel %vm1002, %v1269, 0.0
      %1272 = vadd.xlane.f32.xlu0 %v1271
      %v1273 = vpop.xlane.xlu0 %1272
      %v1274 = vsel %vm562, %v1255, %v1261
      %v1275 = vsel %vm564, %v1274, %v1267
      %v1276 = vsel %vm566, %v1275, %v1273
      %v1277 = vmul.f32 %v1276, 0.35355338
      %v1278 = vsel %vm1031, %v1277, -inf
      %1279 = vmax.xlane.f32.xlu0 %v1278
      %v1280 = vpop.xlane.xlu0 %1279
      %v1281 = vsub.f32 %v1277, %v1280
      %v1282 = vmul.f32 %v1281, 1.442695
      %v1283 = vpow.pop %v1282
      %v1284 = vsel %vm1031, %v1283, 0.0
      %1285 = vadd.xlane.f32.xlu0 %v1284
      %v1286 = vpop.xlane.xlu0 %1285
      %v1287 = vrcp.pop %v1286
      %v1288 = vmul.f32 %v1283, %v1287
      %v1289 = vmul.f32 %v1288, %v745
      %1291 = vset.pattern.permute.xlu0 0
      %1292 = vperm.xlu0 %1291, %v1289
      %v1293 = vpop.permute.xlu0 %1292
      %v1295 = vmul.f32 %v1293, %v995
      %1296 = vset.pattern.permute.xlu0 1
      %1297 = vperm.xlu0 %1296, %v1289
      %v1298 = vpop.permute.xlu0 %1297
      %v1300 = vmul.f32 %v1298, %v995
      %1302 = vrot.lane.b32.xlu0 %v1300, 112
      %v1303 = vpop.permute.xlu0 %1302
      %v1305 = vadd.f32 %v1295, %v1303
      %1306 = vset.pattern.permute.xlu0 2
      %1307 = vperm.xlu0 %1306, %v1289
      %v1308 = vpop.permute.xlu0 %1307
      %v1310 = vmul.f32 %v1308, %v995
      %1312 = vrot.lane.b32.xlu0 %v1310, 96
      %v1313 = vpop.permute.xlu0 %1312
      %v1315 = vadd.f32 %v1305, %v1313
      %1316 = vset.pattern.permute.xlu0 3
      %1317 = vperm.xlu0 %1316, %v1289
      %v1318 = vpop.permute.xlu0 %1317
      %v1320 = vmul.f32 %v1318, %v995
      %1322 = vrot.lane.b32.xlu0 %v1320, 80
      %v1323 = vpop.permute.xlu0 %1322
      %v1325 = vadd.f32 %v1315, %v1323
      %1326 = vrot.lane.b32.xlu0 %v1001, 96
      %v1327 = vpop.permute.xlu0 %1326
      %v1329 = vsel %vm1002, %v1327, 0.0
      %1330 = vadd.xlane.f32.xlu0 %v1329
      %v1331 = vpop.xlane.xlu0 %1330
      %1332 = vrot.lane.b32.xlu0 %v1009, 96
      %v1333 = vpop.permute.xlu0 %1332
      %v1335 = vsel %vm1002, %v1333, 0.0
      %1336 = vadd.xlane.f32.xlu0 %v1335
      %v1337 = vpop.xlane.xlu0 %1336
      %1338 = vrot.lane.b32.xlu0 %v1016, 96
      %v1339 = vpop.permute.xlu0 %1338
      %v1341 = vsel %vm1002, %v1339, 0.0
      %1342 = vadd.xlane.f32.xlu0 %v1341
      %v1343 = vpop.xlane.xlu0 %1342
      %1345 = vrot.lane.b32.xlu0 %v1023, 96
      %v1346 = vpop.permute.xlu0 %1345
      %v1348 = vsel %vm1002, %v1346, 0.0
      %1349 = vadd.xlane.f32.xlu0 %v1348
      %v1350 = vpop.xlane.xlu0 %1349
      %v1351 = vsel %vm562, %v1331, %v1337
      %v1352 = vsel %vm564, %v1351, %v1343
      %v1353 = vsel %vm566, %v1352, %v1350
      %v1354 = vmul.f32 %v1353, 0.35355338
      %v1355 = vsel %vm1031, %v1354, -inf
      %1356 = vmax.xlane.f32.xlu0 %v1355
      %v1357 = vpop.xlane.xlu0 %1356
      %v1358 = vsub.f32 %v1354, %v1357
      %v1359 = vmul.f32 %v1358, 1.442695
      %v1360 = vpow.pop %v1359
      %v1361 = vsel %vm1031, %v1360, 0.0
      %1362 = vadd.xlane.f32.xlu0 %v1361
      %v1363 = vpop.xlane.xlu0 %1362
      %v1364 = vrcp.pop %v1363
      %v1365 = vmul.f32 %v1360, %v1364
      %v1366 = vmul.f32 %v1365, %v697
      %1368 = vset.pattern.permute.xlu0 0
      %1369 = vperm.xlu0 %1368, %v1366
      %v1370 = vpop.permute.xlu0 %1369
      %v1372 = vmul.f32 %v1370, %v995
      %1373 = vset.pattern.permute.xlu0 1
      %1374 = vperm.xlu0 %1373, %v1366
      %v1375 = vpop.permute.xlu0 %1374
      %v1377 = vmul.f32 %v1375, %v995
      %1379 = vrot.lane.b32.xlu0 %v1377, 112
      %v1380 = vpop.permute.xlu0 %1379
      %v1382 = vadd.f32 %v1372, %v1380
      %1383 = vset.pattern.permute.xlu0 2
      %1384 = vperm.xlu0 %1383, %v1366
      %v1385 = vpop.permute.xlu0 %1384
      %v1387 = vmul.f32 %v1385, %v995
      %1389 = vrot.lane.b32.xlu0 %v1387, 96
      %v1390 = vpop.permute.xlu0 %1389
      %v1392 = vadd.f32 %v1382, %v1390
      %1393 = vset.pattern.permute.xlu0 3
      %1394 = vperm.xlu0 %1393, %v1366
      %v1395 = vpop.permute.xlu0 %1394
      %v1397 = vmul.f32 %v1395, %v995
      %1399 = vrot.lane.b32.xlu0 %v1397, 80
      %v1400 = vpop.permute.xlu0 %1399
      %v1402 = vadd.f32 %v1392, %v1400
      %1403 = vrot.lane.b32.xlu0 %v1083, 88
      %v1404 = vpop.permute.xlu0 %1403
      %v1406 = vsel %vm1002, %v1404, 0.0
      %1407 = vadd.xlane.f32.xlu0 %v1406
      %v1408 = vpop.xlane.xlu0 %1407
      %1409 = vrot.lane.b32.xlu0 %v1001, 88
      %v1410 = vpop.permute.xlu0 %1409
      %v1412 = vsel %vm1002, %v1410, 0.0
      %1413 = vadd.xlane.f32.xlu0 %v1412
      %v1414 = vpop.xlane.xlu0 %1413
      %1415 = vrot.lane.b32.xlu0 %v1009, 88
      %v1416 = vpop.permute.xlu0 %1415
      %v1418 = vsel %vm1002, %v1416, 0.0
      %1419 = vadd.xlane.f32.xlu0 %v1418
      %v1420 = vpop.xlane.xlu0 %1419
      %1421 = vrot.lane.b32.xlu0 %v1016, 88
      %v1422 = vpop.permute.xlu0 %1421
      %v1424 = vsel %vm1002, %v1422, 0.0
      %1425 = vadd.xlane.f32.xlu0 %v1424
      %v1426 = vpop.xlane.xlu0 %1425
      %v1427 = vsel %vm562, %v1408, %v1414
      %v1428 = vsel %vm564, %v1427, %v1420
      %v1429 = vsel %vm566, %v1428, %v1426
      %v1430 = vmul.f32 %v1429, 0.35355338
      %v1431 = vsel %vm1031, %v1430, -inf
      %1432 = vmax.xlane.f32.xlu0 %v1431
      %v1433 = vpop.xlane.xlu0 %1432
      %v1434 = vsub.f32 %v1430, %v1433
      %v1435 = vmul.f32 %v1434, 1.442695
      %v1436 = vpow.pop %v1435
      %v1437 = vsel %vm1031, %v1436, 0.0
      %1438 = vadd.xlane.f32.xlu0 %v1437
      %v1439 = vpop.xlane.xlu0 %1438
      %v1440 = vrcp.pop %v1439
      %v1441 = vmul.f32 %v1436, %v1440
      %v1442 = vmul.f32 %v1441, %v713
      %1444 = vset.pattern.permute.xlu0 0
      %1445 = vperm.xlu0 %1444, %v1442
      %v1446 = vpop.permute.xlu0 %1445
      %v1448 = vmul.f32 %v1446, %v995
      %1449 = vset.pattern.permute.xlu0 1
      %1450 = vperm.xlu0 %1449, %v1442
      %v1451 = vpop.permute.xlu0 %1450
      %v1453 = vmul.f32 %v1451, %v995
      %1455 = vrot.lane.b32.xlu0 %v1453, 112
      %v1456 = vpop.permute.xlu0 %1455
      %v1458 = vadd.f32 %v1448, %v1456
      %1459 = vset.pattern.permute.xlu0 2
      %1460 = vperm.xlu0 %1459, %v1442
      %v1461 = vpop.permute.xlu0 %1460
      %v1463 = vmul.f32 %v1461, %v995
      %1465 = vrot.lane.b32.xlu0 %v1463, 96
      %v1466 = vpop.permute.xlu0 %1465
      %v1468 = vadd.f32 %v1458, %v1466
      %1469 = vset.pattern.permute.xlu0 3
      %1470 = vperm.xlu0 %1469, %v1442
      %v1471 = vpop.permute.xlu0 %1470
      %v1473 = vmul.f32 %v1471, %v995
      %1475 = vrot.lane.b32.xlu0 %v1473, 80
      %v1476 = vpop.permute.xlu0 %1475
      %v1478 = vadd.f32 %v1468, %v1476
      %1479 = vrot.lane.b32.xlu0 %v1167, 80
      %v1480 = vpop.permute.xlu0 %1479
      %v1482 = vsel %vm1002, %v1480, 0.0
      %1483 = vadd.xlane.f32.xlu0 %v1482
      %v1484 = vpop.xlane.xlu0 %1483
      %1485 = vrot.lane.b32.xlu0 %v1083, 80
      %v1486 = vpop.permute.xlu0 %1485
      %v1488 = vsel %vm1002, %v1486, 0.0
      %1489 = vadd.xlane.f32.xlu0 %v1488
      %v1490 = vpop.xlane.xlu0 %1489
      %1491 = vrot.lane.b32.xlu0 %v1001, 80
      %v1492 = vpop.permute.xlu0 %1491
      %v1494 = vsel %vm1002, %v1492, 0.0
      %1495 = vadd.xlane.f32.xlu0 %v1494
      %v1496 = vpop.xlane.xlu0 %1495
      %1497 = vrot.lane.b32.xlu0 %v1009, 80
      %v1498 = vpop.permute.xlu0 %1497
      %v1500 = vsel %vm1002, %v1498, 0.0
      %1501 = vadd.xlane.f32.xlu0 %v1500
      %v1502 = vpop.xlane.xlu0 %1501
      %v1503 = vsel %vm562, %v1484, %v1490
      %v1504 = vsel %vm564, %v1503, %v1496
      %v1505 = vsel %vm566, %v1504, %v1502
      %v1506 = vmul.f32 %v1505, 0.35355338
      %v1507 = vsel %vm1031, %v1506, -inf
      %1508 = vmax.xlane.f32.xlu0 %v1507
      %v1509 = vpop.xlane.xlu0 %1508
      %v1510 = vsub.f32 %v1506, %v1509
      %v1511 = vmul.f32 %v1510, 1.442695
      %v1512 = vpow.pop %v1511
      %v1513 = vsel %vm1031, %v1512, 0.0
      %1514 = vadd.xlane.f32.xlu0 %v1513
      %v1515 = vpop.xlane.xlu0 %1514
      %v1516 = vrcp.pop %v1515
      %v1517 = vmul.f32 %v1512, %v1516
      %v1518 = vmul.f32 %v1517, %v729
      %1520 = vset.pattern.permute.xlu0 0
      %1521 = vperm.xlu0 %1520, %v1518
      %v1522 = vpop.permute.xlu0 %1521
      %v1524 = vmul.f32 %v1522, %v995
      %1525 = vset.pattern.permute.xlu0 1
      %1526 = vperm.xlu0 %1525, %v1518
      %v1527 = vpop.permute.xlu0 %1526
      %v1529 = vmul.f32 %v1527, %v995
      %1531 = vrot.lane.b32.xlu0 %v1529, 112
      %v1532 = vpop.permute.xlu0 %1531
      %v1534 = vadd.f32 %v1524, %v1532
      %1535 = vset.pattern.permute.xlu0 2
      %1536 = vperm.xlu0 %1535, %v1518
      %v1537 = vpop.permute.xlu0 %1536
      %v1539 = vmul.f32 %v1537, %v995
      %1541 = vrot.lane.b32.xlu0 %v1539, 96
      %v1542 = vpop.permute.xlu0 %1541
      %v1544 = vadd.f32 %v1534, %v1542
      %1545 = vset.pattern.permute.xlu0 3
      %1546 = vperm.xlu0 %1545, %v1518
      %v1547 = vpop.permute.xlu0 %1546
      %v1549 = vmul.f32 %v1547, %v995
      %1551 = vrot.lane.b32.xlu0 %v1549, 80
      %v1552 = vpop.permute.xlu0 %1551
      %v1554 = vadd.f32 %v1544, %v1552
      %1555 = vrot.lane.b32.xlu0 %v1248, 72
      %v1556 = vpop.permute.xlu0 %1555
      %v1558 = vsel %vm1002, %v1556, 0.0
      %1559 = vadd.xlane.f32.xlu0 %v1558
      %v1560 = vpop.xlane.xlu0 %1559
      %1561 = vrot.lane.b32.xlu0 %v1167, 72
      %v1562 = vpop.permute.xlu0 %1561
      %v1564 = vsel %vm1002, %v1562, 0.0
      %1565 = vadd.xlane.f32.xlu0 %v1564
      %v1566 = vpop.xlane.xlu0 %1565
      %1567 = vrot.lane.b32.xlu0 %v1083, 72
      %v1568 = vpop.permute.xlu0 %1567
      %v1570 = vsel %vm1002, %v1568, 0.0
      %1571 = vadd.xlane.f32.xlu0 %v1570
      %v1572 = vpop.xlane.xlu0 %1571
      %1573 = vrot.lane.b32.xlu0 %v1001, 72
      %v1574 = vpop.permute.xlu0 %1573
      %v1576 = vsel %vm1002, %v1574, 0.0
      %1577 = vadd.xlane.f32.xlu0 %v1576
      %v1578 = vpop.xlane.xlu0 %1577
      %v1579 = vsel %vm562, %v1560, %v1566
      %v1580 = vsel %vm564, %v1579, %v1572
      %v1581 = vsel %vm566, %v1580, %v1578
      %v1582 = vmul.f32 %v1581, 0.35355338
      %v1583 = vsel %vm1031, %v1582, -inf
      %1584 = vmax.xlane.f32.xlu0 %v1583
      %v1585 = vpop.xlane.xlu0 %1584
      %v1586 = vsub.f32 %v1582, %v1585
      %v1587 = vmul.f32 %v1586, 1.442695
      %v1588 = vpow.pop %v1587
      %v1589 = vsel %vm1031, %v1588, 0.0
      %1590 = vadd.xlane.f32.xlu0 %v1589
      %v1591 = vpop.xlane.xlu0 %1590
      %v1592 = vrcp.pop %v1591
      %v1593 = vmul.f32 %v1588, %v1592
      %v1594 = vmul.f32 %v1593, %v745
      %1596 = vset.pattern.permute.xlu0 0
      %1597 = vperm.xlu0 %1596, %v1594
      %v1598 = vpop.permute.xlu0 %1597
      %v1600 = vmul.f32 %v1598, %v995
      %1601 = vset.pattern.permute.xlu0 1
      %1602 = vperm.xlu0 %1601, %v1594
      %v1603 = vpop.permute.xlu0 %1602
      %v1605 = vmul.f32 %v1603, %v995
      %1607 = vrot.lane.b32.xlu0 %v1605, 112
      %v1608 = vpop.permute.xlu0 %1607
      %v1610 = vadd.f32 %v1600, %v1608
      %1611 = vset.pattern.permute.xlu0 2
      %1612 = vperm.xlu0 %1611, %v1594
      %v1613 = vpop.permute.xlu0 %1612
      %v1615 = vmul.f32 %v1613, %v995
      %1617 = vrot.lane.b32.xlu0 %v1615, 96
      %v1618 = vpop.permute.xlu0 %1617
      %v1620 = vadd.f32 %v1610, %v1618
      %1621 = vset.pattern.permute.xlu0 3
      %1622 = vperm.xlu0 %1621, %v1594
      %v1623 = vpop.permute.xlu0 %1622
      %v1625 = vmul.f32 %v1623, %v995
      %1627 = vrot.lane.b32.xlu0 %v1625, 80
      %v1628 = vpop.permute.xlu0 %1627
      %v1630 = vadd.f32 %v1620, %v1628
      %1632 = vrot.lane.b32.xlu0 %v1163, 16
      %v1633 = vpop.permute.xlu0 %1632
      %1636 = vrot.lane.b32.xlu0 %v1244, 32
      %v1637 = vpop.permute.xlu0 %1636
      %1640 = vrot.lane.b32.xlu0 %v1325, 48
      %v1641 = vpop.permute.xlu0 %1640
      %1644 = vrot.lane.b32.xlu0 %v1478, 16
      %v1645 = vpop.permute.xlu0 %1644
      %1648 = vrot.lane.b32.xlu0 %v1554, 32
      %v1649 = vpop.permute.xlu0 %1648
      %1652 = vrot.lane.b32.xlu0 %v1630, 48
      %v1653 = vpop.permute.xlu0 %1652
      %vm1655 = vcmask 130048
      %v1656 = vsel %vm1655, %v1079, %v1633
      %v1657 = vsel %vm321, %v1656, %v1637
      %vm1658 = vcmask 392192
      %v1659 = vsel %vm1658, %v1657, %v1641
      %v1660 = vsel %vm411, %v1659, %v1402
      %vm1661 = vcmask 654336
      %v1662 = vsel %vm1661, %v1660, %v1645
      %v1663 = vsel %vm766, %v1662, %v1649
      %vm1664 = vcmask 916480
      %v1665 = vsel %vm1664, %v1663, %v1653
      %v1666 = vld [vmem:[%s7] sm:$0xff]
      %v1667 = vld [vmem:[%s7 + $0x8] sm:$0xff]
      %v1668 = vld [vmem:[%s7 + $0x10] sm:$0xff]
      %v1669 = vld [vmem:[%s7 + $0x18] sm:$0xff]
      %v1670 = vld [vmem:[%s7 + $0x20] sm:$0xff]
      %v1671 = vld [vmem:[%s7 + $0x28] sm:$0xff]
      %v1672 = vld [vmem:[%s7 + $0x30] sm:$0xff]
      %v1673 = vld [vmem:[%s7 + $0x38] sm:$0xff]
      %v1674 = vld [vmem:[%s7 + $0x40] sm:$0xff]
      %v1675 = vld [vmem:[%s7 + $0x48] sm:$0xff]
      %v1676 = vld [vmem:[%s7 + $0x50] sm:$0xff]
      %v1677 = vld [vmem:[%s7 + $0x58] sm:$0xff]
      %v1678 = vld [vmem:[%s7 + $0x60] sm:$0xff]
      %v1679 = vld [vmem:[%s7 + $0x68] sm:$0xff]
      %v1680 = vld [vmem:[%s7 + $0x70] sm:$0xff]
      %v1681 = vld [vmem:[%s7 + $0x78] sm:$0xff]
      %1682 = vmatprep.subr.mxu0 0.0
      %1683 = vmatpush1.msra.mxu0 %v1681
      %1684 = vmatprep.subr.mxu0 0.0
      %1685 = vmatpush1.msra.mxu0 %v1680
      %1686 = vmatprep.subr.mxu0 0.0
      %1687 = vmatpush1.msra.mxu0 %v1679
      %1688 = vmatprep.subr.mxu0 0.0
      %1689 = vmatpush1.msra.mxu0 %v1678
      %1690 = vmatprep.subr.mxu0 0.0
      %1691 = vmatpush1.msra.mxu0 %v1677
      %1692 = vmatprep.subr.mxu0 0.0
      %1693 = vmatpush1.msra.mxu0 %v1676
      %1694 = vmatprep.subr.mxu0 0.0
      %1695 = vmatpush1.msra.mxu0 %v1675
      %1696 = vmatprep.subr.mxu0 0.0
      %1697 = vmatpush1.msra.mxu0 %v1674
      %1698 = vmatprep.subr.mxu0 0.0
      %1699 = vmatpush1.msra.mxu0 %v1673
      %1700 = vmatprep.subr.mxu0 0.0
      %1701 = vmatpush1.msra.mxu0 %v1672
      %1702 = vmatprep.subr.mxu0 0.0
      %1703 = vmatpush1.msra.mxu0 %v1671
      %1704 = vmatprep.subr.mxu0 0.0
      %1705 = vmatpush1.msra.mxu0 %v1670
      %1706 = vmatprep.subr.mxu0 0.0
      %1707 = vmatpush1.msra.mxu0 %v1669
      %1708 = vmatprep.subr.mxu0 0.0
      %1709 = vmatpush1.msra.mxu0 %v1668
      %1710 = vmatprep.subr.mxu0 0.0
      %1711 = vmatpush1.msra.mxu0 %v1667
      %1712 = vmatprep.subr.mxu0 0.0
      %1713 = vmatpush1.msra.mxu0 %v1666
      %1714 = vmatprep.subr.mxu0 0.0
      %1715 = vmatpush2.msra.mxu0 0.0
      %1716 = vmatprep.subr.mxu0 0.0
      %1717 = vmatpush2.msra.mxu0 0.0
      %1718 = vmatprep.subr.mxu0 0.0
      %1719 = vmatpush2.msra.mxu0 0.0
      %1720 = vmatprep.subr.mxu0 0.0
      %1721 = vmatpush2.msra.mxu0 0.0
      %1722 = vmatprep.subr.mxu0 0.0
      %1723 = vmatpush2.msra.mxu0 0.0
      %1724 = vmatprep.subr.mxu0 0.0
      %1725 = vmatpush2.msra.mxu0 0.0
      %1726 = vmatprep.subr.mxu0 0.0
      %1727 = vmatpush2.msra.mxu0 0.0
      %1728 = vmatprep.subr.mxu0 0.0
      %1729 = vmatpush2.msra.mxu0 0.0
      %1730 = vmatprep.subr.mxu0 0.0
      %1731 = vmatpush2.msra.mxu0 0.0
      %1732 = vmatprep.subr.mxu0 0.0
      %1733 = vmatpush2.msra.mxu0 0.0
      %1734 = vmatprep.subr.mxu0 0.0
      %1735 = vmatpush2.msra.mxu0 0.0
      %1736 = vmatprep.subr.mxu0 0.0
      %1737 = vmatpush2.msra.mxu0 0.0
      %1738 = vmatprep.subr.mxu0 0.0
      %1739 = vmatpush2.msra.mxu0 0.0
      %1740 = vmatprep.subr.mxu0 0.0
      %1741 = vmatpush2.msra.mxu0 0.0
      %1742 = vmatprep.subr.mxu0 0.0
      %1743 = vmatpush2.msra.mxu0 0.0
      %1744 = vmatprep.subr.mxu0 0.0
      %1745 = vmatpush2.msra.mxu0 0.0
      %1746 = vmatprep.mubr.f32.mxu0 0.0
      %1747 = vmatmul.mubr.f32.gmra.mxu0 %v1665
      %v1748 = vpop.f32.mrf.mxu0
      %v1749 = vadd.f32 %v906, %v1748
      %v1750 = vpop.f32.mrf.mxu0
      %1751 = vdwg.mxu0
      %v1752 = vsel %vm1655, %v697, %v713
      %v1753 = vsel %vm321, %v1752, %v729
      %v1754 = vsel %vm1658, %v1753, %v745
      %v1755 = vmul.f32 %v1754, %v1749
      %v1756 = vsub.f32 1.0, %v1754
      %v1757 = vmul.f32 %v1756, %v308
      %v1758 = vadd.f32 %v1755, %v1757
      %vm1759 = vcmask 517120
      %1760 = vst.msk [vmem:[#allocation2] sm:$0x3] %vm1759, %v1758
      %1761 = vst.msk [vmem:[%s300] sm:$0x3] %vm1759, %v1758
      %p1762 = scmp.lt.s32.totalorder %s19, 5
      %s1763 = scalar_select %p1762, %s19, 5
      %s1764 = smul.addr %s1763, 2
      %s1765 = scalar_lea.vmem %s8, %s1764
      // Predicated region
      $region57: #{rim_forward.2} parent=51 // pred_check
        %p1766 = pneg %p210
      $region58: #{rim_forward.2} parent=51 // pred_check_branch
        %1768 = sbr.rel (%p1766) target = $region60
      $region59: #{rim_forward.2} parent=51 // pred_region
        _
      $region60: #{rim_forward.2} parent=51 // pred_fallthru
        _
    $region52: #{rim_forward.2} parent=5 // pred_fallthru
      _
    %p1769 = scmp.le.s32.totalorder 2, %s14
    // Predicated region
    $region61: #{rim_forward.2} parent=5 // pred_check
      %p1770 = pneg %p1769
    $region62: #{rim_forward.2} parent=5 // pred_check_branch
      %1772 = sbr.rel (%p1770) target = $region64
    $region63: #{rim_forward.2} parent=5 // pred_region
      %s1773 = ssub.s32 %s14, 2
      // Predicated region
      $region65: #{rim_forward.2} parent=63 // pred_check
        %p1774 = pneg %p216
      $region66: #{rim_forward.2} parent=63 // pred_check_branch
        %1776 = sbr.rel (%p1774) target = $region68
      $region67: #{rim_forward.2} parent=63 // pred_region
        %p1777 = scmp.lt.s32.totalorder %s20, 5
        %s1778 = scalar_select %p1777, %s20, 5
        %s1779 = smul.addr %s1778, 2
        %s1780 = scalar_lea.vmem %s8, %s1779
      $region68: #{rim_forward.2} parent=63 // pred_fallthru
        _
    $region64: #{rim_forward.2} parent=5 // pred_fallthru
      _
  $region6: #{rim_forward.2} parent=0 // loop_footer
    %s18 = sadd.s32 1, %s14
  $region7: #{rim_forward.2} parent=0 // loop_footer_branch
    %13 = sbr.rel target = $region3
  $region8: #{rim_forward.2} parent=0 // loop_exit
    _

// kernel: rim_forward.3
$region0: #{rim_forward.3}
  #allocation0 [shape = 'u32[]', space=smem, size = 0x4, offset = 0x4, fixed_abs, tag = 'smem constant byte address 0x4 - core index']
  #allocation1 [shape = 'u32[144,128]{1,0:T(1,128)}', space=vmem, size = 0x12000, scoped, tag = 'internal scratch']
  #allocation2 [shape = 'f32[2,64]{1,0:T(2,128)}', space=vmem, size = 0x400, scoped, tag = 'scratch operand']
  %s0 = inlined_call_operand.vmem [shape: f32[6,2,64], index: 0, kind: input, shape index: {}]
  %s1 = inlined_call_operand.vmem [shape: f32[2,64], index: 1, kind: input, shape index: {}]
  %s2 = inlined_call_operand.vmem [shape: f32[64,48], index: 2, kind: input, shape index: {}]
  %s3 = inlined_call_operand.vmem [shape: f32[1,48], index: 3, kind: input, shape index: {}]
  %s4 = inlined_call_operand.vmem [shape: f32[64,256], index: 4, kind: input, shape index: {}]
  %s5 = inlined_call_operand.vmem [shape: f32[128,192], index: 5, kind: input, shape index: {}]
  %s6 = inlined_call_operand.vmem [shape: f32[64,256], index: 6, kind: input, shape index: {}]
  %s7 = inlined_call_operand.vmem [shape: f32[128,64], index: 7, kind: input, shape index: {}]
  %s8 = inlined_call_operand.vmem [shape: f32[6,2,64], index: 8, kind: output, shape index: {}]
  %s9 = sld [smem:[#allocation0]]
  $region69: #{rim_forward.3} parent=0
    _
  %s11 = ssub.s32 1, %s9
  %s12 = scalar_select 0, %s11, %s9
  loop: start=0, step=1, limit=8
  $region2: #{rim_forward.3} parent=0 // loop_pre_header
    _
  $region3: #{rim_forward.3} parent=0 // loop_header
    %s14 = sphi 0, %s18
    %p15 = scmp.ge.s32.totalorder %s14, 8
    %s24 = sphi 0, %s26
    %s27 = sphi 0, %s24
    %s28 = sphi 0, %s27
    %s44 = sphi 0, %s28
    %s48 = sphi 0, %s48
    %s50 = sphi 0, %s48
    %s51 = sphi 0, %s50
    %s65 = sphi 0, %s51
    %s69 = sphi 0, %s69
    %s71 = sphi 0, %s69
    %s72 = sphi 0, %s71
    %s86 = sphi 0, %s72
    %s90 = sphi 0, %s90
    %s92 = sphi 0, %s90
    %s93 = sphi 0, %s92
    %s107 = sphi 0, %s93
    %s111 = sphi 0, %s111
    %s113 = sphi 0, %s111
    %s114 = sphi 0, %s113
    %s128 = sphi 0, %s114
    %s132 = sphi 0, %s132
    %s134 = sphi 0, %s132
    %s135 = sphi 0, %s134
    %s149 = sphi 0, %s135
    %s153 = sphi 0, %s153
    %s155 = sphi 0, %s153
    %s156 = sphi 0, %s155
    %s170 = sphi 0, %s156
    %s174 = sphi 0, %s174
    %s176 = sphi 0, %s174
    %s177 = sphi 0, %s176
    %s191 = sphi 0, %s177
    %s197 = sphi 0, %s199
    %s200 = sphi 0, %s197
    %s201 = sphi 0, %s200
    %s217 = sphi 0, %s201
  $region4: #{rim_forward.3} parent=0 // loop_header_branch
    %17 = sbr.rel (%p15) target = $region8
  $region5: #{rim_forward.3} parent=0 // loop_body
    %s19 = ssub.s32 %s14, 1
    %s20 = ssub.s32 %s14, 2
    %s21 = sadd.s32 %s14, 1
    %s22 = ssub.s32 %s14, %s21
    %p23 = scmp.eq.s32.totalorder %s22, 0
    %s25 = sadd.s32 %s24, 1
    %s26 = scalar_select %p23, %s24, %s25
    %p29 = pneg %p23
    %p30 = scmp.eq.s32.totalorder %s14, 5
    %p31 = por %p29, %p30
    %p32 = scmp.ne.s32.totalorder %s24, %s27
    %p33 = scmp.eq.s32.totalorder %s14, 0
    %p34 = por %p32, %p33
    %p35 = scmp.ne.s32.totalorder %s24, %s27
    %p36 = scmp.eq.s32.totalorder %s19, 5
    %p37 = por %p35, %p36
    %p38 = scmp.ne.s32.totalorder %s27, %s28
    %p39 = scmp.eq.s32.totalorder %s19, 0
    %p40 = por %p38, %p39
    %p41 = scmp.ne.s32.totalorder %s27, %s28
    %p42 = scmp.eq.s32.totalorder %s20, 5
    %p43 = por %p41, %p42
    %p45 = scmp.ne.s32.totalorder %s28, %s44
    %p46 = scmp.eq.s32.totalorder %s20, 0
    %p47 = por %p45, %p46
    %s49 = sadd.s32 %s48, 1
    %p52 = scmp.eq.s32.totalorder %s14, 5
    %p53 = scmp.ne.s32.totalorder %s48, %s50
    %p54 = scmp.eq.s32.totalorder %s14, 0
    %p55 = por %p53, %p54
    %p56 = scmp.ne.s32.totalorder %s48, %s50
    %p57 = scmp.eq.s32.totalorder %s19, 5
    %p58 = por %p56, %p57
    %p59 = scmp.ne.s32.totalorder %s50, %s51
    %p60 = scmp.eq.s32.totalorder %s19, 0
    %p61 = por %p59, %p60
    %p62 = scmp.ne.s32.totalorder %s50, %s51
    %p63 = scmp.eq.s32.totalorder %s20, 5
    %p64 = por %p62, %p63
    %p66 = scmp.ne.s32.totalorder %s51, %s65
    %p67 = scmp.eq.s32.totalorder %s20, 0
    %p68 = por %p66, %p67
    %s70 = sadd.s32 %s69, 1
    %p73 = scmp.eq.s32.totalorder %s14, 5
    %p74 = scmp.ne.s32.totalorder %s69, %s71
    %p75 = scmp.eq.s32.totalorder %s14, 0
    %p76 = por %p74, %p75
    %p77 = scmp.ne.s32.totalorder %s69, %s71
    %p78 = scmp.eq.s32.totalorder %s19, 5
    %p79 = por %p77, %p78
    %p80 = scmp.ne.s32.totalorder %s71, %s72
    %p81 = scmp.eq.s32.totalorder %s19, 0
    %p82 = por %p80, %p81
    %p83 = scmp.ne.s32.totalorder %s71, %s72
    %p84 = scmp.eq.s32.totalorder %s20, 5
    %p85 = por %p83, %p84
    %p87 = scmp.ne.s32.totalorder %s72, %s86
    %p88 = scmp.eq.s32.totalorder %s20, 0
    %p89 = por %p87, %p88
    %s91 = sadd.s32 %s90, 1
    %p94 = scmp.eq.s32.totalorder %s14, 5
    %p95 = scmp.ne.s32.totalorder %s90, %s92
    %p96 = scmp.eq.s32.totalorder %s14, 0
    %p97 = por %p95, %p96
    %p98 = scmp.ne.s32.totalorder %s90, %s92
    %p99 = scmp.eq.s32.totalorder %s19, 5
    %p100 = por %p98, %p99
    %p101 = scmp.ne.s32.totalorder %s92, %s93
    %p102 = scmp.eq.s32.totalorder %s19, 0
    %p103 = por %p101, %p102
    %p104 = scmp.ne.s32.totalorder %s92, %s93
    %p105 = scmp.eq.s32.totalorder %s20, 5
    %p106 = por %p104, %p105
    %p108 = scmp.ne.s32.totalorder %s93, %s107
    %p109 = scmp.eq.s32.totalorder %s20, 0
    %p110 = por %p108, %p109
    %s112 = sadd.s32 %s111, 1
    %p115 = scmp.eq.s32.totalorder %s14, 5
    %p116 = scmp.ne.s32.totalorder %s111, %s113
    %p117 = scmp.eq.s32.totalorder %s14, 0
    %p118 = por %p116, %p117
    %p119 = scmp.ne.s32.totalorder %s111, %s113
    %p120 = scmp.eq.s32.totalorder %s19, 5
    %p121 = por %p119, %p120
    %p122 = scmp.ne.s32.totalorder %s113, %s114
    %p123 = scmp.eq.s32.totalorder %s19, 0
    %p124 = por %p122, %p123
    %p125 = scmp.ne.s32.totalorder %s113, %s114
    %p126 = scmp.eq.s32.totalorder %s20, 5
    %p127 = por %p125, %p126
    %p129 = scmp.ne.s32.totalorder %s114, %s128
    %p130 = scmp.eq.s32.totalorder %s20, 0
    %p131 = por %p129, %p130
    %s133 = sadd.s32 %s132, 1
    %p136 = scmp.eq.s32.totalorder %s14, 5
    %p137 = scmp.ne.s32.totalorder %s132, %s134
    %p138 = scmp.eq.s32.totalorder %s14, 0
    %p139 = por %p137, %p138
    %p140 = scmp.ne.s32.totalorder %s132, %s134
    %p141 = scmp.eq.s32.totalorder %s19, 5
    %p142 = por %p140, %p141
    %p143 = scmp.ne.s32.totalorder %s134, %s135
    %p144 = scmp.eq.s32.totalorder %s19, 0
    %p145 = por %p143, %p144
    %p146 = scmp.ne.s32.totalorder %s134, %s135
    %p147 = scmp.eq.s32.totalorder %s20, 5
    %p148 = por %p146, %p147
    %p150 = scmp.ne.s32.totalorder %s135, %s149
    %p151 = scmp.eq.s32.totalorder %s20, 0
    %p152 = por %p150, %p151
    %s154 = sadd.s32 %s153, 1
    %p157 = scmp.eq.s32.totalorder %s14, 5
    %p158 = scmp.ne.s32.totalorder %s153, %s155
    %p159 = scmp.eq.s32.totalorder %s14, 0
    %p160 = por %p158, %p159
    %p161 = scmp.ne.s32.totalorder %s153, %s155
    %p162 = scmp.eq.s32.totalorder %s19, 5
    %p163 = por %p161, %p162
    %p164 = scmp.ne.s32.totalorder %s155, %s156
    %p165 = scmp.eq.s32.totalorder %s19, 0
    %p166 = por %p164, %p165
    %p167 = scmp.ne.s32.totalorder %s155, %s156
    %p168 = scmp.eq.s32.totalorder %s20, 5
    %p169 = por %p167, %p168
    %p171 = scmp.ne.s32.totalorder %s156, %s170
    %p172 = scmp.eq.s32.totalorder %s20, 0
    %p173 = por %p171, %p172
    %s175 = sadd.s32 %s174, 1
    %p178 = scmp.eq.s32.totalorder %s14, 5
    %p179 = scmp.ne.s32.totalorder %s174, %s176
    %p180 = scmp.eq.s32.totalorder %s14, 0
    %p181 = por %p179, %p180
    %p182 = scmp.ne.s32.totalorder %s174, %s176
    %p183 = scmp.eq.s32.totalorder %s19, 5
    %p184 = por %p182, %p183
    %p185 = scmp.ne.s32.totalorder %s176, %s177
    %p186 = scmp.eq.s32.totalorder %s19, 0
    %p187 = por %p185, %p186
    %p188 = scmp.ne.s32.totalorder %s176, %s177
    %p189 = scmp.eq.s32.totalorder %s20, 5
    %p190 = por %p188, %p189
    %p192 = scmp.ne.s32.totalorder %s177, %s191
    %p193 = scmp.eq.s32.totalorder %s20, 0
    %p194 = por %p192, %p193
    %s195 = ssub.s32 %s14, %s21
    %p196 = scmp.eq.s32.totalorder %s195, 0
    %s198 = sadd.s32 %s197, 1
    %s199 = scalar_select %p196, %s197, %s198
    %p202 = pneg %p196
    %p203 = scmp.eq.s32.totalorder %s14, 5
    %p204 = por %p202, %p203
    %p205 = scmp.ne.s32.totalorder %s197, %s200
    %p206 = scmp.eq.s32.totalorder %s14, 0
    %p207 = por %p205, %p206
    %p208 = scmp.ne.s32.totalorder %s197, %s200
    %p209 = scmp.eq.s32.totalorder %s19, 5
    %p210 = por %p208, %p209
    %p211 = scmp.ne.s32.totalorder %s200, %s201
    %p212 = scmp.eq.s32.totalorder %s19, 0
    %p213 = por %p211, %p212
    %p214 = scmp.ne.s32.totalorder %s200, %s201
    %p215 = scmp.eq.s32.totalorder %s20, 5
    %p216 = por %p214, %p215
    %p218 = scmp.ne.s32.totalorder %s201, %s217
    %p219 = scmp.eq.s32.totalorder %s20, 0
    %p220 = por %p218, %p219
    %p221 = scmp.le.s32.totalorder 1, %s14
    %p222 = scmp.lt.s32.totalorder %s14, 7
    %p223 = pnand %p221, %p222
    %p224 = pneg %p223
    // Predicated region
    $region9: #{rim_forward.3} parent=5 // pred_check
      _
    $region10: #{rim_forward.3} parent=5 // pred_check_branch
      %226 = sbr.rel (%p223) target = $region12
    $region11: #{rim_forward.3} parent=5 // pred_region
      %s227 = ssub.s32 %s14, 1
      // Predicated region
      $region13: #{rim_forward.3} parent=11 // pred_check
        %p228 = pneg %p61
      $region14: #{rim_forward.3} parent=11 // pred_check_branch
        %230 = sbr.rel (%p228) target = $region16
      $region15: #{rim_forward.3} parent=11 // pred_region
        _
      $region16: #{rim_forward.3} parent=11 // pred_fallthru
        _
      // Predicated region
      $region17: #{rim_forward.3} parent=11 // pred_check
        %p231 = pneg %p82
      $region18: #{rim_forward.3} parent=11 // pred_check_branch
        %233 = sbr.rel (%p231) target = $region20
      $region19: #{rim_forward.3} parent=11 // pred_region
        _
      $region20: #{rim_forward.3} parent=11 // pred_fallthru
        _
      // Predicated region
      $region21: #{rim_forward.3} parent=11 // pred_check
        %p234 = pneg %p103
      $region22: #{rim_forward.3} parent=11 // pred_check_branch
        %236 = sbr.rel (%p234) target = $region24
      $region23: #{rim_forward.3} parent=11 // pred_region
        _
      $region24: #{rim_forward.3} parent=11 // pred_fallthru
        _
      // Predicated region
      $region25: #{rim_forward.3} parent=11 // pred_check
        %p237 = pneg %p124
      $region26: #{rim_forward.3} parent=11 // pred_check_branch
        %239 = sbr.rel (%p237) target = $region28
      $region27: #{rim_forward.3} parent=11 // pred_region
        _
      $region28: #{rim_forward.3} parent=11 // pred_fallthru
        _
      // Predicated region
      $region29: #{rim_forward.3} parent=11 // pred_check
        %p240 = pneg %p145
      $region30: #{rim_forward.3} parent=11 // pred_check_branch
        %242 = sbr.rel (%p240) target = $region32
      $region31: #{rim_forward.3} parent=11 // pred_region
        _
      $region32: #{rim_forward.3} parent=11 // pred_fallthru
        _
      // Predicated region
      $region33: #{rim_forward.3} parent=11 // pred_check
        %p243 = pneg %p166
      $region34: #{rim_forward.3} parent=11 // pred_check_branch
        %245 = sbr.rel (%p243) target = $region36
      $region35: #{rim_forward.3} parent=11 // pred_region
        _
      $region36: #{rim_forward.3} parent=11 // pred_fallthru
        _
      // Predicated region
      $region37: #{rim_forward.3} parent=11 // pred_check
        %p246 = pneg %p187
      $region38: #{rim_forward.3} parent=11 // pred_check_branch
        %248 = sbr.rel (%p246) target = $region40
      $region39: #{rim_forward.3} parent=11 // pred_region
        _
      $region40: #{rim_forward.3} parent=11 // pred_fallthru
        _
    $region12: #{rim_forward.3} parent=5 // pred_fallthru
      _
    %p249 = scmp.lt.s32.totalorder %s14, 6
    // Predicated region
    $region41: #{rim_forward.3} parent=5 // pred_check
      %p250 = pneg %p249
    $region42: #{rim_forward.3} parent=5 // pred_check_branch
      %252 = sbr.rel (%p250) target = $region44
    $region43: #{rim_forward.3} parent=5 // pred_region
      // Predicated region
      $region45: #{rim_forward.3} parent=43 // pred_check
        %p253 = pneg %p34
      $region46: #{rim_forward.3} parent=43 // pred_check_branch
        %255 = sbr.rel (%p253) target = $region48
      $region47: #{rim_forward.3} parent=43 // pred_region
        %p256 = scmp.lt.s32.totalorder %s14, 5
        %s257 = scalar_select %p256, %s14, 5
        %s258 = smul.addr %s257, 2
        %s259 = scalar_lea.vmem %s0, %s258
      $region48: #{rim_forward.3} parent=43 // pred_fallthru
        _
    $region44: #{rim_forward.3} parent=5 // pred_fallthru
      _
    %p260 = scmp.le.s32.totalorder 1, %s14
    %p261 = scmp.lt.s32.totalorder %s14, 7
    %p262 = pnand %p260, %p261
    %p263 = pneg %p262
    // Predicated region
    $region49: #{rim_forward.3} parent=5 // pred_check
      _
    $region50: #{rim_forward.3} parent=5 // pred_check_branch
      %265 = sbr.rel (%p262) target = $region52
    $region51: #{rim_forward.3} parent=5 // pred_region
      %s266 = ssub.s32 %s14, 1
      %p267 = scmp.lt.s32.totalorder %s19, 5
      %s268 = scalar_select %p267, %s19, 5
      %s269 = smul.addr %s268, 2
      %s270 = scalar_lea.vmem %s0, %s269
      %p271 = pneg %p40
      %p272 = pneg %p37
      %p273 = pneg %p61
      %p274 = pneg %p58
      %p275 = pneg %p82
      %p276 = pneg %p79
      %p277 = pneg %p103
      %p278 = pneg %p100
      %p279 = pneg %p124
      %p280 = pneg %p121
      %p281 = pneg %p145
      %p282 = pneg %p142
      %p283 = pneg %p166
      %p284 = pneg %p163
      %p285 = pneg %p187
      %p286 = pneg %p184
      %p287 = pneg %p213
      %p288 = pneg %p210
      %p289 = scmp.lt.s32.totalorder %s19, 5
      %s290 = scalar_select %p289, %s19, 5
      %s291 = smul.addr %s290, 2
      %s292 = scalar_lea.vmem %s8, %s291
      %p293 = scmp.lt.s32.totalorder %s19, 5
      %s294 = scalar_select %p293, %s19, 5
      %s295 = smul.addr %s294, 2
      %s296 = scalar_lea.vmem %s0, %s295
      %p297 = scmp.lt.s32.totalorder %s19, 5
      %s298 = scalar_select %p297, %s19, 5
      %s299 = smul.addr %s298, 2
      %s300 = scalar_lea.vmem %s8, %s299
      %p301 = scmp.eq.s32.totalorder %s19, 0
      // Predicated region
      $region53: #{rim_forward.3} parent=51 // pred_check
        %p302 = pneg %p301
      $region54: #{rim_forward.3} parent=51 // pred_check_branch
        %304 = sbr.rel (%p302) target = $region56
      $region55: #{rim_forward.3} parent=51 // pred_region
        %v305 = vld [vmem:[%s1] sm:$0x3]
        %vm306 = vcmask 517120
        %307 = vst.msk [vmem:[#allocation2] sm:$0x3] %vm306, %v305
      $region56: #{rim_forward.3} parent=51 // pred_fallthru
        _
      %v308 = vld [vmem:[#allocation2] sm:$0x3]
      %v309 = vld [vmem:[%s296] sm:$0x3]
      %v310 = vld [vmem:[%s3] sm:$0x1]
      %v311 = vld [vmem:[%s2] sm:$0xff]
      %v312 = vld [vmem:[%s2 + $0x8] sm:$0xff]
      %v313 = vld [vmem:[%s2 + $0x10] sm:$0xff]
      %v314 = vld [vmem:[%s2 + $0x18] sm:$0xff]
      %v315 = vld [vmem:[%s2 + $0x20] sm:$0xff]
      %v316 = vld [vmem:[%s2 + $0x28] sm:$0xff]
      %v317 = vld [vmem:[%s2 + $0x30] sm:$0xff]
      %v318 = vld [vmem:[%s2 + $0x38] sm:$0xff]
      %v320 = vlaneseq
      %v321 = vshrl.u32 %v320, 7
      %v322 = vsub.s32 0, %v321
      %v323 = vrot.slane %v310, %v322
      %vm325 = vcmask 523264
      %v327 = vsel %vm325, %v309, 0
      %329 = vmatprep.subr.mxu0 0.0
      %330 = vmatpush1.msra.mxu0 0.0
      %331 = vmatprep.subr.mxu0 0.0
      %332 = vmatpush1.msra.mxu0 0.0
      %333 = vmatprep.subr.mxu0 0.0
      %334 = vmatpush1.msra.mxu0 0.0
      %335 = vmatprep.subr.mxu0 0.0
      %336 = vmatpush1.msra.mxu0 0.0
      %337 = vmatprep.subr.mxu0 0.0
      %338 = vmatpush1.msra.mxu0 0.0
      %339 = vmatprep.subr.mxu0 0.0
      %340 = vmatpush1.msra.mxu0 0.0
      %341 = vmatprep.subr.mxu0 0.0
      %342 = vmatpush1.msra.mxu0 0.0
      %343 = vmatprep.subr.mxu0 0.0
      %344 = vmatpush1.msra.mxu0 0.0
      %345 = vmatprep.subr.mxu0 0.0
      %346 = vmatpush1.msra.mxu0 %v318
      %347 = vmatprep.subr.mxu0 0.0
      %348 = vmatpush1.msra.mxu0 %v317
      %349 = vmatprep.subr.mxu0 0.0
      %350 = vmatpush1.msra.mxu0 %v316
      %351 = vmatprep.subr.mxu0 0.0
      %352 = vmatpush1.msra.mxu0 %v315
      %353 = vmatprep.subr.mxu0 0.0
      %354 = vmatpush1.msra.mxu0 %v314
      %355 = vmatprep.subr.mxu0 0.0
      %356 = vmatpush1.msra.mxu0 %v313
      %357 = vmatprep.subr.mxu0 0.0
      %358 = vmatpush1.msra.mxu0 %v312
      %359 = vmatprep.subr.mxu0 0.0
      %360 = vmatpush1.msra.mxu0 %v311
      %361 = vmatprep.subr.mxu0 0.0
      %362 = vmatpush2.msra.mxu0 0.0
      %363 = vmatprep.subr.mxu0 0.0
      %364 = vmatpush2.msra.mxu0 0.0
      %365 = vmatprep.subr.mxu0 0.0
      %366 = vmatpush2.msra.mxu0 0.0
      %367 = vmatprep.subr.mxu0 0.0
      %368 = vmatpush2.msra.mxu0 0.0
      %369 = vmatprep.subr.mxu0 0.0
      %370 = vmatpush2.msra.mxu0 0.0
      %371 = vmatprep.subr.mxu0 0.0
      %372 = vmatpush2.msra.mxu0 0.0
      %373 = vmatprep.subr.mxu0 0.0
      %374 = vmatpush2.msra.mxu0 0.0
      %375 = vmatprep.subr.mxu0 0.0
      %376 = vmatpush2.msra.mxu0 0.0
      %377 = vmatprep.subr.mxu0 0.0
      %378 = vmatpush2.msra.mxu0 0.0
      %379 = vmatprep.subr.mxu0 0.0
      %380 = vmatpush2.msra.mxu0 0.0
      %381 = vmatprep.subr.mxu0 0.0
      %382 = vmatpush2.msra.mxu0 0.0
      %383 = vmatprep.subr.mxu0 0.0
      %384 = vmatpush2.msra.mxu0 0.0
      %385 = vmatprep.subr.mxu0 0.0
      %386 = vmatpush2.msra.mxu0 0.0
      %387 = vmatprep.subr.mxu0 0.0
      %388 = vmatpush2.msra.mxu0 0.0
      %389 = vmatprep.subr.mxu0 0.0
      %390 = vmatpush2.msra.mxu0 0.0
      %391 = vmatprep.subr.mxu0 0.0
      %392 = vmatpush2.msra.mxu0 0.0
      %393 = vmatprep.mubr.f32.mxu0 0.0
      %394 = vmatmul.mubr.f32.gmra.mxu0 %v327
      %v395 = vpop.f32.mrf.mxu0
      %v396 = vadd.f32 %v323, %v395
      %v397 = vpop.f32.mrf.mxu0
      %398 = vdwg.mxu0
      %v399 = vld [vmem:[%s4] sm:$0xff]
      %v400 = vld [vmem:[%s4 + $0x8] sm:$0xff]
      %v401 = vld [vmem:[%s4 + $0x10] sm:$0xff]
      %v402 = vld [vmem:[%s4 + $0x18] sm:$0xff]
      %v403 = vld [vmem:[%s4 + $0x20] sm:$0xff]
      %v404 = vld [vmem:[%s4 + $0x28] sm:$0xff]
      %v405 = vld [vmem:[%s4 + $0x30] sm:$0xff]
      %v406 = vld [vmem:[%s4 + $0x38] sm:$0xff]
      %v407 = vld [vmem:[%s4 + $0x40] sm:$0xff]
      %v408 = vld [vmem:[%s4 + $0x48] sm:$0xff]
      %v409 = vld [vmem:[%s4 + $0x50] sm:$0xff]
      %v410 = vld [vmem:[%s4 + $0x58] sm:$0xff]
      %v411 = vld [vmem:[%s4 + $0x60] sm:$0xff]
      %v412 = vld [vmem:[%s4 + $0x68] sm:$0xff]
      %v413 = vld [vmem:[%s4 + $0x70] sm:$0xff]
      %v414 = vld [vmem:[%s4 + $0x78] sm:$0xff]
      %v416 = vsel %vm325, %v308, 0
      %418 = vmatprep.subr.mxu0 0.0
      %419 = vmatpush1.msra.mxu0 0.0
      %420 = vmatprep.subr.mxu0 0.0
      %421 = vmatpush1.msra.mxu0 0.0
      %422 = vmatprep.subr.mxu0 0.0
      %423 = vmatpush1.msra.mxu0 0.0
      %424 = vmatprep.subr.mxu0 0.0
      %425 = vmatpush1.msra.mxu0 0.0
      %426 = vmatprep.subr.mxu0 0.0
      %427 = vmatpush1.msra.mxu0 0.0
      %428 = vmatprep.subr.mxu0 0.0
      %429 = vmatpush1.msra.mxu0 0.0
      %430 = vmatprep.subr.mxu0 0.0
      %431 = vmatpush1.msra.mxu0 0.0
      %432 = vmatprep.subr.mxu0 0.0
      %433 = vmatpush1.msra.mxu0 0.0
      %434 = vmatprep.subr.mxu0 %v414
      %435 = vmatpush1.msra.mxu0 %v413
      %436 = vmatprep.subr.mxu0 %v412
      %437 = vmatpush1.msra.mxu0 %v411
      %438 = vmatprep.subr.mxu0 %v410
      %439 = vmatpush1.msra.mxu0 %v409
      %440 = vmatprep.subr.mxu0 %v408
      %441 = vmatpush1.msra.mxu0 %v407
      %442 = vmatprep.subr.mxu0 %v406
      %443 = vmatpush1.msra.mxu0 %v405
      %444 = vmatprep.subr.mxu0 %v404
      %445 = vmatpush1.msra.mxu0 %v403
      %446 = vmatprep.subr.mxu0 %v402
      %447 = vmatpush1.msra.mxu0 %v401
      %448 = vmatprep.subr.mxu0 %v400
      %449 = vmatpush1.msra.mxu0 %v399
      %450 = vmatprep.subr.mxu0 0.0
      %451 = vmatpush2.msra.mxu0 0.0
      %452 = vmatprep.subr.mxu0 0.0
      %453 = vmatpush2.msra.mxu0 0.0
      %454 = vmatprep.subr.mxu0 0.0
      %455 = vmatpush2.msra.mxu0 0.0
      %456 = vmatprep.subr.mxu0 0.0
      %457 = vmatpush2.msra.mxu0 0.0
      %458 = vmatprep.subr.mxu0 0.0
      %459 = vmatpush2.msra.mxu0 0.0
      %460 = vmatprep.subr.mxu0 0.0
      %461 = vmatpush2.msra.mxu0 0.0
      %462 = vmatprep.subr.mxu0 0.0
      %463 = vmatpush2.msra.mxu0 0.0
      %464 = vmatprep.subr.mxu0 0.0
      %465 = vmatpush2.msra.mxu0 0.0
      %466 = vmatprep.subr.mxu0 0.0
      %467 = vmatpush2.msra.mxu0 0.0
      %468 = vmatprep.subr.mxu0 0.0
      %469 = vmatpush2.msra.mxu0 0.0
      %470 = vmatprep.subr.mxu0 0.0
      %471 = vmatpush2.msra.mxu0 0.0
      %472 = vmatprep.subr.mxu0 0.0
      %473 = vmatpush2.msra.mxu0 0.0
      %474 = vmatprep.subr.mxu0 0.0
      %475 = vmatpush2.msra.mxu0 0.0
      %476 = vmatprep.subr.mxu0 0.0
      %477 = vmatpush2.msra.mxu0 0.0
      %478 = vmatprep.subr.mxu0 0.0
      %479 = vmatpush2.msra.mxu0 0.0
      %480 = vmatprep.subr.mxu0 0.0
      %481 = vmatpush2.msra.mxu0 0.0
      %482 = vmatprep.mubr.f32.mxu0 0.0
      %483 = vmatmul.mubr.f32.gmra.mxu0 %v416
      %v484 = vpop.f32.mrf.mxu0
      %v485 = vadd.f32 0.0, %v484
      %v486 = vpop.f32.mrf.mxu0
      %v487 = vadd.f32 0.0, %v486
      %488 = vdwg.mxu0
      %v489 = vmul.f32 %v485, %v396
      %vm490 = vcmask 123904
      %v491 = vsel %vm490, %v489, 0.0
      %492 = vadd.xlane.f32.xlu0 %v491
      %v493 = vpop.xlane.xlu0 %492
      %v494 = vmul.f32 %v485, %v323
      %v495 = vsel %vm490, %v494, 0.0
      %496 = vadd.xlane.f32.xlu0 %v495
      %v497 = vpop.xlane.xlu0 %496
      %499 = vrot.lane.b32.xlu0 %v396, 16
      %v500 = vpop.permute.xlu0 %499
      %v502 = vmul.f32 %v485, %v500
      %504 = vrot.lane.b32.xlu0 %v502, 112
      %v505 = vpop.permute.xlu0 %504
      %v507 = vsel %vm490, %v505, 0.0
      %508 = vadd.xlane.f32.xlu0 %v507
      %v509 = vpop.xlane.xlu0 %508
      %510 = vrot.lane.b32.xlu0 %v323, 16
      %v511 = vpop.permute.xlu0 %510
      %v513 = vmul.f32 %v485, %v511
      %515 = vrot.lane.b32.xlu0 %v513, 112
      %v516 = vpop.permute.xlu0 %515
      %v518 = vsel %vm490, %v516, 0.0
      %519 = vadd.xlane.f32.xlu0 %v518
      %v520 = vpop.xlane.xlu0 %519
      %521 = vrot.lane.b32.xlu0 %v396, 32
      %v522 = vpop.permute.xlu0 %521
      %v524 = vmul.f32 %v485, %v522
      %526 = vrot.lane.b32.xlu0 %v524, 96
      %v527 = vpop.permute.xlu0 %526
      %v529 = vsel %vm490, %v527, 0.0
      %530 = vadd.xlane.f32.xlu0 %v529
      %v531 = vpop.xlane.xlu0 %530
      %532 = vrot.lane.b32.xlu0 %v323, 32
      %v533 = vpop.permute.xlu0 %532
      %v535 = vmul.f32 %v485, %v533
      %537 = vrot.lane.b32.xlu0 %v535, 96
      %v538 = vpop.permute.xlu0 %537
      %v540 = vsel %vm490, %v538, 0.0
      %541 = vadd.xlane.f32.xlu0 %v540
      %v542 = vpop.xlane.xlu0 %541
      %543 = vrot.lane.b32.xlu0 %v396, 48
      %v544 = vpop.permute.xlu0 %543
      %v546 = vmul.f32 %v485, %v544
      %548 = vrot.lane.b32.xlu0 %v546, 80
      %v549 = vpop.permute.xlu0 %548
      %v551 = vsel %vm490, %v549, 0.0
      %552 = vadd.xlane.f32.xlu0 %v551
      %v553 = vpop.xlane.xlu0 %552
      %554 = vrot.lane.b32.xlu0 %v323, 48
      %v555 = vpop.permute.xlu0 %554
      %v557 = vmul.f32 %v485, %v555
      %559 = vrot.lane.b32.xlu0 %v557, 80
      %v560 = vpop.permute.xlu0 %559
      %v562 = vsel %vm490, %v560, 0.0
      %563 = vadd.xlane.f32.xlu0 %v562
      %v564 = vpop.xlane.xlu0 %563
      %vm565 = vcmask 7168
      %v566 = vsel %vm565, %v493, %v509
      %vm567 = vcmask 15360
      %v568 = vsel %vm567, %v566, %v531
      %vm569 = vcmask 23552
      %v570 = vsel %vm569, %v568, %v553
      %v571 = vmul.f32 %v570, 0.25
      %v572 = vsel %vm565, %v497, %v520
      %v573 = vsel %vm567, %v572, %v542
      %v574 = vsel %vm569, %v573, %v564
      %v575 = vmul.f32 %v574, 0.25
      %577 = vrot.lane.b32.xlu0 %v571, 1
      %v578 = vpop.permute.xlu0 %577
      %vm580 = vcmp.gt.f32.partialorder %v571, %v578
      %v581 = vsel %vm580, 1, 0
      %v582 = vcvt.s32.f32 %v581
      %v583 = vadd.f32 %v582, 0.0
      %584 = vrot.lane.b32.xlu0 %v571, 2
      %v585 = vpop.permute.xlu0 %584
      %vm587 = vcmp.gt.f32.partialorder %v571, %v585
      %v588 = vsel %vm587, 1, 0
      %v589 = vcvt.s32.f32 %v588
      %591 = vrot.lane.b32.xlu0 %v589, 127
      %v592 = vpop.permute.xlu0 %591
      %v594 = vadd.f32 %v583, %v592
      %595 = vrot.lane.b32.xlu0 %v571, 3
      %v596 = vpop.permute.xlu0 %595
      %vm598 = vcmp.gt.f32.partialorder %v571, %v596
      %v599 = vsel %vm598, 1, 0
      %v600 = vcvt.s32.f32 %v599
      %602 = vrot.lane.b32.xlu0 %v600, 126
      %v603 = vpop.permute.xlu0 %602
      %v605 = vadd.f32 %v594, %v603
      %606 = vrot.lane.b32.xlu0 %v571, 127
      %v607 = vpop.permute.xlu0 %606
      %vm609 = vcmp.ge.f32.partialorder %v571, %v607
      %v610 = vsel %vm609, 1, 0
      %v611 = vcvt.s32.f32 %v610
      %v612 = vadd.f32 %v611, 0.0
      %614 = vrot.lane.b32.xlu0 %v582, 126
      %v615 = vpop.permute.xlu0 %614
      %v617 = vadd.f32 %v612, %v615
      %618 = vrot.lane.b32.xlu0 %v589, 125
      %v619 = vpop.permute.xlu0 %618
      %v621 = vadd.f32 %v617, %v619
      %622 = vrot.lane.b32.xlu0 %v571, 126
      %v623 = vpop.permute.xlu0 %622
      %vm625 = vcmp.ge.f32.partialorder %v571, %v623
      %v626 = vsel %vm625, 1, 0
      %v627 = vcvt.s32.f32 %v626
      %v628 = vadd.f32 %v627, 0.0
      %630 = vrot.lane.b32.xlu0 %v611, 127
      %v631 = vpop.permute.xlu0 %630
      %v633 = vadd.f32 %v628, %v631
      %634 = vrot.lane.b32.xlu0 %v582, 125
      %v635 = vpop.permute.xlu0 %634
      %v637 = vadd.f32 %v633, %v635
      %638 = vrot.lane.b32.xlu0 %v571, 125
      %v639 = vpop.permute.xlu0 %638
      %vm641 = vcmp.ge.f32.partialorder %v571, %v639
      %v642 = vsel %vm641, 1, 0
      %v643 = vcvt.s32.f32 %v642
      %v644 = vadd.f32 %v643, 0.0
      %646 = vrot.lane.b32.xlu0 %v627, 127
      %v647 = vpop.permute.xlu0 %646
      %v649 = vadd.f32 %v644, %v647
      %650 = vrot.lane.b32.xlu0 %v611, 126
      %v651 = vpop.permute.xlu0 %650
      %v653 = vadd.f32 %v649, %v651
      %655 = vrot.lane.b32.xlu0 %v605, 127
      %v656 = vpop.permute.xlu0 %655
      %659 = vrot.lane.b32.xlu0 %v621, 1
      %v660 = vpop.permute.xlu0 %659
      %663 = vrot.lane.b32.xlu0 %v637, 2
      %v664 = vpop.permute.xlu0 %663
      %667 = vrot.lane.b32.xlu0 %v653, 3
      %v668 = vpop.permute.xlu0 %667
      %v670 = vsel %vm565, %v656, %v660
      %v671 = vsel %vm567, %v670, %v664
      %v672 = vsel %vm569, %v671, %v668
      %vm673 = vcmp.lt.f32.partialorder %v672, 2.0
      %v674 = vsel %vm673, 1, 0
      %v675 = vcvt.s32.f32 %v674
      %v676 = vsub.f32 %v571, %v575
      %v677 = vxor.u32 %v676, 2147483648
      %v678 = vmul.f32 %v677, 1.442695
      %v679 = vpow.pop %v678
      %v680 = vadd.f32 %v679, 1.0
      %v681 = vrcp.pop %v680
      %v682 = vmul.f32 1.0, %v681
      %v683 = vsub.f32 1.0, %v682
      %685 = vset.pattern.permute.xlu0 0
      %686 = vperm.xlu0 %685, %v682
      %v687 = vpop.permute.xlu0 %686
      %v689 = vmul.f32 %v687, %v396
      %691 = vset.pattern.permute.xlu0 0
      %692 = vperm.xlu0 %691, %v683
      %v693 = vpop.permute.xlu0 %692
      %v695 = vmul.f32 %v693, %v323
      %v696 = vadd.f32 %v689, %v695
      %698 = vset.pattern.permute.xlu0 0
      %699 = vperm.xlu0 %698, %v675
      %v700 = vpop.permute.xlu0 %699
      %v702 = vmul.f32 %v700, %v696
      %703 = vset.pattern.permute.xlu0 1
      %704 = vperm.xlu0 %703, %v682
      %v705 = vpop.permute.xlu0 %704
      %v707 = vmul.f32 %v705, %v396
      %708 = vset.pattern.permute.xlu0 1
      %709 = vperm.xlu0 %708, %v683
      %v710 = vpop.permute.xlu0 %709
      %v712 = vmul.f32 %v710, %v323
      %v713 = vadd.f32 %v707, %v712
      %714 = vset.pattern.permute.xlu0 1
      %715 = vperm.xlu0 %714, %v675
      %v716 = vpop.permute.xlu0 %715
      %v718 = vmul.f32 %v716, %v713
      %719 = vset.pattern.permute.xlu0 2
      %720 = vperm.xlu0 %719, %v682
      %v721 = vpop.permute.xlu0 %720
      %v723 = vmul.f32 %v721, %v396
      %724 = vset.pattern.permute.xlu0 2
      %725 = vperm.xlu0 %724, %v683
      %v726 = vpop.permute.xlu0 %725
      %v728 = vmul.f32 %v726, %v323
      %v729 = vadd.f32 %v723, %v728
      %730 = vset.pattern.permute.xlu0 2
      %731 = vperm.xlu0 %730, %v675
      %v732 = vpop.permute.xlu0 %731
      %v734 = vmul.f32 %v732, %v729
      %735 = vset.pattern.permute.xlu0 3
      %736 = vperm.xlu0 %735, %v682
      %v737 = vpop.permute.xlu0 %736
      %v739 = vmul.f32 %v737, %v396
      %740 = vset.pattern.permute.xlu0 3
      %741 = vperm.xlu0 %740, %v683
      %v742 = vpop.permute.xlu0 %741
      %v744 = vmul.f32 %v742, %v323
      %v745 = vadd.f32 %v739, %v744
      %746 = vset.pattern.permute.xlu0 3
      %747 = vperm.xlu0 %746, %v675
      %v748 = vpop.permute.xlu0 %747
      %v750 = vmul.f32 %v748, %v745
      %752 = vrot.lane.b32.xlu0 %v702, 112
      %v753 = vpop.permute.xlu0 %752
      %756 = vrot.lane.b32.xlu0 %v718, 16
      %v757 = vpop.permute.xlu0 %756
      %760 = vrot.lane.b32.xlu0 %v734, 48
      %v761 = vpop.permute.xlu0 %760
      %764 = vrot.lane.b32.xlu0 %v750, 80
      %v765 = vpop.permute.xlu0 %764
      %vm767 = vcmask 261120
      %v768 = vsel %vm767, %v753, %v757
      %v769 = vsel %vm325, %v768, %v761
      %vm770 = vcmask 785408
      %v771 = vsel %vm770, %v769, %v765
      %v772 = vld [vmem:[%s5] sm:$0xff]
      %v773 = vld [vmem:[%s5 + $0x8] sm:$0xff]
      %v774 = vld [vmem:[%s5 + $0x10] sm:$0xff]
      %v775 = vld [vmem:[%s5 + $0x18] sm:$0xff]
      %v776 = vld [vmem:[%s5 + $0x20] sm:$0xff]
      %v777 = vld [vmem:[%s5 + $0x28] sm:$0xff]
      %v778 = vld [vmem:[%s5 + $0x30] sm:$0xff]
      %v779 = vld [vmem:[%s5 + $0x38] sm:$0xff]
      %v780 = vld [vmem:[%s5 + $0x40] sm:$0xff]
      %v781 = vld [vmem:[%s5 + $0x48] sm:$0xff]
      %v782 = vld [vmem:[%s5 + $0x50] sm:$0xff]
      %v783 = vld [vmem:[%s5 + $0x58] sm:$0xff]
      %v784 = vld [vmem:[%s5 + $0x60] sm:$0xff]
      %v785 = vld [vmem:[%s5 + $0x68] sm:$0xff]
      %v786 = vld [vmem:[%s5 + $0x70] sm:$0xff]
      %v787 = vld [vmem:[%s5 + $0x78] sm:$0xff]
      %v788 = vld [vmem:[%s5 + $0x80] sm:$0xff]
      %v789 = vld [vmem:[%s5 + $0x88] sm:$0xff]
      %v790 = vld [vmem:[%s5 + $0x90] sm:$0xff]
      %v791 = vld [vmem:[%s5 + $0x98] sm:$0xff]
      %v792 = vld [vmem:[%s5 + $0xa0] sm:$0xff]
      %v793 = vld [vmem:[%s5 + $0xa8] sm:$0xff]
      %v794 = vld [vmem:[%s5 + $0xb0] sm:$0xff]
      %v795 = vld [vmem:[%s5 + $0xb8] sm:$0xff]
      %v796 = vld [vmem:[%s5 + $0xc0] sm:$0xff]
      %v797 = vld [vmem:[%s5 + $0xc8] sm:$0xff]
      %v798 = vld [vmem:[%s5 + $0xd0] sm:$0xff]
      %v799 = vld [vmem:[%s5 + $0xd8] sm:$0xff]
      %v800 = vld [vmem:[%s5 + $0xe0] sm:$0xff]
      %v801 = vld [vmem:[%s5 + $0xe8] sm:$0xff]
      %v802 = vld [vmem:[%s5 + $0xf0] sm:$0xff]
      %v803 = vld [vmem:[%s5 + $0xf8] sm:$0xff]
      %804 = vmatprep.subr.mxu0 %v803
      %805 = vmatpush1.msra.mxu0 %v802
      %806 = vmatprep.subr.mxu0 %v801
      %807 = vmatpush1.msra.mxu0 %v800
      %808 = vmatprep.subr.mxu0 %v799
      %809 = vmatpush1.msra.mxu0 %v798
      %810 = vmatprep.subr.mxu0 %v797
      %811 = vmatpush1.msra.mxu0 %v796
      %812 = vmatprep.subr.mxu0 %v795
      %813 = vmatpush1.msra.mxu0 %v794
      %814 = vmatprep.subr.mxu0 %v793
      %815 = vmatpush1.msra.mxu0 %v792
      %816 = vmatprep.subr.mxu0 %v791
      %817 = vmatpush1.msra.mxu0 %v790
      %818 = vmatprep.subr.mxu0 %v789
      %819 = vmatpush1.msra.mxu0 %v788
      %820 = vmatprep.subr.mxu0 %v787
      %821 = vmatpush1.msra.mxu0 %v786
      %822 = vmatprep.subr.mxu0 %v785
      %823 = vmatpush1.msra.mxu0 %v784
      %824 = vmatprep.subr.mxu0 %v783
      %825 = vmatpush1.msra.mxu0 %v782
      %826 = vmatprep.subr.mxu0 %v781
      %827 = vmatpush1.msra.mxu0 %v780
      %828 = vmatprep.subr.mxu0 %v779
      %829 = vmatpush1.msra.mxu0 %v778
      %830 = vmatprep.subr.mxu0 %v777
      %831 = vmatpush1.msra.mxu0 %v776
      %832 = vmatprep.subr.mxu0 %v775
      %833 = vmatpush1.msra.mxu0 %v774
      %834 = vmatprep.subr.mxu0 %v773
      %835 = vmatpush1.msra.mxu0 %v772
      %836 = vmatprep.subr.mxu0 0.0
      %837 = vmatpush2.msra.mxu0 0.0
      %838 = vmatprep.subr.mxu0 0.0
      %839 = vmatpush2.msra.mxu0 0.0
      %840 = vmatprep.subr.mxu0 0.0
      %841 = vmatpush2.msra.mxu0 0.0
      %842 = vmatprep.subr.mxu0 0.0
      %843 = vmatpush2.msra.mxu0 0.0
      %844 = vmatprep.subr.mxu0 0.0
      %845 = vmatpush2.msra.mxu0 0.0
      %846 = vmatprep.subr.mxu0 0.0
      %847 = vmatpush2.msra.mxu0 0.0
      %848 = vmatprep.subr.mxu0 0.0
      %849 = vmatpush2.msra.mxu0 0.0
      %850 = vmatprep.subr.mxu0 0.0
      %851 = vmatpush2.msra.mxu0 0.0
      %852 = vmatprep.subr.mxu0 0.0
      %853 = vmatpush2.msra.mxu0 0.0
      %854 = vmatprep.subr.mxu0 0.0
      %855 = vmatpush2.msra.mxu0 0.0
      %856 = vmatprep.subr.mxu0 0.0
      %857 = vmatpush2.msra.mxu0 0.0
      %858 = vmatprep.subr.mxu0 0.0
      %859 = vmatpush2.msra.mxu0 0.0
      %860 = vmatprep.subr.mxu0 0.0
      %861 = vmatpush2.msra.mxu0 0.0
      %862 = vmatprep.subr.mxu0 0.0
      %863 = vmatpush2.msra.mxu0 0.0
      %864 = vmatprep.subr.mxu0 0.0
      %865 = vmatpush2.msra.mxu0 0.0
      %866 = vmatprep.subr.mxu0 0.0
      %867 = vmatpush2.msra.mxu0 0.0
      %868 = vmatprep.mubr.f32.mxu0 0.0
      %869 = vmatmul.mubr.f32.gmra.mxu0 %v771
      %v870 = vpop.f32.mrf.mxu0
      %v871 = vadd.f32 0.0, %v870
      %v872 = vpop.f32.mrf.mxu0
      %v873 = vadd.f32 0.0, %v872
      %874 = vdwg.mxu0
      %876 = vrot.lane.b32.xlu0 %v485, 64
      %v877 = vpop.permute.xlu0 %876
      %v879 = vadd.f32 %v871, %v877
      %v880 = vxor.u32 %v879, 2147483648
      %v881 = vmul.f32 %v880, 1.442695
      %v882 = vpow.pop %v881
      %v883 = vadd.f32 %v882, 1.0
      %v884 = vrcp.pop %v883
      %v885 = vmul.f32 1.0, %v884
      %887 = vrot.lane.b32.xlu0 %v487, 64
      %v888 = vpop.permute.xlu0 %887
      %v890 = vadd.f32 %v871, %v888
      %v891 = vxor.u32 %v890, 2147483648
      %v892 = vmul.f32 %v891, 1.442695
      %v893 = vpow.pop %v892
      %v894 = vadd.f32 %v893, 1.0
      %v895 = vrcp.pop %v894
      %v896 = vmul.f32 1.0, %v895
      %v897 = vmul.f32 %v885, %v888
      %v898 = vadd.f32 %v873, %v897
      %v899 = vtanh.pop %v898
      %v900 = vsub.f32 %v308, %v899
      %902 = vrot.lane.b32.xlu0 %v900, 64
      %v903 = vpop.permute.xlu0 %902
      %v905 = vmul.f32 %v896, %v903
      %907 = vrot.lane.b32.xlu0 %v905, 64
      %v908 = vpop.permute.xlu0 %907
      %v910 = vadd.f32 %v899, %v908
      %v911 = vld [vmem:[%s6] sm:$0xff]
      %v912 = vld [vmem:[%s6 + $0x8] sm:$0xff]
      %v913 = vld [vmem:[%s6 + $0x10] sm:$0xff]
      %v914 = vld [vmem:[%s6 + $0x18] sm:$0xff]
      %v915 = vld [vmem:[%s6 + $0x20] sm:$0xff]
      %v916 = vld [vmem:[%s6 + $0x28] sm:$0xff]
      %v917 = vld [vmem:[%s6 + $0x30] sm:$0xff]
      %v918 = vld [vmem:[%s6 + $0x38] sm:$0xff]
      %v919 = vld [vmem:[%s6 + $0x40] sm:$0xff]
      %v920 = vld [vmem:[%s6 + $0x48] sm:$0xff]
      %v921 = vld [vmem:[%s6 + $0x50] sm:$0xff]
      %v922 = vld [vmem:[%s6 + $0x58] sm:$0xff]
      %v923 = vld [vmem:[%s6 + $0x60] sm:$0xff]
      %v924 = vld [vmem:[%s6 + $0x68] sm:$0xff]
      %v925 = vld [vmem:[%s6 + $0x70] sm:$0xff]
      %v926 = vld [vmem:[%s6 + $0x78] sm:$0xff]
      %v928 = vsel %vm325, %v910, 0
      %930 = vmatprep.subr.mxu0 0.0
      %931 = vmatpush1.msra.mxu0 0.0
      %932 = vmatprep.subr.mxu0 0.0
      %933 = vmatpush1.msra.mxu0 0.0
      %934 = vmatprep.subr.mxu0 0.0
      %935 = vmatpush1.msra.mxu0 0.0
      %936 = vmatprep.subr.mxu0 0.0
      %937 = vmatpush1.msra.mxu0 0.0
      %938 = vmatprep.subr.mxu0 0.0
      %939 = vmatpush1.msra.mxu0 0.0
      %940 = vmatprep.subr.mxu0 0.0
      %941 = vmatpush1.msra.mxu0 0.0
      %942 = vmatprep.subr.mxu0 0.0
      %943 = vmatpush1.msra.mxu0 0.0
      %944 = vmatprep.subr.mxu0 0.0
      %945 = vmatpush1.msra.mxu0 0.0
      %946 = vmatprep.subr.mxu0 %v926
      %947 = vmatpush1.msra.mxu0 %v925
      %948 = vmatprep.subr.mxu0 %v924
      %949 = vmatpush1.msra.mxu0 %v923
      %950 = vmatprep.subr.mxu0 %v922
      %951 = vmatpush1.msra.mxu0 %v921
      %952 = vmatprep.subr.mxu0 %v920
      %953 = vmatpush1.msra.mxu0 %v919
      %954 = vmatprep.subr.mxu0 %v918
      %955 = vmatpush1.msra.mxu0 %v917
      %956 = vmatprep.subr.mxu0 %v916
      %957 = vmatpush1.msra.mxu0 %v915
      %958 = vmatprep.subr.mxu0 %v914
      %959 = vmatpush1.msra.mxu0 %v913
      %960 = vmatprep.subr.mxu0 %v912
      %961 = vmatpush1.msra.mxu0 %v911
      %962 = vmatprep.subr.mxu0 0.0
      %963 = vmatpush2.msra.mxu0 0.0
      %964 = vmatprep.subr.mxu0 0.0
      %965 = vmatpush2.msra.mxu0 0.0
      %966 = vmatprep.subr.mxu0 0.0
      %967 = vmatpush2.msra.mxu0 0.0
      %968 = vmatprep.subr.mxu0 0.0
      %969 = vmatpush2.msra.mxu0 0.0
      %970 = vmatprep.subr.mxu0 0.0
      %971 = vmatpush2.msra.mxu0 0.0
      %972 = vmatprep.subr.mxu0 0.0
      %973 = vmatpush2.msra.mxu0 0.0
      %974 = vmatprep.subr.mxu0 0.0
      %975 = vmatpush2.msra.mxu0 0.0
      %976 = vmatprep.subr.mxu0 0.0
      %977 = vmatpush2.msra.mxu0 0.0
      %978 = vmatprep.subr.mxu0 0.0
      %979 = vmatpush2.msra.mxu0 0.0
      %980 = vmatprep.subr.mxu0 0.0
      %981 = vmatpush2.msra.mxu0 0.0
      %982 = vmatprep.subr.mxu0 0.0
      %983 = vmatpush2.msra.mxu0 0.0
      %984 = vmatprep.subr.mxu0 0.0
      %985 = vmatpush2.msra.mxu0 0.0
      %986 = vmatprep.subr.mxu0 0.0
      %987 = vmatpush2.msra.mxu0 0.0
      %988 = vmatprep.subr.mxu0 0.0
      %989 = vmatpush2.msra.mxu0 0.0
      %990 = vmatprep.subr.mxu0 0.0
      %991 = vmatpush2.msra.mxu0 0.0
      %992 = vmatprep.subr.mxu0 0.0
      %993 = vmatpush2.msra.mxu0 0.0
      %994 = vmatprep.mubr.f32.mxu0 0.0
      %995 = vmatmul.mubr.f32.gmra.mxu0 %v928
      %v996 = vpop.f32.mrf.mxu0
      %v997 = vadd.f32 0.0, %v996
      %v998 = vpop.f32.mrf.mxu0
      %v999 = vadd.f32 0.0, %v998
      %1000 = vdwg.mxu0
      %1002 = vrot.lane.b32.xlu0 %v997, 64
      %v1003 = vpop.permute.xlu0 %1002
      %v1005 = vmul.f32 %v997, %v1003
      %vm1006 = vcmask 58368
      %v1007 = vsel %vm1006, %v1005, 0.0
      %1008 = vadd.xlane.f32.xlu0 %v1007
      %v1009 = vpop.xlane.xlu0 %1008
      %1010 = vrot.lane.b32.xlu0 %v997, 56
      %v1011 = vpop.permute.xlu0 %1010
      %v1013 = vmul.f32 %v997, %v1011
      %v1014 = vsel %vm1006, %v1013, 0.0
      %1015 = vadd.xlane.f32.xlu0 %v1014
      %v1016 = vpop.xlane.xlu0 %1015
      %1017 = vrot.lane.b32.xlu0 %v997, 48
      %v1018 = vpop.permute.xlu0 %1017
      %v1020 = vmul.f32 %v997, %v1018
      %v1021 = vsel %vm1006, %v1020, 0.0
      %1022 = vadd.xlane.f32.xlu0 %v1021
      %v1023 = vpop.xlane.xlu0 %1022
      %1024 = vrot.lane.b32.xlu0 %v997, 40
      %v1025 = vpop.permute.xlu0 %1024
      %v1027 = vmul.f32 %v997, %v1025
      %v1028 = vsel %vm1006, %v1027, 0.0
      %1029 = vadd.xlane.f32.xlu0 %v1028
      %v1030 = vpop.xlane.xlu0 %1029
      %v1031 = vsel %vm565, %v1009, %v1016
      %v1032 = vsel %vm567, %v1031, %v1023
      %v1033 = vsel %vm569, %v1032, %v1030
      %v1034 = vmul.f32 %v1033, 0.35355338
      %vm1035 = vcmask 25600
      %v1036 = vsel %vm1035, %v1034, -inf
      %1037 = vmax.xlane.f32.xlu0 %v1036
      %v1038 = vpop.xlane.xlu0 %1037
      %v1039 = vsub.f32 %v1034, %v1038
      %v1040 = vmul.f32 %v1039, 1.442695
      %v1041 = vpow.pop %v1040
      %v1042 = vsel %vm1035, %v1041, 0.0
      %1043 = vadd.xlane.f32.xlu0 %v1042
      %v1044 = vpop.xlane.xlu0 %1043
      %v1045 = vrcp.pop %v1044
      %v1046 = vmul.f32 %v1041, %v1045
      %v1047 = vmul.f32 %v1046, %v700
      %1049 = vset.pattern.permute.xlu0 0
      %1050 = vperm.xlu0 %1049, %v1047
      %v1051 = vpop.permute.xlu0 %1050
      %v1053 = vmul.f32 %v1051, %v999
      %1054 = vset.pattern.permute.xlu0 1
      %1055 = vperm.xlu0 %1054, %v1047
      %v1056 = vpop.permute.xlu0 %1055
      %v1058 = vmul.f32 %v1056, %v999
      %1060 = vrot.lane.b32.xlu0 %v1058, 112
      %v1061 = vpop.permute.xlu0 %1060
      %v1063 = vadd.f32 %v1053, %v1061
      %1064 = vset.pattern.permute.xlu0 2
      %1065 = vperm.xlu0 %1064, %v1047
      %v1066 = vpop.permute.xlu0 %1065
      %v1068 = vmul.f32 %v1066, %v999
      %1070 = vrot.lane.b32.xlu0 %v1068, 96
      %v1071 = vpop.permute.xlu0 %1070
      %v1073 = vadd.f32 %v1063, %v1071
      %1074 = vset.pattern.permute.xlu0 3
      %1075 = vperm.xlu0 %1074, %v1047
      %v1076 = vpop.permute.xlu0 %1075
      %v1078 = vmul.f32 %v1076, %v999
      %1080 = vrot.lane.b32.xlu0 %v1078, 80
      %v1081 = vpop.permute.xlu0 %1080
      %v1083 = vadd.f32 %v1073, %v1081
      %1084 = vrot.lane.b32.xlu0 %v997, 72
      %v1085 = vpop.permute.xlu0 %1084
      %v1087 = vmul.f32 %v997, %v1085
      %1089 = vrot.lane.b32.xlu0 %v1087, 120
      %v1090 = vpop.permute.xlu0 %1089
      %v1092 = vsel %vm1006, %v1090, 0.0
      %1093 = vadd.xlane.f32.xlu0 %v1092
      %v1094 = vpop.xlane.xlu0 %1093
      %1096 = vrot.lane.b32.xlu0 %v1005, 120
      %v1097 = vpop.permute.xlu0 %1096
      %v1099 = vsel %vm1006, %v1097, 0.0
      %1100 = vadd.xlane.f32.xlu0 %v1099
      %v1101 = vpop.xlane.xlu0 %1100
      %1103 = vrot.lane.b32.xlu0 %v1013, 120
      %v1104 = vpop.permute.xlu0 %1103
      %v1106 = vsel %vm1006, %v1104, 0.0
      %1107 = vadd.xlane.f32.xlu0 %v1106
      %v1108 = vpop.xlane.xlu0 %1107
      %1110 = vrot.lane.b32.xlu0 %v1020, 120
      %v1111 = vpop.permute.xlu0 %1110
      %v1113 = vsel %vm1006, %v1111, 0.0
      %1114 = vadd.xlane.f32.xlu0 %v1113
      %v1115 = vpop.xlane.xlu0 %1114
      %v1116 = vsel %vm565, %v1094, %v1101
      %v1117 = vsel %vm567, %v1116, %v1108
      %v1118 = vsel %vm569, %v1117, %v1115
      %v1119 = vmul.f32 %v1118, 0.35355338
      %v1120 = vsel %vm1035, %v1119, -inf
      %1121 = vmax.xlane.f32.xlu0 %v1120
      %v1122 = vpop.xlane.xlu0 %1121
      %v1123 = vsub.f32 %v1119, %v1122
      %v1124 = vmul.f32 %v1123, 1.442695
      %v1125 = vpow.pop %v1124
      %v1126 = vsel %vm1035, %v1125, 0.0
      %1127 = vadd.xlane.f32.xlu0 %v1126
      %v1128 = vpop.xlane.xlu0 %1127
      %v1129 = vrcp.pop %v1128
      %v1130 = vmul.f32 %v1125, %v1129
      %v1131 = vmul.f32 %v1130, %v716
      %1133 = vset.pattern.permute.xlu0 0
      %1134 = vperm.xlu0 %1133, %v1131
      %v1135 = vpop.permute.xlu0 %1134
      %v1137 = vmul.f32 %v1135, %v999
      %1138 = vset.pattern.permute.xlu0 1
      %1139 = vperm.xlu0 %1138, %v1131
      %v1140 = vpop.permute.xlu0 %1139
      %v1142 = vmul.f32 %v1140, %v999
      %1144 = vrot.lane.b32.xlu0 %v1142, 112
      %v1145 = vpop.permute.xlu0 %1144
      %v1147 = vadd.f32 %v1137, %v1145
      %1148 = vset.pattern.permute.xlu0 2
      %1149 = vperm.xlu0 %1148, %v1131
      %v1150 = vpop.permute.xlu0 %1149
      %v1152 = vmul.f32 %v1150, %v999
      %1154 = vrot.lane.b32.xlu0 %v1152, 96
      %v1155 = vpop.permute.xlu0 %1154
      %v1157 = vadd.f32 %v1147, %v1155
      %1158 = vset.pattern.permute.xlu0 3
      %1159 = vperm.xlu0 %1158, %v1131
      %v1160 = vpop.permute.xlu0 %1159
      %v1162 = vmul.f32 %v1160, %v999
      %1164 = vrot.lane.b32.xlu0 %v1162, 80
      %v1165 = vpop.permute.xlu0 %1164
      %v1167 = vadd.f32 %v1157, %v1165
      %1168 = vrot.lane.b32.xlu0 %v997, 80
      %v1169 = vpop.permute.xlu0 %1168
      %v1171 = vmul.f32 %v997, %v1169
      %1173 = vrot.lane.b32.xlu0 %v1171, 112
      %v1174 = vpop.permute.xlu0 %1173
      %v1176 = vsel %vm1006, %v1174, 0.0
      %1177 = vadd.xlane.f32.xlu0 %v1176
      %v1178 = vpop.xlane.xlu0 %1177
      %1179 = vrot.lane.b32.xlu0 %v1087, 112
      %v1180 = vpop.permute.xlu0 %1179
      %v1182 = vsel %vm1006, %v1180, 0.0
      %1183 = vadd.xlane.f32.xlu0 %v1182
      %v1184 = vpop.xlane.xlu0 %1183
      %1185 = vrot.lane.b32.xlu0 %v1005, 112
      %v1186 = vpop.permute.xlu0 %1185
      %v1188 = vsel %vm1006, %v1186, 0.0
      %1189 = vadd.xlane.f32.xlu0 %v1188
      %v1190 = vpop.xlane.xlu0 %1189
      %1191 = vrot.lane.b32.xlu0 %v1013, 112
      %v1192 = vpop.permute.xlu0 %1191
      %v1194 = vsel %vm1006, %v1192, 0.0
      %1195 = vadd.xlane.f32.xlu0 %v1194
      %v1196 = vpop.xlane.xlu0 %1195
      %v1197 = vsel %vm565, %v1178, %v1184
      %v1198 = vsel %vm567, %v1197, %v1190
      %v1199 = vsel %vm569, %v1198, %v1196
      %v1200 = vmul.f32 %v1199, 0.35355338
      %v1201 = vsel %vm1035, %v1200, -inf
      %1202 = vmax.xlane.f32.xlu0 %v1201
      %v1203 = vpop.xlane.xlu0 %1202
      %v1204 = vsub.f32 %v1200, %v1203
      %v1205 = vmul.f32 %v1204, 1.442695
      %v1206 = vpow.pop %v1205
      %v1207 = vsel %vm1035, %v1206, 0.0
      %1208 = vadd.xlane.f32.xlu0 %v1207
      %v1209 = vpop.xlane.xlu0 %1208
      %v1210 = vrcp.pop %v1209
      %v1211 = vmul.f32 %v1206, %v1210
      %v1212 = vmul.f32 %v1211, %v732
      %1214 = vset.pattern.permute.xlu0 0
      %1215 = vperm.xlu0 %1214, %v1212
      %v1216 = vpop.permute.xlu0 %1215
      %v1218 = vmul.f32 %v1216, %v999
      %1219 = vset.pattern.permute.xlu0 1
      %1220 = vperm.xlu0 %1219, %v1212
      %v1221 = vpop.permute.xlu0 %1220
      %v1223 = vmul.f32 %v1221, %v999
      %1225 = vrot.lane.b32.xlu0 %v1223, 112
      %v1226 = vpop.permute.xlu0 %1225
      %v1228 = vadd.f32 %v1218, %v1226
      %1229 = vset.pattern.permute.xlu0 2
      %1230 = vperm.xlu0 %1229, %v1212
      %v1231 = vpop.permute.xlu0 %1230
      %v1233 = vmul.f32 %v1231, %v999
      %1235 = vrot.lane.b32.xlu0 %v1233, 96
      %v1236 = vpop.permute.xlu0 %1235
      %v1238 = vadd.f32 %v1228, %v1236
      %1239 = vset.pattern.permute.xlu0 3
      %1240 = vperm.xlu0 %1239, %v1212
      %v1241 = vpop.permute.xlu0 %1240
      %v1243 = vmul.f32 %v1241, %v999
      %1245 = vrot.lane.b32.xlu0 %v1243, 80
      %v1246 = vpop.permute.xlu0 %1245
      %v1248 = vadd.f32 %v1238, %v1246
      %1249 = vrot.lane.b32.xlu0 %v997, 88
      %v1250 = vpop.permute.xlu0 %1249
      %v1252 = vmul.f32 %v997, %v1250
      %1254 = vrot.lane.b32.xlu0 %v1252, 104
      %v1255 = vpop.permute.xlu0 %1254
      %v1257 = vsel %vm1006, %v1255, 0.0
      %1258 = vadd.xlane.f32.xlu0 %v1257
      %v1259 = vpop.xlane.xlu0 %1258
      %1260 = vrot.lane.b32.xlu0 %v1171, 104
      %v1261 = vpop.permute.xlu0 %1260
      %v1263 = vsel %vm1006, %v1261, 0.0
      %1264 = vadd.xlane.f32.xlu0 %v1263
      %v1265 = vpop.xlane.xlu0 %1264
      %1266 = vrot.lane.b32.xlu0 %v1087, 104
      %v1267 = vpop.permute.xlu0 %1266
      %v1269 = vsel %vm1006, %v1267, 0.0
      %1270 = vadd.xlane.f32.xlu0 %v1269
      %v1271 = vpop.xlane.xlu0 %1270
      %1272 = vrot.lane.b32.xlu0 %v1005, 104
      %v1273 = vpop.permute.xlu0 %1272
      %v1275 = vsel %vm1006, %v1273, 0.0
      %1276 = vadd.xlane.f32.xlu0 %v1275
      %v1277 = vpop.xlane.xlu0 %1276
      %v1278 = vsel %vm565, %v1259, %v1265
      %v1279 = vsel %vm567, %v1278, %v1271
      %v1280 = vsel %vm569, %v1279, %v1277
      %v1281 = vmul.f32 %v1280, 0.35355338
      %v1282 = vsel %vm1035, %v1281, -inf
      %1283 = vmax.xlane.f32.xlu0 %v1282
      %v1284 = vpop.xlane.xlu0 %1283
      %v1285 = vsub.f32 %v1281, %v1284
      %v1286 = vmul.f32 %v1285, 1.442695
      %v1287 = vpow.pop %v1286
      %v1288 = vsel %vm1035, %v1287, 0.0
      %1289 = vadd.xlane.f32.xlu0 %v1288
      %v1290 = vpop.xlane.xlu0 %1289
      %v1291 = vrcp.pop %v1290
      %v1292 = vmul.f32 %v1287, %v1291
      %v1293 = vmul.f32 %v1292, %v748
      %1295 = vset.pattern.permute.xlu0 0
      %1296 = vperm.xlu0 %1295, %v1293
      %v1297 = vpop.permute.xlu0 %1296
      %v1299 = vmul.f32 %v1297, %v999
      %1300 = vset.pattern.permute.xlu0 1
      %1301 = vperm.xlu0 %1300, %v1293
      %v1302 = vpop.permute.xlu0 %1301
      %v1304 = vmul.f32 %v1302, %v999
      %1306 = vrot.lane.b32.xlu0 %v1304, 112
      %v1307 = vpop.permute.xlu0 %1306
      %v1309 = vadd.f32 %v1299, %v1307
      %1310 = vset.pattern.permute.xlu0 2
      %1311 = vperm.xlu0 %1310, %v1293
      %v1312 = vpop.permute.xlu0 %1311
      %v1314 = vmul.f32 %v1312, %v999
      %1316 = vrot.lane.b32.xlu0 %v1314, 96
      %v1317 = vpop.permute.xlu0 %1316
      %v1319 = vadd.f32 %v1309, %v1317
      %1320 = vset.pattern.permute.xlu0 3
      %1321 = vperm.xlu0 %1320, %v1293
      %v1322 = vpop.permute.xlu0 %1321
      %v1324 = vmul.f32 %v1322, %v999
      %1326 = vrot.lane.b32.xlu0 %v1324, 80
      %v1327 = vpop.permute.xlu0 %1326
      %v1329 = vadd.f32 %v1319, %v1327
      %1330 = vrot.lane.b32.xlu0 %v1005, 96
      %v1331 = vpop.permute.xlu0 %1330
      %v1333 = vsel %vm1006, %v1331, 0.0
      %1334 = vadd.xlane.f32.xlu0 %v1333
      %v1335 = vpop.xlane.xlu0 %1334
      %1336 = vrot.lane.b32.xlu0 %v1013, 96
      %v1337 = vpop.permute.xlu0 %1336
      %v1339 = vsel %vm1006, %v1337, 0.0
      %1340 = vadd.xlane.f32.xlu0 %v1339
      %v1341 = vpop.xlane.xlu0 %1340
      %1342 = vrot.lane.b32.xlu0 %v1020, 96
      %v1343 = vpop.permute.xlu0 %1342
      %v1345 = vsel %vm1006, %v1343, 0.0
      %1346 = vadd.xlane.f32.xlu0 %v1345
      %v1347 = vpop.xlane.xlu0 %1346
      %1349 = vrot.lane.b32.xlu0 %v1027, 96
      %v1350 = vpop.permute.xlu0 %1349
      %v1352 = vsel %vm1006, %v1350, 0.0
      %1353 = vadd.xlane.f32.xlu0 %v1352
      %v1354 = vpop.xlane.xlu0 %1353
      %v1355 = vsel %vm565, %v1335, %v1341
      %v1356 = vsel %vm567, %v1355, %v1347
      %v1357 = vsel %vm569, %v1356, %v1354
      %v1358 = vmul.f32 %v1357, 0.35355338
      %v1359 = vsel %vm1035, %v1358, -inf
      %1360 = vmax.xlane.f32.xlu0 %v1359
      %v1361 = vpop.xlane.xlu0 %1360
      %v1362 = vsub.f32 %v1358, %v1361
      %v1363 = vmul.f32 %v1362, 1.442695
      %v1364 = vpow.pop %v1363
      %v1365 = vsel %vm1035, %v1364, 0.0
      %1366 = vadd.xlane.f32.xlu0 %v1365
      %v1367 = vpop.xlane.xlu0 %1366
      %v1368 = vrcp.pop %v1367
      %v1369 = vmul.f32 %v1364, %v1368
      %v1370 = vmul.f32 %v1369, %v700
      %1372 = vset.pattern.permute.xlu0 0
      %1373 = vperm.xlu0 %1372, %v1370
      %v1374 = vpop.permute.xlu0 %1373
      %v1376 = vmul.f32 %v1374, %v999
      %1377 = vset.pattern.permute.xlu0 1
      %1378 = vperm.xlu0 %1377, %v1370
      %v1379 = vpop.permute.xlu0 %1378
      %v1381 = vmul.f32 %v1379, %v999
      %1383 = vrot.lane.b32.xlu0 %v1381, 112
      %v1384 = vpop.permute.xlu0 %1383
      %v1386 = vadd.f32 %v1376, %v1384
      %1387 = vset.pattern.permute.xlu0 2
      %1388 = vperm.xlu0 %1387, %v1370
      %v1389 = vpop.permute.xlu0 %1388
      %v1391 = vmul.f32 %v1389, %v999
      %1393 = vrot.lane.b32.xlu0 %v1391, 96
      %v1394 = vpop.permute.xlu0 %1393
      %v1396 = vadd.f32 %v1386, %v1394
      %1397 = vset.pattern.permute.xlu0 3
      %1398 = vperm.xlu0 %1397, %v1370
      %v1399 = vpop.permute.xlu0 %1398
      %v1401 = vmul.f32 %v1399, %v999
      %1403 = vrot.lane.b32.xlu0 %v1401, 80
      %v1404 = vpop.permute.xlu0 %1403
      %v1406 = vadd.f32 %v1396, %v1404
      %1407 = vrot.lane.b32.xlu0 %v1087, 88
      %v1408 = vpop.permute.xlu0 %1407
      %v1410 = vsel %vm1006, %v1408, 0.0
      %1411 = vadd.xlane.f32.xlu0 %v1410
      %v1412 = vpop.xlane.xlu0 %1411
      %1413 = vrot.lane.b32.xlu0 %v1005, 88
      %v1414 = vpop.permute.xlu0 %1413
      %v1416 = vsel %vm1006, %v1414, 0.0
      %1417 = vadd.xlane.f32.xlu0 %v1416
      %v1418 = vpop.xlane.xlu0 %1417
      %1419 = vrot.lane.b32.xlu0 %v1013, 88
      %v1420 = vpop.permute.xlu0 %1419
      %v1422 = vsel %vm1006, %v1420, 0.0
      %1423 = vadd.xlane.f32.xlu0 %v1422
      %v1424 = vpop.xlane.xlu0 %1423
      %1425 = vrot.lane.b32.xlu0 %v1020, 88
      %v1426 = vpop.permute.xlu0 %1425
      %v1428 = vsel %vm1006, %v1426, 0.0
      %1429 = vadd.xlane.f32.xlu0 %v1428
      %v1430 = vpop.xlane.xlu0 %1429
      %v1431 = vsel %vm565, %v1412, %v1418
      %v1432 = vsel %vm567, %v1431, %v1424
      %v1433 = vsel %vm569, %v1432, %v1430
      %v1434 = vmul.f32 %v1433, 0.35355338
      %v1435 = vsel %vm1035, %v1434, -inf
      %1436 = vmax.xlane.f32.xlu0 %v1435
      %v1437 = vpop.xlane.xlu0 %1436
      %v1438 = vsub.f32 %v1434, %v1437
      %v1439 = vmul.f32 %v1438, 1.442695
      %v1440 = vpow.pop %v1439
      %v1441 = vsel %vm1035, %v1440, 0.0
      %1442 = vadd.xlane.f32.xlu0 %v1441
      %v1443 = vpop.xlane.xlu0 %1442
      %v1444 = vrcp.pop %v1443
      %v1445 = vmul.f32 %v1440, %v1444
      %v1446 = vmul.f32 %v1445, %v716
      %1448 = vset.pattern.permute.xlu0 0
      %1449 = vperm.xlu0 %1448, %v1446
      %v1450 = vpop.permute.xlu0 %1449
      %v1452 = vmul.f32 %v1450, %v999
      %1453 = vset.pattern.permute.xlu0 1
      %1454 = vperm.xlu0 %1453, %v1446
      %v1455 = vpop.permute.xlu0 %1454
      %v1457 = vmul.f32 %v1455, %v999
      %1459 = vrot.lane.b32.xlu0 %v1457, 112
      %v1460 = vpop.permute.xlu0 %1459
      %v1462 = vadd.f32 %v1452, %v1460
      %1463 = vset.pattern.permute.xlu0 2
      %1464 = vperm.xlu0 %1463, %v1446
      %v1465 = vpop.permute.xlu0 %1464
      %v1467 = vmul.f32 %v1465, %v999
      %1469 = vrot.lane.b32.xlu0 %v1467, 96
      %v1470 = vpop.permute.xlu0 %1469
      %v1472 = vadd.f32 %v1462, %v1470
      %1473 = vset.pattern.permute.xlu0 3
      %1474 = vperm.xlu0 %1473, %v1446
      %v1475 = vpop.permute.xlu0 %1474
      %v1477 = vmul.f32 %v1475, %v999
      %1479 = vrot.lane.b32.xlu0 %v1477, 80
      %v1480 = vpop.permute.xlu0 %1479
      %v1482 = vadd.f32 %v1472, %v1480
      %1483 = vrot.lane.b32.xlu0 %v1171, 80
      %v1484 = vpop.permute.xlu0 %1483
      %v1486 = vsel %vm1006, %v1484, 0.0
      %1487 = vadd.xlane.f32.xlu0 %v1486
      %v1488 = vpop.xlane.xlu0 %1487
      %1489 = vrot.lane.b32.xlu0 %v1087, 80
      %v1490 = vpop.permute.xlu0 %1489
      %v1492 = vsel %vm1006, %v1490, 0.0
      %1493 = vadd.xlane.f32.xlu0 %v1492
      %v1494 = vpop.xlane.xlu0 %1493
      %1495 = vrot.lane.b32.xlu0 %v1005, 80
      %v1496 = vpop.permute.xlu0 %1495
      %v1498 = vsel %vm1006, %v1496, 0.0
      %1499 = vadd.xlane.f32.xlu0 %v1498
      %v1500 = vpop.xlane.xlu0 %1499
      %1501 = vrot.lane.b32.xlu0 %v1013, 80
      %v1502 = vpop.permute.xlu0 %1501
      %v1504 = vsel %vm1006, %v1502, 0.0
      %1505 = vadd.xlane.f32.xlu0 %v1504
      %v1506 = vpop.xlane.xlu0 %1505
      %v1507 = vsel %vm565, %v1488, %v1494
      %v1508 = vsel %vm567, %v1507, %v1500
      %v1509 = vsel %vm569, %v1508, %v1506
      %v1510 = vmul.f32 %v1509, 0.35355338
      %v1511 = vsel %vm1035, %v1510, -inf
      %1512 = vmax.xlane.f32.xlu0 %v1511
      %v1513 = vpop.xlane.xlu0 %1512
      %v1514 = vsub.f32 %v1510, %v1513
      %v1515 = vmul.f32 %v1514, 1.442695
      %v1516 = vpow.pop %v1515
      %v1517 = vsel %vm1035, %v1516, 0.0
      %1518 = vadd.xlane.f32.xlu0 %v1517
      %v1519 = vpop.xlane.xlu0 %1518
      %v1520 = vrcp.pop %v1519
      %v1521 = vmul.f32 %v1516, %v1520
      %v1522 = vmul.f32 %v1521, %v732
      %1524 = vset.pattern.permute.xlu0 0
      %1525 = vperm.xlu0 %1524, %v1522
      %v1526 = vpop.permute.xlu0 %1525
      %v1528 = vmul.f32 %v1526, %v999
      %1529 = vset.pattern.permute.xlu0 1
      %1530 = vperm.xlu0 %1529, %v1522
      %v1531 = vpop.permute.xlu0 %1530
      %v1533 = vmul.f32 %v1531, %v999
      %1535 = vrot.lane.b32.xlu0 %v1533, 112
      %v1536 = vpop.permute.xlu0 %1535
      %v1538 = vadd.f32 %v1528, %v1536
      %1539 = vset.pattern.permute.xlu0 2
      %1540 = vperm.xlu0 %1539, %v1522
      %v1541 = vpop.permute.xlu0 %1540
      %v1543 = vmul.f32 %v1541, %v999
      %1545 = vrot.lane.b32.xlu0 %v1543, 96
      %v1546 = vpop.permute.xlu0 %1545
      %v1548 = vadd.f32 %v1538, %v1546
      %1549 = vset.pattern.permute.xlu0 3
      %1550 = vperm.xlu0 %1549, %v1522
      %v1551 = vpop.permute.xlu0 %1550
      %v1553 = vmul.f32 %v1551, %v999
      %1555 = vrot.lane.b32.xlu0 %v1553, 80
      %v1556 = vpop.permute.xlu0 %1555
      %v1558 = vadd.f32 %v1548, %v1556
      %1559 = vrot.lane.b32.xlu0 %v1252, 72
      %v1560 = vpop.permute.xlu0 %1559
      %v1562 = vsel %vm1006, %v1560, 0.0
      %1563 = vadd.xlane.f32.xlu0 %v1562
      %v1564 = vpop.xlane.xlu0 %1563
      %1565 = vrot.lane.b32.xlu0 %v1171, 72
      %v1566 = vpop.permute.xlu0 %1565
      %v1568 = vsel %vm1006, %v1566, 0.0
      %1569 = vadd.xlane.f32.xlu0 %v1568
      %v1570 = vpop.xlane.xlu0 %1569
      %1571 = vrot.lane.b32.xlu0 %v1087, 72
      %v1572 = vpop.permute.xlu0 %1571
      %v1574 = vsel %vm1006, %v1572, 0.0
      %1575 = vadd.xlane.f32.xlu0 %v1574
      %v1576 = vpop.xlane.xlu0 %1575
      %1577 = vrot.lane.b32.xlu0 %v1005, 72
      %v1578 = vpop.permute.xlu0 %1577
      %v1580 = vsel %vm1006, %v1578, 0.0
      %1581 = vadd.xlane.f32.xlu0 %v1580
      %v1582 = vpop.xlane.xlu0 %1581
      %v1583 = vsel %vm565, %v1564, %v1570
      %v1584 = vsel %vm567, %v1583, %v1576
      %v1585 = vsel %vm569, %v1584, %v1582
      %v1586 = vmul.f32 %v1585, 0.35355338
      %v1587 = vsel %vm1035, %v1586, -inf
      %1588 = vmax.xlane.f32.xlu0 %v1587
      %v1589 = vpop.xlane.xlu0 %1588
      %v1590 = vsub.f32 %v1586, %v1589
      %v1591 = vmul.f32 %v1590, 1.442695
      %v1592 = vpow.pop %v1591
      %v1593 = vsel %vm1035, %v1592, 0.0
      %1594 = vadd.xlane.f32.xlu0 %v1593
      %v1595 = vpop.xlane.xlu0 %1594
      %v1596 = vrcp.pop %v1595
      %v1597 = vmul.f32 %v1592, %v1596
      %v1598 = vmul.f32 %v1597, %v748
      %1600 = vset.pattern.permute.xlu0 0
      %1601 = vperm.xlu0 %1600, %v1598
      %v1602 = vpop.permute.xlu0 %1601
      %v1604 = vmul.f32 %v1602, %v999
      %1605 = vset.pattern.permute.xlu0 1
      %1606 = vperm.xlu0 %1605, %v1598
      %v1607 = vpop.permute.xlu0 %1606
      %v1609 = vmul.f32 %v1607, %v999
      %1611 = vrot.lane.b32.xlu0 %v1609, 112
      %v1612 = vpop.permute.xlu0 %1611
      %v1614 = vadd.f32 %v1604, %v1612
      %1615 = vset.pattern.permute.xlu0 2
      %1616 = vperm.xlu0 %1615, %v1598
      %v1617 = vpop.permute.xlu0 %1616
      %v1619 = vmul.f32 %v1617, %v999
      %1621 = vrot.lane.b32.xlu0 %v1619, 96
      %v1622 = vpop.permute.xlu0 %1621
      %v1624 = vadd.f32 %v1614, %v1622
      %1625 = vset.pattern.permute.xlu0 3
      %1626 = vperm.xlu0 %1625, %v1598
      %v1627 = vpop.permute.xlu0 %1626
      %v1629 = vmul.f32 %v1627, %v999
      %1631 = vrot.lane.b32.xlu0 %v1629, 80
      %v1632 = vpop.permute.xlu0 %1631
      %v1634 = vadd.f32 %v1624, %v1632
      %1636 = vrot.lane.b32.xlu0 %v1167, 16
      %v1637 = vpop.permute.xlu0 %1636
      %1640 = vrot.lane.b32.xlu0 %v1248, 32
      %v1641 = vpop.permute.xlu0 %1640
      %1644 = vrot.lane.b32.xlu0 %v1329, 48
      %v1645 = vpop.permute.xlu0 %1644
      %1648 = vrot.lane.b32.xlu0 %v1482, 16
      %v1649 = vpop.permute.xlu0 %1648
      %1652 = vrot.lane.b32.xlu0 %v1558, 32
      %v1653 = vpop.permute.xlu0 %1652
      %1656 = vrot.lane.b32.xlu0 %v1634, 48
      %v1657 = vpop.permute.xlu0 %1656
      %vm1659 = vcmask 130048
      %v1660 = vsel %vm1659, %v1083, %v1637
      %v1661 = vsel %vm767, %v1660, %v1641
      %vm1662 = vcmask 392192
      %v1663 = vsel %vm1662, %v1661, %v1645
      %v1664 = vsel %vm325, %v1663, %v1406
      %vm1665 = vcmask 654336
      %v1666 = vsel %vm1665, %v1664, %v1649
      %v1667 = vsel %vm770, %v1666, %v1653
      %vm1668 = vcmask 916480
      %v1669 = vsel %vm1668, %v1667, %v1657
      %v1670 = vld [vmem:[%s7] sm:$0xff]
      %v1671 = vld [vmem:[%s7 + $0x8] sm:$0xff]
      %v1672 = vld [vmem:[%s7 + $0x10] sm:$0xff]
      %v1673 = vld [vmem:[%s7 + $0x18] sm:$0xff]
      %v1674 = vld [vmem:[%s7 + $0x20] sm:$0xff]
      %v1675 = vld [vmem:[%s7 + $0x28] sm:$0xff]
      %v1676 = vld [vmem:[%s7 + $0x30] sm:$0xff]
      %v1677 = vld [vmem:[%s7 + $0x38] sm:$0xff]
      %v1678 = vld [vmem:[%s7 + $0x40] sm:$0xff]
      %v1679 = vld [vmem:[%s7 + $0x48] sm:$0xff]
      %v1680 = vld [vmem:[%s7 + $0x50] sm:$0xff]
      %v1681 = vld [vmem:[%s7 + $0x58] sm:$0xff]
      %v1682 = vld [vmem:[%s7 + $0x60] sm:$0xff]
      %v1683 = vld [vmem:[%s7 + $0x68] sm:$0xff]
      %v1684 = vld [vmem:[%s7 + $0x70] sm:$0xff]
      %v1685 = vld [vmem:[%s7 + $0x78] sm:$0xff]
      %1686 = vmatprep.subr.mxu0 0.0
      %1687 = vmatpush1.msra.mxu0 %v1685
      %1688 = vmatprep.subr.mxu0 0.0
      %1689 = vmatpush1.msra.mxu0 %v1684
      %1690 = vmatprep.subr.mxu0 0.0
      %1691 = vmatpush1.msra.mxu0 %v1683
      %1692 = vmatprep.subr.mxu0 0.0
      %1693 = vmatpush1.msra.mxu0 %v1682
      %1694 = vmatprep.subr.mxu0 0.0
      %1695 = vmatpush1.msra.mxu0 %v1681
      %1696 = vmatprep.subr.mxu0 0.0
      %1697 = vmatpush1.msra.mxu0 %v1680
      %1698 = vmatprep.subr.mxu0 0.0
      %1699 = vmatpush1.msra.mxu0 %v1679
      %1700 = vmatprep.subr.mxu0 0.0
      %1701 = vmatpush1.msra.mxu0 %v1678
      %1702 = vmatprep.subr.mxu0 0.0
      %1703 = vmatpush1.msra.mxu0 %v1677
      %1704 = vmatprep.subr.mxu0 0.0
      %1705 = vmatpush1.msra.mxu0 %v1676
      %1706 = vmatprep.subr.mxu0 0.0
      %1707 = vmatpush1.msra.mxu0 %v1675
      %1708 = vmatprep.subr.mxu0 0.0
      %1709 = vmatpush1.msra.mxu0 %v1674
      %1710 = vmatprep.subr.mxu0 0.0
      %1711 = vmatpush1.msra.mxu0 %v1673
      %1712 = vmatprep.subr.mxu0 0.0
      %1713 = vmatpush1.msra.mxu0 %v1672
      %1714 = vmatprep.subr.mxu0 0.0
      %1715 = vmatpush1.msra.mxu0 %v1671
      %1716 = vmatprep.subr.mxu0 0.0
      %1717 = vmatpush1.msra.mxu0 %v1670
      %1718 = vmatprep.subr.mxu0 0.0
      %1719 = vmatpush2.msra.mxu0 0.0
      %1720 = vmatprep.subr.mxu0 0.0
      %1721 = vmatpush2.msra.mxu0 0.0
      %1722 = vmatprep.subr.mxu0 0.0
      %1723 = vmatpush2.msra.mxu0 0.0
      %1724 = vmatprep.subr.mxu0 0.0
      %1725 = vmatpush2.msra.mxu0 0.0
      %1726 = vmatprep.subr.mxu0 0.0
      %1727 = vmatpush2.msra.mxu0 0.0
      %1728 = vmatprep.subr.mxu0 0.0
      %1729 = vmatpush2.msra.mxu0 0.0
      %1730 = vmatprep.subr.mxu0 0.0
      %1731 = vmatpush2.msra.mxu0 0.0
      %1732 = vmatprep.subr.mxu0 0.0
      %1733 = vmatpush2.msra.mxu0 0.0
      %1734 = vmatprep.subr.mxu0 0.0
      %1735 = vmatpush2.msra.mxu0 0.0
      %1736 = vmatprep.subr.mxu0 0.0
      %1737 = vmatpush2.msra.mxu0 0.0
      %1738 = vmatprep.subr.mxu0 0.0
      %1739 = vmatpush2.msra.mxu0 0.0
      %1740 = vmatprep.subr.mxu0 0.0
      %1741 = vmatpush2.msra.mxu0 0.0
      %1742 = vmatprep.subr.mxu0 0.0
      %1743 = vmatpush2.msra.mxu0 0.0
      %1744 = vmatprep.subr.mxu0 0.0
      %1745 = vmatpush2.msra.mxu0 0.0
      %1746 = vmatprep.subr.mxu0 0.0
      %1747 = vmatpush2.msra.mxu0 0.0
      %1748 = vmatprep.subr.mxu0 0.0
      %1749 = vmatpush2.msra.mxu0 0.0
      %1750 = vmatprep.mubr.f32.mxu0 0.0
      %1751 = vmatmul.mubr.f32.gmra.mxu0 %v1669
      %v1752 = vpop.f32.mrf.mxu0
      %v1753 = vadd.f32 %v910, %v1752
      %v1754 = vpop.f32.mrf.mxu0
      %1755 = vdwg.mxu0
      %v1756 = vsel %vm1659, %v700, %v716
      %v1757 = vsel %vm767, %v1756, %v732
      %v1758 = vsel %vm1662, %v1757, %v748
      %v1759 = vmul.f32 %v1758, %v1753
      %v1760 = vsub.f32 1.0, %v1758
      %v1761 = vmul.f32 %v1760, %v308
      %v1762 = vadd.f32 %v1759, %v1761
      %vm1763 = vcmask 517120
      %1764 = vst.msk [vmem:[#allocation2] sm:$0x3] %vm1763, %v1762
      %1765 = vst.msk [vmem:[%s300] sm:$0x3] %vm1763, %v1762
      %p1766 = scmp.lt.s32.totalorder %s19, 5
      %s1767 = scalar_select %p1766, %s19, 5
      %s1768 = smul.addr %s1767, 2
      %s1769 = scalar_lea.vmem %s8, %s1768
      // Predicated region
      $region57: #{rim_forward.3} parent=51 // pred_check
        %p1770 = pneg %p210
      $region58: #{rim_forward.3} parent=51 // pred_check_branch
        %1772 = sbr.rel (%p1770) target = $region60
      $region59: #{rim_forward.3} parent=51 // pred_region
        _
      $region60: #{rim_forward.3} parent=51 // pred_fallthru
        _
    $region52: #{rim_forward.3} parent=5 // pred_fallthru
      _
    %p1773 = scmp.le.s32.totalorder 2, %s14
    // Predicated region
    $region61: #{rim_forward.3} parent=5 // pred_check
      %p1774 = pneg %p1773
    $region62: #{rim_forward.3} parent=5 // pred_check_branch
      %1776 = sbr.rel (%p1774) target = $region64
    $region63: #{rim_forward.3} parent=5 // pred_region
      %s1777 = ssub.s32 %s14, 2
      // Predicated region
      $region65: #{rim_forward.3} parent=63 // pred_check
        %p1778 = pneg %p216
      $region66: #{rim_forward.3} parent=63 // pred_check_branch
        %1780 = sbr.rel (%p1778) target = $region68
      $region67: #{rim_forward.3} parent=63 // pred_region
        %p1781 = scmp.lt.s32.totalorder %s20, 5
        %s1782 = scalar_select %p1781, %s20, 5
        %s1783 = smul.addr %s1782, 2
        %s1784 = scalar_lea.vmem %s8, %s1783
      $region68: #{rim_forward.3} parent=63 // pred_fallthru
        _
    $region64: #{rim_forward.3} parent=5 // pred_fallthru
      _
  $region6: #{rim_forward.3} parent=0 // loop_footer
    %s18 = sadd.s32 1, %s14
  $region7: #{rim_forward.3} parent=0 // loop_footer_branch
    %13 = sbr.rel target = $region3
  $region8: #{rim_forward.3} parent=0 // loop_exit
    _

</llo_original>
